<compile_context>
chip_gen: v7x
topology: tpu7x:2x2x1
jax: 0.10.0
libtpu: 0.0.40
codegen_flags: <defaults>
</compile_context>

<pallas_src>
import functools

import jax
import jax.numpy as jnp
from jax.experimental import pallas as pl
from jax.experimental.pallas import tpu as pltpu

EPS = 1e-5
LANE = 128
_VMEM_LIMIT = 32 * 1024 * 1024   # safe on v5e/v6e (128 MiB VMEM) and v7x (64 MiB VMEM)

_CPARAMS = pltpu.CompilerParams(
    dimension_semantics=("parallel",),   # 2 TensorCores on v7x; harmless on v5e/v6e
    vmem_limit_bytes=_VMEM_LIMIT,
)


def _round_up(x, m):
    return ((x + m - 1) // m) * m


def _pick_row_tile(p):
    # Largest row tile (multiple of 8) dividing the pixel count.  Kept modest here so the
    # toy test exercises a multi-step pipelined grid; at production shapes use 512-1024
    # rows (and roughly half that VMEM budget on v7x).
    for t in (256, 128, 64, 32, 16, 8):
        if p % t == 0:
            return t
    return p


def _cost(flops, bytes_accessed):
    return pl.CostEstimate(flops=int(flops), transcendentals=0,
                           bytes_accessed=int(bytes_accessed))


# --------------------------------- kernels ---------------------------------
def _stage1_kernel(*refs, use_shortcut):
    """BN1 -> ReLU -> 1x1 conv (+ optional 1x1 shortcut conv) on one tile of pixel rows.
    Also emits per-tile partial (sum, sum^2) of h1 for BN2."""
    if use_shortcut:
        x_ref, s1_ref, t1_ref, w1_ref, ws_ref, h1_ref, st_ref, sc_ref = refs
    else:
        x_ref, s1_ref, t1_ref, w1_ref, h1_ref, st_ref = refs

    x = x_ref[...]                                               # (T, Cin_p) f32

    if use_shortcut:                                             # shortcut first: x can die early
        sc_ref[...] = jnp.dot(x.astype(jnp.bfloat16), ws_ref[...],
                              preferred_element_type=jnp.float32)

    a = jnp.maximum(x * s1_ref[...] + t1_ref[...], 0.0)          # folded BN1 + ReLU (f32)
    h1 = jnp.dot(a.astype(jnp.bfloat16), w1_ref[...],
                 preferred_element_type=jnp.float32)             # (T, Cmid_p) f32
    h1_ref[...] = h1

    ssum = jnp.sum(h1, axis=0, keepdims=True)                    # (1, Cmid_p)
    ssq = jnp.sum(h1 * h1, axis=0, keepdims=True)
    st_ref[...] = jnp.concatenate([ssum, ssq], axis=0)[None]     # (1, 2, Cmid_p)


def _stage2_kernel(h1_ref, s2_ref, t2_ref, w2_ref, h2_ref, st_ref):
    """BN2 -> ReLU -> 3x3 conv (padding=1) for one batch element, as a single im2col
    matmul (contraction dim 9*Cmid_p).  Emits per-sample partial stats of h2."""
    _, H, W, C = h1_ref.shape
    Co = w2_ref.shape[-1]

    a = jnp.maximum(h1_ref[0] * s2_ref[...] + t2_ref[...], 0.0)          # (H, W, C) f32
    ap = jnp.pad(a.astype(jnp.bfloat16), ((1, 1), (1, 1), (0, 0)))       # zero halo

    cols = [ap[ky:ky + H, kx:kx + W, :].reshape(H * W, C)
            for ky in range(3) for kx in range(3)]
    patch = jnp.concatenate(cols, axis=1)                                # (H*W, 9*C) bf16
    h2 = jnp.dot(patch, w2_ref[...], preferred_element_type=jnp.float32)  # (H*W, Co) f32

    h2_ref[...] = h2.reshape(1, H, W, Co)
    ssum = jnp.sum(h2, axis=0, keepdims=True)
    ssq = jnp.sum(h2 * h2, axis=0, keepdims=True)
    st_ref[...] = jnp.concatenate([ssum, ssq], axis=0)[None]


def _stage3_kernel(h2_ref, s3_ref, t3_ref, w3_ref, sc_ref, o_ref):
    """BN3 -> ReLU -> 1x1 conv + shortcut on one tile of pixel rows."""
    a = jnp.maximum(h2_ref[...] * s3_ref[...] + t3_ref[...], 0.0)
    left = jnp.dot(a.astype(jnp.bfloat16), w3_ref[...],
                   preferred_element_type=jnp.float32)
    o_ref[...] = left + sc_ref[...]


# --------------------------------- wrapper ---------------------------------
def residual_block(x_nchw, params, *, use_shortcut: bool):
    """x_nchw: (N, Cin, H, W) f32 -> (N, Cout, H, W) f32.
    Matches the training-mode forward of the PyTorch ResidualBlock
    (BatchNorm uses batch statistics, biased variance, eps=1e-5, conv bias=False)."""
    N, Cin, H, W = x_nchw.shape
    Cmid = params["w1"].shape[-1]
    Cout = params["w3"].shape[-1]
    if not use_shortcut and Cin != Cout:
        raise ValueError("identity shortcut requires in_channels == out_channels")

    Cin_p, Cmid_p, Cout_p = (_round_up(c, LANE) for c in (Cin, Cmid, Cout))
    P = N * H * W
    T = _pick_row_tile(P)
    G = P // T
    f32, bf16 = jnp.float32, jnp.bfloat16

    # Layout glue: NCHW -> NHWC, pad channels to a lane multiple, flatten pixels.
    # For a stack of residual blocks keep activations in this (P, C_pad) layout end-to-end
    # and pay the transpose/pad only once at the network boundary.
    x = jnp.transpose(x_nchw, (0, 2, 3, 1)).astype(f32)
    x2 = jnp.pad(x, ((0, 0), (0, 0), (0, 0), (0, Cin_p - Cin))).reshape(P, Cin_p)

    padc = lambda v, c: jnp.pad(v, ((0, 0), (0, c - v.shape[-1])))
    g1, b1 = padc(params["g1"], Cin_p), padc(params["b1"], Cin_p)
    g2, b2 = padc(params["g2"], Cmid_p), padc(params["b2"], Cmid_p)
    g3, b3 = padc(params["g3"], Cmid_p), padc(params["b3"], Cmid_p)
    w1p = jnp.pad(params["w1"], ((0, Cin_p - Cin), (0, Cmid_p - Cmid))).astype(bf16)
    w2p = jnp.pad(params["w2"], ((0, 0), (0, 0),
                                 (0, Cmid_p - Cmid), (0, Cmid_p - Cmid))).astype(bf16)
    w2p = w2p.reshape(9 * Cmid_p, Cmid_p)            # im2col weight layout: row=(ky,kx,cin)
    w3p = jnp.pad(params["w3"], ((0, Cmid_p - Cmid), (0, Cout_p - Cout))).astype(bf16)

    def bn_affine(mean, var, gamma, beta):
        scale = gamma * jax.lax.rsqrt(var + EPS)
        return scale, beta - mean * scale

    # BN1 statistics: one cheap fused XLA reduction over x.  (In a stacked network these
    # would be emitted by the previous block's stage-3 kernel, exactly like BN2/BN3 below.)
    m1 = jnp.mean(x2, axis=0, keepdims=True)
    v1 = jnp.maximum(jnp.mean(x2 * x2, axis=0, keepdims=True) - m1 * m1, 0.0)
    s1, t1 = bn_affine(m1, v1, g1, b1)

    # ------------- stage 1: BN1+ReLU -> 1x1 conv (+ shortcut conv), row-tiled -------------
    in_specs = [pl.BlockSpec((T, Cin_p), lambda i: (i, 0)),
                pl.BlockSpec((1, Cin_p), lambda i: (0, 0)),
                pl.BlockSpec((1, Cin_p), lambda i: (0, 0)),
                pl.BlockSpec((Cin_p, Cmid_p), lambda i: (0, 0))]
    args = [x2, s1, t1, w1p]
    out_shape = [jax.ShapeDtypeStruct((P, Cmid_p), f32),
                 jax.ShapeDtypeStruct((G, 2, Cmid_p), f32)]
    out_specs = [pl.BlockSpec((T, Cmid_p), lambda i: (i, 0)),
                 pl.BlockSpec((1, 2, Cmid_p), lambda i: (i, 0, 0))]
    flops1 = 2 * P * Cin_p * Cmid_p + 4 * P * Cin_p
    bytes1 = 4 * P * (Cin_p + Cmid_p) + 2 * Cin_p * Cmid_p
    if use_shortcut:
        wsp = jnp.pad(params["ws"], ((0, Cin_p - Cin), (0, Cout_p - Cout))).astype(bf16)
        in_specs.append(pl.BlockSpec((Cin_p, Cout_p), lambda i: (0, 0)))
        args.append(wsp)
        out_shape.append(jax.ShapeDtypeStruct((P, Cout_p), f32))
        out_specs.append(pl.BlockSpec((T, Cout_p), lambda i: (i, 0)))
        flops1 += 2 * P * Cin_p * Cout_p
        bytes1 += 4 * P * Cout_p + 2 * Cin_p * Cout_p

    outs = pl.pallas_call(
        functools.partial(_stage1_kernel, use_shortcut=use_shortcut),
        grid=(G,),
        in_specs=in_specs,
        out_specs=tuple(out_specs),
        out_shape=tuple(out_shape),
        compiler_params=_CPARAMS,
        cost_estimate=_cost(flops1, bytes1),
    )(*args)
    if use_shortcut:
        h1_flat, st2, sc2 = outs
    else:
        h1_flat, st2 = outs
        sc2 = x2                     # identity shortcut (Cin == Cout, hence Cin_p == Cout_p)

    sums2 = jnp.sum(st2, axis=0)                     # (2, Cmid_p)
    m2 = sums2[0:1] / P
    v2 = jnp.maximum(sums2[1:2] / P - m2 * m2, 0.0)  # biased variance, like PyTorch BN fwd
    s2, t2 = bn_affine(m2, v2, g2, b2)

    # ------------- stage 2: BN2+ReLU -> 3x3 conv as one im2col matmul, batch-tiled -------------
    h1 = h1_flat.reshape(N, H, W, Cmid_p)
    h2, st3 = pl.pallas_call(
        _stage2_kernel,
        grid=(N,),
        in_specs=[pl.BlockSpec((1, H, W, Cmid_p), lambda n: (n, 0, 0, 0)),
                  pl.BlockSpec((1, Cmid_p), lambda n: (0, 0)),
                  pl.BlockSpec((1, Cmid_p), lambda n: (0, 0)),
                  pl.BlockSpec((9 * Cmid_p, Cmid_p), lambda n: (0, 0))],
        out_specs=(pl.BlockSpec((1, H, W, Cmid_p), lambda n: (n, 0, 0, 0)),
                   pl.BlockSpec((1, 2, Cmid_p), lambda n: (n, 0, 0))),
        out_shape=(jax.ShapeDtypeStruct((N, H, W, Cmid_p), f32),
                   jax.ShapeDtypeStruct((N, 2, Cmid_p), f32)),
        compiler_params=_CPARAMS,
        cost_estimate=_cost(2 * P * 9 * Cmid_p * Cmid_p + 4 * P * Cmid_p,
                            8 * P * Cmid_p + 2 * 9 * Cmid_p * Cmid_p),
    )(h1, s2, t2, w2p)
    # TODO(synk): for large H*W also tile stage 2 over H with a +/-1 row halo (manual DMA of
    # H_tile+2 rows) so a single sample never has to fit entirely in VMEM.

    sums3 = jnp.sum(st3, axis=0)
    m3 = sums3[0:1] / P
    v3 = jnp.maximum(sums3[1:2] / P - m3 * m3, 0.0)
    s3, t3 = bn_affine(m3, v3, g3, b3)

    # ------------- stage 3: BN3+ReLU -> 1x1 conv + shortcut, row-tiled -------------
    out2 = pl.pallas_call(
        _stage3_kernel,
        grid=(G,),
        in_specs=[pl.BlockSpec((T, Cmid_p), lambda i: (i, 0)),
                  pl.BlockSpec((1, Cmid_p), lambda i: (0, 0)),
                  pl.BlockSpec((1, Cmid_p), lambda i: (0, 0)),
                  pl.BlockSpec((Cmid_p, Cout_p), lambda i: (0, 0)),
                  pl.BlockSpec((T, Cout_p), lambda i: (i, 0))],
        out_specs=pl.BlockSpec((T, Cout_p), lambda i: (i, 0)),
        out_shape=jax.ShapeDtypeStruct((P, Cout_p), f32),
        compiler_params=_CPARAMS,
        cost_estimate=_cost(2 * P * Cmid_p * Cout_p + 5 * P * Cmid_p,
                            4 * P * (Cmid_p + 2 * Cout_p) + 2 * Cmid_p * Cout_p),
    )(h2.reshape(P, Cmid_p), s3, t3, w3p, sc2)

    out = out2.reshape(N, H, W, Cout_p)[..., :Cout]
    return jnp.transpose(out, (0, 3, 1, 2))                      # NHWC -> NCHW


# ------------------------- pure-JAX reference (bf16-matmul matched) -------------------------
def residual_block_ref(x_nchw, params, *, use_shortcut: bool):
    x = jnp.transpose(x_nchw, (0, 2, 3, 1)).astype(jnp.float32)
    Cin = x.shape[-1]
    Cmid = params["w1"].shape[-1]
    Cout = params["w3"].shape[-1]

    def bn_relu(h, g, b):
        m = jnp.mean(h, axis=(0, 1, 2), keepdims=True)
        v = jnp.mean((h - m) ** 2, axis=(0, 1, 2), keepdims=True)
        return jnp.maximum((h - m) * jax.lax.rsqrt(v + EPS) * g + b, 0.0)

    def conv(h, w, pad):
        return jax.lax.conv_general_dilated(
            h.astype(jnp.bfloat16), w.astype(jnp.bfloat16),
            window_strides=(1, 1), padding=[(pad, pad), (pad, pad)],
            dimension_numbers=("NHWC", "HWIO", "NHWC"),
            preferred_element_type=jnp.float32)

    h = bn_relu(x, params["g1"], params["b1"])
    h = conv(h, params["w1"].reshape(1, 1, Cin, Cmid), 0)
    h = bn_relu(h, params["g2"], params["b2"])
    h = conv(h, params["w2"], 1)
    h = bn_relu(h, params["g3"], params["b3"])
    left = conv(h, params["w3"].reshape(1, 1, Cmid, Cout), 0)
    sc = conv(x, params["ws"].reshape(1, 1, Cin, Cout), 0) if use_shortcut else x
    return jnp.transpose(left + sc, (0, 3, 1, 2))


# ------------------------- deterministic parameter construction -------------------------
def make_params(key, in_channels, mid_channels, out_channels):
    ks = jax.random.split(key, 10)
    return {
        "g1": 0.5 + jax.random.uniform(ks[0], (1, in_channels), jnp.float32),
        "b1": 0.1 * jax.random.normal(ks[1], (1, in_channels), jnp.float32),
        "w1": 0.1 * jax.random.normal(ks[2], (in_channels, mid_channels), jnp.float32),
        "g2": 0.5 + jax.random.uniform(ks[3], (1, mid_channels), jnp.float32),
        "b2": 0.1 * jax.random.normal(ks[4], (1, mid_channels), jnp.float32),
        "w2": 0.1 * jax.random.normal(ks[5], (3, 3, mid_channels, mid_channels), jnp.float32),
        "g3": 0.5 + jax.random.uniform(ks[6], (1, mid_channels), jnp.float32),
        "b3": 0.1 * jax.random.normal(ks[7], (1, mid_channels), jnp.float32),
        "w3": 0.1 * jax.random.normal(ks[8], (mid_channels, out_channels), jnp.float32),
        "ws": 0.1 * jax.random.normal(ks[9], (in_channels, out_channels), jnp.float32),
    }


if __name__ == "__main__":
    key = jax.random.PRNGKey(0)
    k_x, k_p = jax.random.split(key)

    # Small shapes consistent with the module: N=2, Cin=4, H=W=16, Cmid=8, Cout=8.
    N, Cin, H, W = 2, 4, 16, 16
    Cmid, Cout = 8, 8
    use_shortcut = True        # Cin != Cout -> projection shortcut, as in the PyTorch module

    x = jax.random.normal(k_x, (N, Cin, H, W), jnp.float32)     # NCHW (PyTorch convention)
    params = make_params(k_p, Cin, Cmid, Cout)

    fwd = jax.jit(functools.partial(residual_block, use_shortcut=use_shortcut))
    out = jax.block_until_ready(fwd(x, params))

    ref = residual_block_ref(x, params, use_shortcut=use_shortcut)
    assert out.shape == (N, Cout, H, W)
    max_err = float(jnp.max(jnp.abs(out - ref)))
    assert jnp.allclose(out, ref, atol=2e-2, rtol=2e-2), max_err

    print("KERNEL_OK")
</pallas_src>

<mosaic_0001>
module attributes {stable_mosaic.version = 11 : i64} {
  func.func @_stage1_kernel(%arg0: i32, %arg1: memref<256x128xf32, #tpu.memory_space<vmem>>, %arg2: memref<1x128xf32, #tpu.memory_space<vmem>>, %arg3: memref<1x128xf32, #tpu.memory_space<vmem>>, %arg4: memref<128x128xbf16, #tpu.memory_space<vmem>>, %arg5: memref<128x128xbf16, #tpu.memory_space<vmem>>, %arg6: memref<256x128xf32, #tpu.memory_space<vmem>>, %arg7: memref<1x2x128xf32, #tpu.memory_space<vmem>>, %arg8: memref<256x128xf32, #tpu.memory_space<vmem>>) attributes {dimension_semantics = [#tpu.dimension_semantics<parallel>], iteration_bounds = array<i64: 2>, scalar_prefetch = 0 : i64, scratch_operands = 0 : i64, tpu.core_type = #tpu.core_type<tc>, window_params = [{transform_indices = @transform_0, window_bounds = array<i64: 256, 128>}, {pipeline_mode = #tpu.pipeline_mode<synchronous>, transform_indices = @transform_1, window_bounds = array<i64: 1, 128>}, {pipeline_mode = #tpu.pipeline_mode<synchronous>, transform_indices = @transform_2, window_bounds = array<i64: 1, 128>}, {pipeline_mode = #tpu.pipeline_mode<synchronous>, transform_indices = @transform_3, window_bounds = array<i64: 128, 128>}, {pipeline_mode = #tpu.pipeline_mode<synchronous>, transform_indices = @transform_4, window_bounds = array<i64: 128, 128>}, {transform_indices = @transform_5, window_bounds = array<i64: 256, 128>}, {transform_indices = @transform_6, window_bounds = array<i64: 1, 2, 128>}, {transform_indices = @transform_7, window_bounds = array<i64: 256, 128>}]} {
    %c0 = arith.constant 0 : index
    %c0_0 = arith.constant 0 : index
    %0 = vector.load %arg1[%c0, %c0_0] : memref<256x128xf32, #tpu.memory_space<vmem>>, vector<256x128xf32>
    %1 = arith.truncf %0 : vector<256x128xf32> to vector<256x128xbf16>
    %c0_1 = arith.constant 0 : index
    %c0_2 = arith.constant 0 : index
    %2 = vector.load %arg5[%c0_1, %c0_2] : memref<128x128xbf16, #tpu.memory_space<vmem>>, vector<128x128xbf16>
    %cst = arith.constant dense<0.000000e+00> : vector<256x128xf32>
    %3 = tpu.matmul %1, %2, %cst {dimension_numbers = #tpu.dot_dimension_numbers<[1], [0], [0], [1], [0, 0, 1, 1], [], []>} : vector<256x128xbf16>, vector<128x128xbf16>, vector<256x128xf32> -> vector<256x128xf32>
    %c0_3 = arith.constant 0 : index
    %c0_4 = arith.constant 0 : index
    %4 = vector.load %arg8[%c0_3, %c0_4] : memref<256x128xf32, #tpu.memory_space<vmem>>, vector<256x128xf32>
    tpu.vector_store %arg8[%c0_3, %c0_4], %3 {strides = array<i32>} : memref<256x128xf32, #tpu.memory_space<vmem>>, vector<256x128xf32>,
    %c0_5 = arith.constant 0 : index
    %c0_6 = arith.constant 0 : index
    %5 = vector.load %arg2[%c0_5, %c0_6] : memref<1x128xf32, #tpu.memory_space<vmem>>, vector<1x128xf32>
    %6 = vector.broadcast %5 : vector<1x128xf32> to vector<256x128xf32>
    %7 = arith.mulf %0, %6 : vector<256x128xf32>
    %c0_7 = arith.constant 0 : index
    %c0_8 = arith.constant 0 : index
    %8 = vector.load %arg3[%c0_7, %c0_8] : memref<1x128xf32, #tpu.memory_space<vmem>>, vector<1x128xf32>
    %9 = vector.broadcast %8 : vector<1x128xf32> to vector<256x128xf32>
    %10 = arith.addf %7, %9 : vector<256x128xf32>
    %cst_9 = arith.constant 0.000000e+00 : f32
    %11 = vector.broadcast %cst_9 : f32 to vector<256x128xf32>
    %12 = arith.maximumf %10, %11 : vector<256x128xf32>
    %13 = arith.truncf %12 : vector<256x128xf32> to vector<256x128xbf16>
    %c0_10 = arith.constant 0 : index
    %c0_11 = arith.constant 0 : index
    %14 = vector.load %arg4[%c0_10, %c0_11] : memref<128x128xbf16, #tpu.memory_space<vmem>>, vector<128x128xbf16>
    %cst_12 = arith.constant dense<0.000000e+00> : vector<256x128xf32>
    %15 = tpu.matmul %13, %14, %cst_12 {dimension_numbers = #tpu.dot_dimension_numbers<[1], [0], [0], [1], [0, 0, 1, 1], [], []>} : vector<256x128xbf16>, vector<128x128xbf16>, vector<256x128xf32> -> vector<256x128xf32>
    %c0_13 = arith.constant 0 : index
    %c0_14 = arith.constant 0 : index
    %16 = vector.load %arg6[%c0_13, %c0_14] : memref<256x128xf32, #tpu.memory_space<vmem>>, vector<256x128xf32>
    tpu.vector_store %arg6[%c0_13, %c0_14], %15 {strides = array<i32>} : memref<256x128xf32, #tpu.memory_space<vmem>>, vector<256x128xf32>,
    %cst_15 = arith.constant dense<0.000000e+00> : vector<128xf32>
    %17 = vector.multi_reduction <add>, %15, %cst_15 [0] : vector<256x128xf32> to vector<128xf32>
    %18 = vector.shape_cast %17 : vector<128xf32> to vector<1x128xf32>
    %19 = arith.mulf %15, %15 : vector<256x128xf32>
    %cst_16 = arith.constant dense<0.000000e+00> : vector<128xf32>
    %20 = vector.multi_reduction <add>, %19, %cst_16 [0] : vector<256x128xf32> to vector<128xf32>
    %21 = vector.shape_cast %20 : vector<128xf32> to vector<1x128xf32>
    %22 = tpu.concatenate %18, %21 in 0 : vector<1x128xf32>, vector<1x128xf32> -> vector<2x128xf32>
    %23 = vector.shape_cast %22 : vector<2x128xf32> to vector<1x2x128xf32>
    %c0_17 = arith.constant 0 : index
    %c0_18 = arith.constant 0 : index
    %c0_19 = arith.constant 0 : index
    %24 = vector.load %arg7[%c0_17, %c0_18, %c0_19] : memref<1x2x128xf32, #tpu.memory_space<vmem>>, vector<1x2x128xf32>
    tpu.vector_store %arg7[%c0_17, %c0_18, %c0_19], %23 {strides = array<i32>} : memref<1x2x128xf32, #tpu.memory_space<vmem>>, vector<1x2x128xf32>,
    return
  }
  func.func @transform_0(%arg0: i32) -> (i32, i32) {
    %c0_i32 = arith.constant 0 : i32
    %c0_i32_0 = arith.constant 0 : i32
    return %arg0, %c0_i32 : i32, i32
  }
  func.func @transform_1(%arg0: i32) -> (i32, i32) {
    %c0_i32 = arith.constant 0 : i32
    %c0_i32_0 = arith.constant 0 : i32
    %c0_i32_1 = arith.constant 0 : i32
    return %c0_i32, %c0_i32_0 : i32, i32
  }
  func.func @transform_2(%arg0: i32) -> (i32, i32) {
    %c0_i32 = arith.constant 0 : i32
    %c0_i32_0 = arith.constant 0 : i32
    %c0_i32_1 = arith.constant 0 : i32
    return %c0_i32, %c0_i32_0 : i32, i32
  }
  func.func @transform_3(%arg0: i32) -> (i32, i32) {
    %c0_i32 = arith.constant 0 : i32
    %c0_i32_0 = arith.constant 0 : i32
    %c0_i32_1 = arith.constant 0 : i32
    return %c0_i32, %c0_i32_0 : i32, i32
  }
  func.func @transform_4(%arg0: i32) -> (i32, i32) {
    %c0_i32 = arith.constant 0 : i32
    %c0_i32_0 = arith.constant 0 : i32
    %c0_i32_1 = arith.constant 0 : i32
    return %c0_i32, %c0_i32_0 : i32, i32
  }
  func.func @transform_5(%arg0: i32) -> (i32, i32) {
    %c0_i32 = arith.constant 0 : i32
    %c0_i32_0 = arith.constant 0 : i32
    return %arg0, %c0_i32 : i32, i32
  }
  func.func @transform_6(%arg0: i32) -> (i32, i32, i32) {
    %c0_i32 = arith.constant 0 : i32
    %c0_i32_0 = arith.constant 0 : i32
    %c0_i32_1 = arith.constant 0 : i32
    return %arg0, %c0_i32, %c0_i32_0 : i32, i32, i32
  }
  func.func @transform_7(%arg0: i32) -> (i32, i32) {
    %c0_i32 = arith.constant 0 : i32
    %c0_i32_0 = arith.constant 0 : i32
    return %arg0, %c0_i32 : i32, i32
  }
}

module attributes {stable_mosaic.version = 11 : i64} {
  func.func @_stage2_kernel(%arg0: i32, %arg1: memref<1x16x16x128xf32, #tpu.memory_space<vmem>>, %arg2: memref<1x128xf32, #tpu.memory_space<vmem>>, %arg3: memref<1x128xf32, #tpu.memory_space<vmem>>, %arg4: memref<1152x128xbf16, #tpu.memory_space<vmem>>, %arg5: memref<1x16x16x128xf32, #tpu.memory_space<vmem>>, %arg6: memref<1x2x128xf32, #tpu.memory_space<vmem>>) attributes {dimension_semantics = [#tpu.dimension_semantics<parallel>], iteration_bounds = array<i64: 2>, scalar_prefetch = 0 : i64, scratch_operands = 0 : i64, tpu.core_type = #tpu.core_type<tc>, window_params = [{transform_indices = @transform_0, window_bounds = array<i64: 1, 16, 16, 128>}, {pipeline_mode = #tpu.pipeline_mode<synchronous>, transform_indices = @transform_1, window_bounds = array<i64: 1, 128>}, {pipeline_mode = #tpu.pipeline_mode<synchronous>, transform_indices = @transform_2, window_bounds = array<i64: 1, 128>}, {pipeline_mode = #tpu.pipeline_mode<synchronous>, transform_indices = @transform_3, window_bounds = array<i64: 1152, 128>}, {transform_indices = @transform_4, window_bounds = array<i64: 1, 16, 16, 128>}, {transform_indices = @transform_5, window_bounds = array<i64: 1, 2, 128>}]} {
    %c0 = arith.constant 0 : index
    %c0_0 = arith.constant 0 : index
    %c0_1 = arith.constant 0 : index
    %c0_2 = arith.constant 0 : index
    %0 = vector.load %arg1[%c0, %c0_0, %c0_1, %c0_2] : memref<1x16x16x128xf32, #tpu.memory_space<vmem>>, vector<1x16x16x128xf32>
    %1 = vector.shape_cast %0 : vector<1x16x16x128xf32> to vector<16x16x128xf32>
    %c0_3 = arith.constant 0 : index
    %c0_4 = arith.constant 0 : index
    %2 = vector.load %arg2[%c0_3, %c0_4] : memref<1x128xf32, #tpu.memory_space<vmem>>, vector<1x128xf32>
    %3 = vector.shape_cast %2 : vector<1x128xf32> to vector<1x1x128xf32>
    %4 = vector.broadcast %3 : vector<1x1x128xf32> to vector<16x16x128xf32>
    %5 = arith.mulf %1, %4 : vector<16x16x128xf32>
    %c0_5 = arith.constant 0 : index
    %c0_6 = arith.constant 0 : index
    %6 = vector.load %arg3[%c0_5, %c0_6] : memref<1x128xf32, #tpu.memory_space<vmem>>, vector<1x128xf32>
    %7 = vector.shape_cast %6 : vector<1x128xf32> to vector<1x1x128xf32>
    %8 = vector.broadcast %7 : vector<1x1x128xf32> to vector<16x16x128xf32>
    %9 = arith.addf %5, %8 : vector<16x16x128xf32>
    %cst = arith.constant 0.000000e+00 : f32
    %10 = vector.broadcast %cst : f32 to vector<16x16x128xf32>
    %11 = arith.maximumf %9, %10 : vector<16x16x128xf32>
    %12 = arith.truncf %11 : vector<16x16x128xf32> to vector<16x16x128xbf16>
    %c0_i32 = arith.constant 0 : i32
    %13 = arith.sitofp %c0_i32 : i32 to bf16
    %14 = vector.broadcast %13 : bf16 to vector<1x16x128xbf16>
    %15 = tpu.concatenate %14, %12 in 0 : vector<1x16x128xbf16>, vector<16x16x128xbf16> -> vector<17x16x128xbf16>
    %16 = vector.broadcast %13 : bf16 to vector<1x16x128xbf16>
    %17 = tpu.concatenate %15, %16 in 0 : vector<17x16x128xbf16>, vector<1x16x128xbf16> -> vector<18x16x128xbf16>
    %18 = vector.broadcast %13 : bf16 to vector<18x1x128xbf16>
    %19 = tpu.concatenate %18, %17 in 1 : vector<18x1x128xbf16>, vector<18x16x128xbf16> -> vector<18x17x128xbf16>
    %20 = vector.broadcast %13 : bf16 to vector<18x1x128xbf16>
    %21 = tpu.concatenate %19, %20 in 1 : vector<18x17x128xbf16>, vector<18x1x128xbf16> -> vector<18x18x128xbf16>
    %22 = vector.extract_strided_slice %21 {offsets = [0, 0, 0], sizes = [16, 16, 128], strides = [1, 1, 1]} : vector<18x18x128xbf16> to vector<16x16x128xbf16>
    %23 = vector.shape_cast %22 : vector<16x16x128xbf16> to vector<256x128xbf16>
    %24 = vector.extract_strided_slice %21 {offsets = [0, 1, 0], sizes = [16, 16, 128], strides = [1, 1, 1]} : vector<18x18x128xbf16> to vector<16x16x128xbf16>
    %25 = vector.shape_cast %24 : vector<16x16x128xbf16> to vector<256x128xbf16>
    %26 = vector.extract_strided_slice %21 {offsets = [0, 2, 0], sizes = [16, 16, 128], strides = [1, 1, 1]} : vector<18x18x128xbf16> to vector<16x16x128xbf16>
    %27 = vector.shape_cast %26 : vector<16x16x128xbf16> to vector<256x128xbf16>
    %28 = vector.extract_strided_slice %21 {offsets = [1, 0, 0], sizes = [16, 16, 128], strides = [1, 1, 1]} : vector<18x18x128xbf16> to vector<16x16x128xbf16>
    %29 = vector.shape_cast %28 : vector<16x16x128xbf16> to vector<256x128xbf16>
    %30 = vector.extract_strided_slice %21 {offsets = [1, 1, 0], sizes = [16, 16, 128], strides = [1, 1, 1]} : vector<18x18x128xbf16> to vector<16x16x128xbf16>
    %31 = vector.shape_cast %30 : vector<16x16x128xbf16> to vector<256x128xbf16>
    %32 = vector.extract_strided_slice %21 {offsets = [1, 2, 0], sizes = [16, 16, 128], strides = [1, 1, 1]} : vector<18x18x128xbf16> to vector<16x16x128xbf16>
    %33 = vector.shape_cast %32 : vector<16x16x128xbf16> to vector<256x128xbf16>
    %34 = vector.extract_strided_slice %21 {offsets = [2, 0, 0], sizes = [16, 16, 128], strides = [1, 1, 1]} : vector<18x18x128xbf16> to vector<16x16x128xbf16>
    %35 = vector.shape_cast %34 : vector<16x16x128xbf16> to vector<256x128xbf16>
    %36 = vector.extract_strided_slice %21 {offsets = [2, 1, 0], sizes = [16, 16, 128], strides = [1, 1, 1]} : vector<18x18x128xbf16> to vector<16x16x128xbf16>
    %37 = vector.shape_cast %36 : vector<16x16x128xbf16> to vector<256x128xbf16>
    %38 = vector.extract_strided_slice %21 {offsets = [2, 2, 0], sizes = [16, 16, 128], strides = [1, 1, 1]} : vector<18x18x128xbf16> to vector<16x16x128xbf16>
    %39 = vector.shape_cast %38 : vector<16x16x128xbf16> to vector<256x128xbf16>
    %40 = tpu.concatenate %23, %25, %27, %29, %31, %33, %35, %37, %39 in 1 : vector<256x128xbf16>, vector<256x128xbf16>, vector<256x128xbf16>, vector<256x128xbf16>, vector<256x128xbf16>, vector<256x128xbf16>, vector<256x128xbf16>, vector<256x128xbf16>, vector<256x128xbf16> -> vector<256x1152xbf16>
    %c0_7 = arith.constant 0 : index
    %c0_8 = arith.constant 0 : index
    %41 = vector.load %arg4[%c0_7, %c0_8] : memref<1152x128xbf16, #tpu.memory_space<vmem>>, vector<1152x128xbf16>
    %cst_9 = arith.constant dense<0.000000e+00> : vector<256x128xf32>
    %42 = tpu.matmul %40, %41, %cst_9 {dimension_numbers = #tpu.dot_dimension_numbers<[1], [0], [0], [1], [0, 0, 1, 1], [], []>} : vector<256x1152xbf16>, vector<1152x128xbf16>, vector<256x128xf32> -> vector<256x128xf32>
    %43 = vector.shape_cast %42 : vector<256x128xf32> to vector<1x16x16x128xf32>
    %c0_10 = arith.constant 0 : index
    %c0_11 = arith.constant 0 : index
    %c0_12 = arith.constant 0 : index
    %c0_13 = arith.constant 0 : index
    %44 = vector.load %arg5[%c0_10, %c0_11, %c0_12, %c0_13] : memref<1x16x16x128xf32, #tpu.memory_space<vmem>>, vector<1x16x16x128xf32>
    tpu.vector_store %arg5[%c0_10, %c0_11, %c0_12, %c0_13], %43 {strides = array<i32>} : memref<1x16x16x128xf32, #tpu.memory_space<vmem>>, vector<1x16x16x128xf32>,
    %cst_14 = arith.constant dense<0.000000e+00> : vector<128xf32>
    %45 = vector.multi_reduction <add>, %42, %cst_14 [0] : vector<256x128xf32> to vector<128xf32>
    %46 = vector.shape_cast %45 : vector<128xf32> to vector<1x128xf32>
    %47 = arith.mulf %42, %42 : vector<256x128xf32>
    %cst_15 = arith.constant dense<0.000000e+00> : vector<128xf32>
    %48 = vector.multi_reduction <add>, %47, %cst_15 [0] : vector<256x128xf32> to vector<128xf32>
    %49 = vector.shape_cast %48 : vector<128xf32> to vector<1x128xf32>
    %50 = tpu.concatenate %46, %49 in 0 : vector<1x128xf32>, vector<1x128xf32> -> vector<2x128xf32>
    %51 = vector.shape_cast %50 : vector<2x128xf32> to vector<1x2x128xf32>
    %c0_16 = arith.constant 0 : index
    %c0_17 = arith.constant 0 : index
    %c0_18 = arith.constant 0 : index
    %52 = vector.load %arg6[%c0_16, %c0_17, %c0_18] : memref<1x2x128xf32, #tpu.memory_space<vmem>>, vector<1x2x128xf32>
    tpu.vector_store %arg6[%c0_16, %c0_17, %c0_18], %51 {strides = array<i32>} : memref<1x2x128xf32, #tpu.memory_space<vmem>>, vector<1x2x128xf32>,
    return
  }
  func.func @transform_0(%arg0: i32) -> (i32, i32, i32, i32) {
    %c0_i32 = arith.constant 0 : i32
    %c0_i32_0 = arith.constant 0 : i32
    %c0_i32_1 = arith.constant 0 : i32
    %c0_i32_2 = arith.constant 0 : i32
    return %arg0, %c0_i32, %c0_i32_0, %c0_i32_1 : i32, i32, i32, i32
  }
  func.func @transform_1(%arg0: i32) -> (i32, i32) {
    %c0_i32 = arith.constant 0 : i32
    %c0_i32_0 = arith.constant 0 : i32
    %c0_i32_1 = arith.constant 0 : i32
    return %c0_i32, %c0_i32_0 : i32, i32
  }
  func.func @transform_2(%arg0: i32) -> (i32, i32) {
    %c0_i32 = arith.constant 0 : i32
    %c0_i32_0 = arith.constant 0 : i32
    %c0_i32_1 = arith.constant 0 : i32
    return %c0_i32, %c0_i32_0 : i32, i32
  }
  func.func @transform_3(%arg0: i32) -> (i32, i32) {
    %c0_i32 = arith.constant 0 : i32
    %c0_i32_0 = arith.constant 0 : i32
    %c0_i32_1 = arith.constant 0 : i32
    return %c0_i32, %c0_i32_0 : i32, i32
  }
  func.func @transform_4(%arg0: i32) -> (i32, i32, i32, i32) {
    %c0_i32 = arith.constant 0 : i32
    %c0_i32_0 = arith.constant 0 : i32
    %c0_i32_1 = arith.constant 0 : i32
    %c0_i32_2 = arith.constant 0 : i32
    return %arg0, %c0_i32, %c0_i32_0, %c0_i32_1 : i32, i32, i32, i32
  }
  func.func @transform_5(%arg0: i32) -> (i32, i32, i32) {
    %c0_i32 = arith.constant 0 : i32
    %c0_i32_0 = arith.constant 0 : i32
    %c0_i32_1 = arith.constant 0 : i32
    return %arg0, %c0_i32, %c0_i32_0 : i32, i32, i32
  }
}

module attributes {stable_mosaic.version = 11 : i64} {
  func.func @_stage3_kernel(%arg0: i32, %arg1: memref<256x128xf32, #tpu.memory_space<vmem>>, %arg2: memref<1x128xf32, #tpu.memory_space<vmem>>, %arg3: memref<1x128xf32, #tpu.memory_space<vmem>>, %arg4: memref<128x128xbf16, #tpu.memory_space<vmem>>, %arg5: memref<256x128xf32, #tpu.memory_space<vmem>>, %arg6: memref<256x128xf32, #tpu.memory_space<vmem>>) attributes {dimension_semantics = [#tpu.dimension_semantics<parallel>], iteration_bounds = array<i64: 2>, scalar_prefetch = 0 : i64, scratch_operands = 0 : i64, tpu.core_type = #tpu.core_type<tc>, window_params = [{transform_indices = @transform_0, window_bounds = array<i64: 256, 128>}, {pipeline_mode = #tpu.pipeline_mode<synchronous>, transform_indices = @transform_1, window_bounds = array<i64: 1, 128>}, {pipeline_mode = #tpu.pipeline_mode<synchronous>, transform_indices = @transform_2, window_bounds = array<i64: 1, 128>}, {pipeline_mode = #tpu.pipeline_mode<synchronous>, transform_indices = @transform_3, window_bounds = array<i64: 128, 128>}, {transform_indices = @transform_4, window_bounds = array<i64: 256, 128>}, {transform_indices = @transform_5, window_bounds = array<i64: 256, 128>}]} {
    %c0 = arith.constant 0 : index
    %c0_0 = arith.constant 0 : index
    %0 = vector.load %arg1[%c0, %c0_0] : memref<256x128xf32, #tpu.memory_space<vmem>>, vector<256x128xf32>
    %c0_1 = arith.constant 0 : index
    %c0_2 = arith.constant 0 : index
    %1 = vector.load %arg2[%c0_1, %c0_2] : memref<1x128xf32, #tpu.memory_space<vmem>>, vector<1x128xf32>
    %2 = vector.broadcast %1 : vector<1x128xf32> to vector<256x128xf32>
    %3 = arith.mulf %0, %2 : vector<256x128xf32>
    %c0_3 = arith.constant 0 : index
    %c0_4 = arith.constant 0 : index
    %4 = vector.load %arg3[%c0_3, %c0_4] : memref<1x128xf32, #tpu.memory_space<vmem>>, vector<1x128xf32>
    %5 = vector.broadcast %4 : vector<1x128xf32> to vector<256x128xf32>
    %6 = arith.addf %3, %5 : vector<256x128xf32>
    %cst = arith.constant 0.000000e+00 : f32
    %7 = vector.broadcast %cst : f32 to vector<256x128xf32>
    %8 = arith.maximumf %6, %7 : vector<256x128xf32>
    %9 = arith.truncf %8 : vector<256x128xf32> to vector<256x128xbf16>
    %c0_5 = arith.constant 0 : index
    %c0_6 = arith.constant 0 : index
    %10 = vector.load %arg4[%c0_5, %c0_6] : memref<128x128xbf16, #tpu.memory_space<vmem>>, vector<128x128xbf16>
    %cst_7 = arith.constant dense<0.000000e+00> : vector<256x128xf32>
    %11 = tpu.matmul %9, %10, %cst_7 {dimension_numbers = #tpu.dot_dimension_numbers<[1], [0], [0], [1], [0, 0, 1, 1], [], []>} : vector<256x128xbf16>, vector<128x128xbf16>, vector<256x128xf32> -> vector<256x128xf32>
    %c0_8 = arith.constant 0 : index
    %c0_9 = arith.constant 0 : index
    %12 = vector.load %arg5[%c0_8, %c0_9] : memref<256x128xf32, #tpu.memory_space<vmem>>, vector<256x128xf32>
    %13 = arith.addf %11, %12 : vector<256x128xf32>
    %c0_10 = arith.constant 0 : index
    %c0_11 = arith.constant 0 : index
    %14 = vector.load %arg6[%c0_10, %c0_11] : memref<256x128xf32, #tpu.memory_space<vmem>>, vector<256x128xf32>
    tpu.vector_store %arg6[%c0_10, %c0_11], %13 {strides = array<i32>} : memref<256x128xf32, #tpu.memory_space<vmem>>, vector<256x128xf32>,
    return
  }
  func.func @transform_0(%arg0: i32) -> (i32, i32) {
    %c0_i32 = arith.constant 0 : i32
    %c0_i32_0 = arith.constant 0 : i32
    return %arg0, %c0_i32 : i32, i32
  }
  func.func @transform_1(%arg0: i32) -> (i32, i32) {
    %c0_i32 = arith.constant 0 : i32
    %c0_i32_0 = arith.constant 0 : i32
    %c0_i32_1 = arith.constant 0 : i32
    return %c0_i32, %c0_i32_0 : i32, i32
  }
  func.func @transform_2(%arg0: i32) -> (i32, i32) {
    %c0_i32 = arith.constant 0 : i32
    %c0_i32_0 = arith.constant 0 : i32
    %c0_i32_1 = arith.constant 0 : i32
    return %c0_i32, %c0_i32_0 : i32, i32
  }
  func.func @transform_3(%arg0: i32) -> (i32, i32) {
    %c0_i32 = arith.constant 0 : i32
    %c0_i32_0 = arith.constant 0 : i32
    %c0_i32_1 = arith.constant 0 : i32
    return %c0_i32, %c0_i32_0 : i32, i32
  }
  func.func @transform_4(%arg0: i32) -> (i32, i32) {
    %c0_i32 = arith.constant 0 : i32
    %c0_i32_0 = arith.constant 0 : i32
    return %arg0, %c0_i32 : i32, i32
  }
  func.func @transform_5(%arg0: i32) -> (i32, i32) {
    %c0_i32 = arith.constant 0 : i32
    %c0_i32_0 = arith.constant 0 : i32
    return %arg0, %c0_i32 : i32, i32
  }
}

</mosaic_0001>

<llo_original>
// kernel: residual_block.5
$region0: #{residual_block.5}
  #allocation0 [shape = 'u32[]', space=smem, size = 0x4, offset = 0x4, fixed_abs, tag = 'smem constant byte address 0x4 - core index']
  #allocation1 [shape = 'u32[144,128]{1,0:T(1,128)}', space=vmem, size = 0x12000, scoped, tag = 'internal scratch']
  %s0 = inlined_call_operand.vmem [shape: f32[512,128], index: 0, kind: input, shape index: {}]
  %s1 = inlined_call_operand.vmem [shape: f32[1,128], index: 1, kind: input, shape index: {}]
  %s2 = inlined_call_operand.vmem [shape: f32[1,128], index: 2, kind: input, shape index: {}]
  %s3 = inlined_call_operand.vmem [shape: bf16[128,128], index: 3, kind: input, shape index: {}]
  %s4 = inlined_call_operand.vmem [shape: f32[512,128], index: 4, kind: input, shape index: {}]
  %s5 = inlined_call_operand.vmem [shape: f32[512,128], index: 5, kind: output, shape index: {}]
  %s6 = sld [smem:[#allocation0]]
  $region53: #{residual_block.5} parent=0
    _
  %s8 = ssub.s32 1, %s6
  %s9 = scalar_select 0, %s8, %s6
  loop: start=0, step=1, limit=4
  $region2: #{residual_block.5} parent=0 // loop_pre_header
    _
  $region3: #{residual_block.5} parent=0 // loop_header
    %s11 = sphi 0, %s15
    %p12 = scmp.ge.s32.totalorder %s11, 4
    %s21 = sphi 0, %s23
    %s24 = sphi 0, %s21
    %s25 = sphi 0, %s24
    %s41 = sphi 0, %s25
    %s45 = sphi 0, %s45
    %s47 = sphi 0, %s45
    %s48 = sphi 0, %s47
    %s62 = sphi 0, %s48
    %s66 = sphi 0, %s66
    %s68 = sphi 0, %s66
    %s69 = sphi 0, %s68
    %s83 = sphi 0, %s69
    %s87 = sphi 0, %s87
    %s89 = sphi 0, %s87
    %s90 = sphi 0, %s89
    %s104 = sphi 0, %s90
    %s110 = sphi 0, %s112
    %s113 = sphi 0, %s110
    %s114 = sphi 0, %s113
    %s130 = sphi 0, %s114
    %s136 = sphi 0, %s138
    %s139 = sphi 0, %s136
    %s140 = sphi 0, %s139
    %s156 = sphi 0, %s140
  $region4: #{residual_block.5} parent=0 // loop_header_branch
    %14 = sbr.rel (%p12) target = $region8
  $region5: #{residual_block.5} parent=0 // loop_body
    %s16 = ssub.s32 %s11, 1
    %s17 = ssub.s32 %s11, 2
    %s18 = sadd.s32 %s11, 1
    %s19 = ssub.s32 %s11, %s18
    %p20 = scmp.eq.s32.totalorder %s19, 0
    %s22 = sadd.s32 %s21, 1
    %s23 = scalar_select %p20, %s21, %s22
    %p26 = pneg %p20
    %p27 = scmp.eq.s32.totalorder %s11, 1
    %p28 = por %p26, %p27
    %p29 = scmp.ne.s32.totalorder %s21, %s24
    %p30 = scmp.eq.s32.totalorder %s11, 0
    %p31 = por %p29, %p30
    %p32 = scmp.ne.s32.totalorder %s21, %s24
    %p33 = scmp.eq.s32.totalorder %s16, 1
    %p34 = por %p32, %p33
    %p35 = scmp.ne.s32.totalorder %s24, %s25
    %p36 = scmp.eq.s32.totalorder %s16, 0
    %p37 = por %p35, %p36
    %p38 = scmp.ne.s32.totalorder %s24, %s25
    %p39 = scmp.eq.s32.totalorder %s17, 1
    %p40 = por %p38, %p39
    %p42 = scmp.ne.s32.totalorder %s25, %s41
    %p43 = scmp.eq.s32.totalorder %s17, 0
    %p44 = por %p42, %p43
    %s46 = sadd.s32 %s45, 1
    %p49 = scmp.eq.s32.totalorder %s11, 1
    %p50 = scmp.ne.s32.totalorder %s45, %s47
    %p51 = scmp.eq.s32.totalorder %s11, 0
    %p52 = por %p50, %p51
    %p53 = scmp.ne.s32.totalorder %s45, %s47
    %p54 = scmp.eq.s32.totalorder %s16, 1
    %p55 = por %p53, %p54
    %p56 = scmp.ne.s32.totalorder %s47, %s48
    %p57 = scmp.eq.s32.totalorder %s16, 0
    %p58 = por %p56, %p57
    %p59 = scmp.ne.s32.totalorder %s47, %s48
    %p60 = scmp.eq.s32.totalorder %s17, 1
    %p61 = por %p59, %p60
    %p63 = scmp.ne.s32.totalorder %s48, %s62
    %p64 = scmp.eq.s32.totalorder %s17, 0
    %p65 = por %p63, %p64
    %s67 = sadd.s32 %s66, 1
    %p70 = scmp.eq.s32.totalorder %s11, 1
    %p71 = scmp.ne.s32.totalorder %s66, %s68
    %p72 = scmp.eq.s32.totalorder %s11, 0
    %p73 = por %p71, %p72
    %p74 = scmp.ne.s32.totalorder %s66, %s68
    %p75 = scmp.eq.s32.totalorder %s16, 1
    %p76 = por %p74, %p75
    %p77 = scmp.ne.s32.totalorder %s68, %s69
    %p78 = scmp.eq.s32.totalorder %s16, 0
    %p79 = por %p77, %p78
    %p80 = scmp.ne.s32.totalorder %s68, %s69
    %p81 = scmp.eq.s32.totalorder %s17, 1
    %p82 = por %p80, %p81
    %p84 = scmp.ne.s32.totalorder %s69, %s83
    %p85 = scmp.eq.s32.totalorder %s17, 0
    %p86 = por %p84, %p85
    %s88 = sadd.s32 %s87, 1
    %p91 = scmp.eq.s32.totalorder %s11, 1
    %p92 = scmp.ne.s32.totalorder %s87, %s89
    %p93 = scmp.eq.s32.totalorder %s11, 0
    %p94 = por %p92, %p93
    %p95 = scmp.ne.s32.totalorder %s87, %s89
    %p96 = scmp.eq.s32.totalorder %s16, 1
    %p97 = por %p95, %p96
    %p98 = scmp.ne.s32.totalorder %s89, %s90
    %p99 = scmp.eq.s32.totalorder %s16, 0
    %p100 = por %p98, %p99
    %p101 = scmp.ne.s32.totalorder %s89, %s90
    %p102 = scmp.eq.s32.totalorder %s17, 1
    %p103 = por %p101, %p102
    %p105 = scmp.ne.s32.totalorder %s90, %s104
    %p106 = scmp.eq.s32.totalorder %s17, 0
    %p107 = por %p105, %p106
    %s108 = ssub.s32 %s11, %s18
    %p109 = scmp.eq.s32.totalorder %s108, 0
    %s111 = sadd.s32 %s110, 1
    %s112 = scalar_select %p109, %s110, %s111
    %p115 = pneg %p109
    %p116 = scmp.eq.s32.totalorder %s11, 1
    %p117 = por %p115, %p116
    %p118 = scmp.ne.s32.totalorder %s110, %s113
    %p119 = scmp.eq.s32.totalorder %s11, 0
    %p120 = por %p118, %p119
    %p121 = scmp.ne.s32.totalorder %s110, %s113
    %p122 = scmp.eq.s32.totalorder %s16, 1
    %p123 = por %p121, %p122
    %p124 = scmp.ne.s32.totalorder %s113, %s114
    %p125 = scmp.eq.s32.totalorder %s16, 0
    %p126 = por %p124, %p125
    %p127 = scmp.ne.s32.totalorder %s113, %s114
    %p128 = scmp.eq.s32.totalorder %s17, 1
    %p129 = por %p127, %p128
    %p131 = scmp.ne.s32.totalorder %s114, %s130
    %p132 = scmp.eq.s32.totalorder %s17, 0
    %p133 = por %p131, %p132
    %s134 = ssub.s32 %s11, %s18
    %p135 = scmp.eq.s32.totalorder %s134, 0
    %s137 = sadd.s32 %s136, 1
    %s138 = scalar_select %p135, %s136, %s137
    %p141 = pneg %p135
    %p142 = scmp.eq.s32.totalorder %s11, 1
    %p143 = por %p141, %p142
    %p144 = scmp.ne.s32.totalorder %s136, %s139
    %p145 = scmp.eq.s32.totalorder %s11, 0
    %p146 = por %p144, %p145
    %p147 = scmp.ne.s32.totalorder %s136, %s139
    %p148 = scmp.eq.s32.totalorder %s16, 1
    %p149 = por %p147, %p148
    %p150 = scmp.ne.s32.totalorder %s139, %s140
    %p151 = scmp.eq.s32.totalorder %s16, 0
    %p152 = por %p150, %p151
    %p153 = scmp.ne.s32.totalorder %s139, %s140
    %p154 = scmp.eq.s32.totalorder %s17, 1
    %p155 = por %p153, %p154
    %p157 = scmp.ne.s32.totalorder %s140, %s156
    %p158 = scmp.eq.s32.totalorder %s17, 0
    %p159 = por %p157, %p158
    %p160 = scmp.le.s32.totalorder 1, %s11
    %p161 = scmp.lt.s32.totalorder %s11, 3
    %p162 = pnand %p160, %p161
    %p163 = pneg %p162
    // Predicated region
    $region9: #{residual_block.5} parent=5 // pred_check
      _
    $region10: #{residual_block.5} parent=5 // pred_check_branch
      %165 = sbr.rel (%p162) target = $region12
    $region11: #{residual_block.5} parent=5 // pred_region
      %s166 = ssub.s32 %s11, 1
      // Predicated region
      $region13: #{residual_block.5} parent=11 // pred_check
        %p167 = pneg %p58
      $region14: #{residual_block.5} parent=11 // pred_check_branch
        %169 = sbr.rel (%p167) target = $region16
      $region15: #{residual_block.5} parent=11 // pred_region
        _
      $region16: #{residual_block.5} parent=11 // pred_fallthru
        _
      // Predicated region
      $region17: #{residual_block.5} parent=11 // pred_check
        %p170 = pneg %p79
      $region18: #{residual_block.5} parent=11 // pred_check_branch
        %172 = sbr.rel (%p170) target = $region20
      $region19: #{residual_block.5} parent=11 // pred_region
        _
      $region20: #{residual_block.5} parent=11 // pred_fallthru
        _
      // Predicated region
      $region21: #{residual_block.5} parent=11 // pred_check
        %p173 = pneg %p100
      $region22: #{residual_block.5} parent=11 // pred_check_branch
        %175 = sbr.rel (%p173) target = $region24
      $region23: #{residual_block.5} parent=11 // pred_region
        _
      $region24: #{residual_block.5} parent=11 // pred_fallthru
        _
    $region12: #{residual_block.5} parent=5 // pred_fallthru
      _
    %p176 = scmp.lt.s32.totalorder %s11, 2
    // Predicated region
    $region25: #{residual_block.5} parent=5 // pred_check
      %p177 = pneg %p176
    $region26: #{residual_block.5} parent=5 // pred_check_branch
      %179 = sbr.rel (%p177) target = $region28
    $region27: #{residual_block.5} parent=5 // pred_region
      // Predicated region
      $region29: #{residual_block.5} parent=27 // pred_check
        %p180 = pneg %p31
      $region30: #{residual_block.5} parent=27 // pred_check_branch
        %182 = sbr.rel (%p180) target = $region32
      $region31: #{residual_block.5} parent=27 // pred_region
        %s183 = smul.u32 32, %s11
        %p184 = scmp.lt.s32.totalorder %s183, 63
        %s185 = scalar_select %p184, %s183, 63
        %s186 = smul.addr %s185, 8
        %s187 = scalar_lea.vmem %s0, %s186
        %s188 = smul.u32 32, %s11
      $region32: #{residual_block.5} parent=27 // pred_fallthru
        _
      // Predicated region
      $region33: #{residual_block.5} parent=27 // pred_check
        %p189 = pneg %p120
      $region34: #{residual_block.5} parent=27 // pred_check_branch
        %191 = sbr.rel (%p189) target = $region36
      $region35: #{residual_block.5} parent=27 // pred_region
        %s192 = smul.u32 32, %s11
        %p193 = scmp.lt.s32.totalorder %s192, 63
        %s194 = scalar_select %p193, %s192, 63
        %s195 = smul.addr %s194, 8
        %s196 = scalar_lea.vmem %s4, %s195
        %s197 = smul.u32 32, %s11
      $region36: #{residual_block.5} parent=27 // pred_fallthru
        _
    $region28: #{residual_block.5} parent=5 // pred_fallthru
      _
    %p198 = scmp.le.s32.totalorder 1, %s11
    %p199 = scmp.lt.s32.totalorder %s11, 3
    %p200 = pnand %p198, %p199
    %p201 = pneg %p200
    // Predicated region
    $region37: #{residual_block.5} parent=5 // pred_check
      _
    $region38: #{residual_block.5} parent=5 // pred_check_branch
      %203 = sbr.rel (%p200) target = $region40
    $region39: #{residual_block.5} parent=5 // pred_region
      %s204 = ssub.s32 %s11, 1
      %s205 = smul.u32 32, %s16
      %p206 = scmp.lt.s32.totalorder %s205, 63
      %s207 = scalar_select %p206, %s205, 63
      %s208 = smul.addr %s207, 8
      %s209 = scalar_lea.vmem %s0, %s208
      %p210 = pneg %p37
      %p211 = pneg %p34
      %p212 = pneg %p58
      %p213 = pneg %p55
      %p214 = pneg %p79
      %p215 = pneg %p76
      %p216 = pneg %p100
      %p217 = pneg %p97
      %s218 = smul.u32 32, %s16
      %p219 = scmp.lt.s32.totalorder %s218, 63
      %s220 = scalar_select %p219, %s218, 63
      %s221 = smul.addr %s220, 8
      %s222 = scalar_lea.vmem %s4, %s221
      %p223 = pneg %p126
      %p224 = pneg %p123
      %p225 = pneg %p152
      %p226 = pneg %p149
      %s227 = smul.u32 32, %s16
      %p228 = scmp.lt.s32.totalorder %s227, 63
      %s229 = scalar_select %p228, %s227, 63
      %s230 = smul.addr %s229, 8
      %s231 = scalar_lea.vmem %s5, %s230
      %s232 = smul.u32 32, %s16
      %p233 = scmp.lt.s32.totalorder %s232, 63
      %s234 = scalar_select %p233, %s232, 63
      %s235 = smul.addr %s234, 8
      %s236 = scalar_lea.vmem %s0, %s235
      %s237 = smul.u32 32, %s16
      %s238 = smul.u32 32, %s16
      %p239 = scmp.lt.s32.totalorder %s238, 63
      %s240 = scalar_select %p239, %s238, 63
      %s241 = smul.addr %s240, 8
      %s242 = scalar_lea.vmem %s4, %s241
      %s243 = smul.u32 32, %s16
      %s244 = smul.u32 32, %s16
      %p245 = scmp.lt.s32.totalorder %s244, 63
      %s246 = scalar_select %p245, %s244, 63
      %s247 = smul.addr %s246, 8
      %s248 = scalar_lea.vmem %s5, %s247
      %s249 = smul.u32 32, %s16
      %v251 = vld [vmem:[%s236] sm:$0xff]
      %v252 = vld [vmem:[%s236 + $0x8] sm:$0xff]
      %v253 = vld [vmem:[%s236 + $0x10] sm:$0xff]
      %v254 = vld [vmem:[%s236 + $0x18] sm:$0xff]
      %v255 = vld [vmem:[%s236 + $0x20] sm:$0xff]
      %v256 = vld [vmem:[%s236 + $0x28] sm:$0xff]
      %v257 = vld [vmem:[%s236 + $0x30] sm:$0xff]
      %v258 = vld [vmem:[%s236 + $0x38] sm:$0xff]
      %v259 = vld [vmem:[%s236 + $0x40] sm:$0xff]
      %v260 = vld [vmem:[%s236 + $0x48] sm:$0xff]
      %v261 = vld [vmem:[%s236 + $0x50] sm:$0xff]
      %v262 = vld [vmem:[%s236 + $0x58] sm:$0xff]
      %v263 = vld [vmem:[%s236 + $0x60] sm:$0xff]
      %v264 = vld [vmem:[%s236 + $0x68] sm:$0xff]
      %v265 = vld [vmem:[%s236 + $0x70] sm:$0xff]
      %v266 = vld [vmem:[%s236 + $0x78] sm:$0xff]
      %v267 = vld [vmem:[%s236 + $0x80] sm:$0xff]
      %v268 = vld [vmem:[%s236 + $0x88] sm:$0xff]
      %v269 = vld [vmem:[%s236 + $0x90] sm:$0xff]
      %v270 = vld [vmem:[%s236 + $0x98] sm:$0xff]
      %v271 = vld [vmem:[%s236 + $0xa0] sm:$0xff]
      %v272 = vld [vmem:[%s236 + $0xa8] sm:$0xff]
      %v273 = vld [vmem:[%s236 + $0xb0] sm:$0xff]
      %v274 = vld [vmem:[%s236 + $0xb8] sm:$0xff]
      %v275 = vld [vmem:[%s236 + $0xc0] sm:$0xff]
      %v276 = vld [vmem:[%s236 + $0xc8] sm:$0xff]
      %v277 = vld [vmem:[%s236 + $0xd0] sm:$0xff]
      %v278 = vld [vmem:[%s236 + $0xd8] sm:$0xff]
      %v279 = vld [vmem:[%s236 + $0xe0] sm:$0xff]
      %v280 = vld [vmem:[%s236 + $0xe8] sm:$0xff]
      %v281 = vld [vmem:[%s236 + $0xf0] sm:$0xff]
      %v282 = vld [vmem:[%s236 + $0xf8] sm:$0xff]
      %v283 = vld [vmem:[%s1] sm:$0x1]
      %v285 = vlaneseq
      %v286 = vshrl.u32 %v285, 7
      %v287 = vsub.s32 0, %v286
      %v288 = vrot.slane %v283, %v287
      %v290 = vmul.f32 %v251, %v288
      %v291 = vmul.f32 %v252, %v288
      %v292 = vmul.f32 %v253, %v288
      %v293 = vmul.f32 %v254, %v288
      %v294 = vmul.f32 %v255, %v288
      %v295 = vmul.f32 %v256, %v288
      %v296 = vmul.f32 %v257, %v288
      %v297 = vmul.f32 %v258, %v288
      %v298 = vmul.f32 %v259, %v288
      %v299 = vmul.f32 %v260, %v288
      %v300 = vmul.f32 %v261, %v288
      %v301 = vmul.f32 %v262, %v288
      %v302 = vmul.f32 %v263, %v288
      %v303 = vmul.f32 %v264, %v288
      %v304 = vmul.f32 %v265, %v288
      %v305 = vmul.f32 %v266, %v288
      %v306 = vmul.f32 %v267, %v288
      %v307 = vmul.f32 %v268, %v288
      %v308 = vmul.f32 %v269, %v288
      %v309 = vmul.f32 %v270, %v288
      %v310 = vmul.f32 %v271, %v288
      %v311 = vmul.f32 %v272, %v288
      %v312 = vmul.f32 %v273, %v288
      %v313 = vmul.f32 %v274, %v288
      %v314 = vmul.f32 %v275, %v288
      %v315 = vmul.f32 %v276, %v288
      %v316 = vmul.f32 %v277, %v288
      %v317 = vmul.f32 %v278, %v288
      %v318 = vmul.f32 %v279, %v288
      %v319 = vmul.f32 %v280, %v288
      %v320 = vmul.f32 %v281, %v288
      %v321 = vmul.f32 %v282, %v288
      %v322 = vld [vmem:[%s2] sm:$0x1]
      %v324 = vlaneseq
      %v325 = vshrl.u32 %v324, 7
      %v326 = vsub.s32 0, %v325
      %v327 = vrot.slane %v322, %v326
      %v329 = vadd.f32 %v290, %v327
      %v330 = vadd.f32 %v291, %v327
      %v331 = vadd.f32 %v292, %v327
      %v332 = vadd.f32 %v293, %v327
      %v333 = vadd.f32 %v294, %v327
      %v334 = vadd.f32 %v295, %v327
      %v335 = vadd.f32 %v296, %v327
      %v336 = vadd.f32 %v297, %v327
      %v337 = vadd.f32 %v298, %v327
      %v338 = vadd.f32 %v299, %v327
      %v339 = vadd.f32 %v300, %v327
      %v340 = vadd.f32 %v301, %v327
      %v341 = vadd.f32 %v302, %v327
      %v342 = vadd.f32 %v303, %v327
      %v343 = vadd.f32 %v304, %v327
      %v344 = vadd.f32 %v305, %v327
      %v345 = vadd.f32 %v306, %v327
      %v346 = vadd.f32 %v307, %v327
      %v347 = vadd.f32 %v308, %v327
      %v348 = vadd.f32 %v309, %v327
      %v349 = vadd.f32 %v310, %v327
      %v350 = vadd.f32 %v311, %v327
      %v351 = vadd.f32 %v312, %v327
      %v352 = vadd.f32 %v313, %v327
      %v353 = vadd.f32 %v314, %v327
      %v354 = vadd.f32 %v315, %v327
      %v355 = vadd.f32 %v316, %v327
      %v356 = vadd.f32 %v317, %v327
      %v357 = vadd.f32 %v318, %v327
      %v358 = vadd.f32 %v319, %v327
      %v359 = vadd.f32 %v320, %v327
      %v360 = vadd.f32 %v321, %v327
      %v361 = vmax.f32 %v329, 0.0
      %v362 = vmax.f32 %v330, 0.0
      %v363 = vmax.f32 %v331, 0.0
      %v364 = vmax.f32 %v332, 0.0
      %v365 = vmax.f32 %v333, 0.0
      %v366 = vmax.f32 %v334, 0.0
      %v367 = vmax.f32 %v335, 0.0
      %v368 = vmax.f32 %v336, 0.0
      %v369 = vmax.f32 %v337, 0.0
      %v370 = vmax.f32 %v338, 0.0
      %v371 = vmax.f32 %v339, 0.0
      %v372 = vmax.f32 %v340, 0.0
      %v373 = vmax.f32 %v341, 0.0
      %v374 = vmax.f32 %v342, 0.0
      %v375 = vmax.f32 %v343, 0.0
      %v376 = vmax.f32 %v344, 0.0
      %v377 = vmax.f32 %v345, 0.0
      %v378 = vmax.f32 %v346, 0.0
      %v379 = vmax.f32 %v347, 0.0
      %v380 = vmax.f32 %v348, 0.0
      %v381 = vmax.f32 %v349, 0.0
      %v382 = vmax.f32 %v350, 0.0
      %v383 = vmax.f32 %v351, 0.0
      %v384 = vmax.f32 %v352, 0.0
      %v385 = vmax.f32 %v353, 0.0
      %v386 = vmax.f32 %v354, 0.0
      %v387 = vmax.f32 %v355, 0.0
      %v388 = vmax.f32 %v356, 0.0
      %v389 = vmax.f32 %v357, 0.0
      %v390 = vmax.f32 %v358, 0.0
      %v391 = vmax.f32 %v359, 0.0
      %v392 = vmax.f32 %v360, 0.0
      %v393 = vpack.c.bf16 %v362, %v361
      %v394 = vpack.c.bf16 %v364, %v363
      %v395 = vpack.c.bf16 %v366, %v365
      %v396 = vpack.c.bf16 %v368, %v367
      %v397 = vpack.c.bf16 %v370, %v369
      %v398 = vpack.c.bf16 %v372, %v371
      %v399 = vpack.c.bf16 %v374, %v373
      %v400 = vpack.c.bf16 %v376, %v375
      %v401 = vpack.c.bf16 %v378, %v377
      %v402 = vpack.c.bf16 %v380, %v379
      %v403 = vpack.c.bf16 %v382, %v381
      %v404 = vpack.c.bf16 %v384, %v383
      %v405 = vpack.c.bf16 %v386, %v385
      %v406 = vpack.c.bf16 %v388, %v387
      %v407 = vpack.c.bf16 %v390, %v389
      %v408 = vpack.c.bf16 %v392, %v391
      %v409 = vld [vmem:[%s3] sm:$0xf]
      %v410 = vld [vmem:[%s3 + $0x4] sm:$0xf]
      %v411 = vld [vmem:[%s3 + $0x8] sm:$0xf]
      %v412 = vld [vmem:[%s3 + $0xc] sm:$0xf]
      %v413 = vld [vmem:[%s3 + $0x10] sm:$0xf]
      %v414 = vld [vmem:[%s3 + $0x14] sm:$0xf]
      %v415 = vld [vmem:[%s3 + $0x18] sm:$0xf]
      %v416 = vld [vmem:[%s3 + $0x1c] sm:$0xf]
      %v417 = vld [vmem:[%s3 + $0x20] sm:$0xf]
      %v418 = vld [vmem:[%s3 + $0x24] sm:$0xf]
      %v419 = vld [vmem:[%s3 + $0x28] sm:$0xf]
      %v420 = vld [vmem:[%s3 + $0x2c] sm:$0xf]
      %v421 = vld [vmem:[%s3 + $0x30] sm:$0xf]
      %v422 = vld [vmem:[%s3 + $0x34] sm:$0xf]
      %v423 = vld [vmem:[%s3 + $0x38] sm:$0xf]
      %v424 = vld [vmem:[%s3 + $0x3c] sm:$0xf]
      %v425 = vld [vmem:[%s242] sm:$0xff]
      %v426 = vld [vmem:[%s242 + $0x8] sm:$0xff]
      %v427 = vld [vmem:[%s242 + $0x10] sm:$0xff]
      %v428 = vld [vmem:[%s242 + $0x18] sm:$0xff]
      %v429 = vld [vmem:[%s242 + $0x20] sm:$0xff]
      %v430 = vld [vmem:[%s242 + $0x28] sm:$0xff]
      %v431 = vld [vmem:[%s242 + $0x30] sm:$0xff]
      %v432 = vld [vmem:[%s242 + $0x38] sm:$0xff]
      %v433 = vld [vmem:[%s242 + $0x40] sm:$0xff]
      %v434 = vld [vmem:[%s242 + $0x48] sm:$0xff]
      %v435 = vld [vmem:[%s242 + $0x50] sm:$0xff]
      %v436 = vld [vmem:[%s242 + $0x58] sm:$0xff]
      %v437 = vld [vmem:[%s242 + $0x60] sm:$0xff]
      %v438 = vld [vmem:[%s242 + $0x68] sm:$0xff]
      %v439 = vld [vmem:[%s242 + $0x70] sm:$0xff]
      %v440 = vld [vmem:[%s242 + $0x78] sm:$0xff]
      %v441 = vld [vmem:[%s242 + $0x80] sm:$0xff]
      %v442 = vld [vmem:[%s242 + $0x88] sm:$0xff]
      %v443 = vld [vmem:[%s242 + $0x90] sm:$0xff]
      %v444 = vld [vmem:[%s242 + $0x98] sm:$0xff]
      %v445 = vld [vmem:[%s242 + $0xa0] sm:$0xff]
      %v446 = vld [vmem:[%s242 + $0xa8] sm:$0xff]
      %v447 = vld [vmem:[%s242 + $0xb0] sm:$0xff]
      %v448 = vld [vmem:[%s242 + $0xb8] sm:$0xff]
      %v449 = vld [vmem:[%s242 + $0xc0] sm:$0xff]
      %v450 = vld [vmem:[%s242 + $0xc8] sm:$0xff]
      %v451 = vld [vmem:[%s242 + $0xd0] sm:$0xff]
      %v452 = vld [vmem:[%s242 + $0xd8] sm:$0xff]
      %v453 = vld [vmem:[%s242 + $0xe0] sm:$0xff]
      %v454 = vld [vmem:[%s242 + $0xe8] sm:$0xff]
      %v455 = vld [vmem:[%s242 + $0xf0] sm:$0xff]
      %v456 = vld [vmem:[%s242 + $0xf8] sm:$0xff]
      %v473 = vunpack.c.l.b16 %v409
      %v474 = vunpack.c.l.b16 %v410
      %v475 = vunpack.c.l.b16 %v411
      %v476 = vunpack.c.l.b16 %v412
      %v477 = vunpack.c.l.b16 %v413
      %v478 = vunpack.c.l.b16 %v414
      %v479 = vunpack.c.l.b16 %v415
      %v480 = vunpack.c.l.b16 %v416
      %v481 = vunpack.c.l.b16 %v417
      %v482 = vunpack.c.l.b16 %v418
      %v483 = vunpack.c.l.b16 %v419
      %v484 = vunpack.c.l.b16 %v420
      %v485 = vunpack.c.l.b16 %v421
      %v486 = vunpack.c.l.b16 %v422
      %v487 = vunpack.c.l.b16 %v423
      %v488 = vunpack.c.l.b16 %v424
      %v489 = vpack.c.b16 %v474, %v473
      %v490 = vpack.c.b16 %v476, %v475
      %v491 = vpack.c.b16 %v478, %v477
      %v492 = vpack.c.b16 %v480, %v479
      %v493 = vpack.c.b16 %v482, %v481
      %v494 = vpack.c.b16 %v484, %v483
      %v495 = vpack.c.b16 %v486, %v485
      %v496 = vpack.c.b16 %v488, %v487
      %505 = vmatprep.subr.bf16.mxu0 0
      %506 = vmatpush1.bf16.msra.mxu0 %v489
      %507 = vmatprep.subr.bf16.mxu0 0
      %508 = vmatpush1.bf16.msra.mxu0 %v490
      %509 = vmatprep.subr.bf16.mxu0 0
      %510 = vmatpush1.bf16.msra.mxu0 %v491
      %511 = vmatprep.subr.bf16.mxu0 0
      %512 = vmatpush1.bf16.msra.mxu0 %v492
      %513 = vmatprep.subr.bf16.mxu0 0
      %514 = vmatpush1.bf16.msra.mxu0 %v493
      %515 = vmatprep.subr.bf16.mxu0 0
      %516 = vmatpush1.bf16.msra.mxu0 %v494
      %517 = vmatprep.subr.bf16.mxu0 0
      %518 = vmatpush1.bf16.msra.mxu0 %v495
      %519 = vmatprep.subr.bf16.mxu0 0
      %520 = vmatpush1.bf16.msra.mxu0 %v496
      %521 = vmatprep.subr.bf16.mxu0 0
      %522 = vmatpush1.bf16.msra.mxu0 0
      %523 = vmatprep.subr.bf16.mxu0 0
      %524 = vmatpush1.bf16.msra.mxu0 0
      %525 = vmatprep.subr.bf16.mxu0 0
      %526 = vmatpush1.bf16.msra.mxu0 0
      %527 = vmatprep.subr.bf16.mxu0 0
      %528 = vmatpush1.bf16.msra.mxu0 0
      %529 = vmatprep.subr.bf16.mxu0 0
      %530 = vmatpush1.bf16.msra.mxu0 0
      %531 = vmatprep.subr.bf16.mxu0 0
      %532 = vmatpush1.bf16.msra.mxu0 0
      %533 = vmatprep.subr.bf16.mxu0 0
      %534 = vmatpush1.bf16.msra.mxu0 0
      %535 = vmatprep.subr.bf16.mxu0 0
      %536 = vmatpush1.bf16.msra.mxu0 0
      %537 = vmatprep.mubr.bf16.mxu0 0
      %538 = vmatmul.mubr.bf16.gmra.mrb[0].mxu0 %v393
      %v539 = vpop.f32.mrb[0].mxu0
      %v540 = vadd.f32 %v425, %v539
      %v541 = vpop.f32.mrb[0].mxu0
      %v542 = vpop.f32.mrb[0].mxu0
      %v543 = vadd.f32 %v426, %v542
      %v544 = vpop.f32.mrb[0].mxu0
      %545 = vmatprep.mubr.bf16.mxu0 0
      %546 = vmatmul.mubr.bf16.gmra.mrb[0].mxu0 %v394
      %v547 = vpop.f32.mrb[0].mxu0
      %v548 = vadd.f32 %v427, %v547
      %v549 = vpop.f32.mrb[0].mxu0
      %v550 = vpop.f32.mrb[0].mxu0
      %v551 = vadd.f32 %v428, %v550
      %v552 = vpop.f32.mrb[0].mxu0
      %553 = vmatprep.mubr.bf16.mxu0 0
      %554 = vmatmul.mubr.bf16.gmra.mrb[0].mxu0 %v395
      %v555 = vpop.f32.mrb[0].mxu0
      %v556 = vadd.f32 %v429, %v555
      %v557 = vpop.f32.mrb[0].mxu0
      %v558 = vpop.f32.mrb[0].mxu0
      %v559 = vadd.f32 %v430, %v558
      %v560 = vpop.f32.mrb[0].mxu0
      %561 = vmatprep.mubr.bf16.mxu0 0
      %562 = vmatmul.mubr.bf16.gmra.mrb[0].mxu0 %v396
      %v563 = vpop.f32.mrb[0].mxu0
      %v564 = vadd.f32 %v431, %v563
      %v565 = vpop.f32.mrb[0].mxu0
      %v566 = vpop.f32.mrb[0].mxu0
      %v567 = vadd.f32 %v432, %v566
      %v568 = vpop.f32.mrb[0].mxu0
      %569 = vmatprep.mubr.bf16.mxu0 0
      %570 = vmatmul.mubr.bf16.gmra.mrb[0].mxu0 %v397
      %v571 = vpop.f32.mrb[0].mxu0
      %v572 = vadd.f32 %v433, %v571
      %v573 = vpop.f32.mrb[0].mxu0
      %v574 = vpop.f32.mrb[0].mxu0
      %v575 = vadd.f32 %v434, %v574
      %v576 = vpop.f32.mrb[0].mxu0
      %577 = vmatprep.mubr.bf16.mxu0 0
      %578 = vmatmul.mubr.bf16.gmra.mrb[0].mxu0 %v398
      %v579 = vpop.f32.mrb[0].mxu0
      %v580 = vadd.f32 %v435, %v579
      %v581 = vpop.f32.mrb[0].mxu0
      %v582 = vpop.f32.mrb[0].mxu0
      %v583 = vadd.f32 %v436, %v582
      %v584 = vpop.f32.mrb[0].mxu0
      %585 = vmatprep.mubr.bf16.mxu0 0
      %586 = vmatmul.mubr.bf16.gmra.mrb[0].mxu0 %v399
      %v587 = vpop.f32.mrb[0].mxu0
      %v588 = vadd.f32 %v437, %v587
      %v589 = vpop.f32.mrb[0].mxu0
      %v590 = vpop.f32.mrb[0].mxu0
      %v591 = vadd.f32 %v438, %v590
      %v592 = vpop.f32.mrb[0].mxu0
      %593 = vmatprep.mubr.bf16.mxu0 0
      %594 = vmatmul.mubr.bf16.gmra.mrb[0].mxu0 %v400
      %v595 = vpop.f32.mrb[0].mxu0
      %v596 = vadd.f32 %v439, %v595
      %v597 = vpop.f32.mrb[0].mxu0
      %v598 = vpop.f32.mrb[0].mxu0
      %v599 = vadd.f32 %v440, %v598
      %v600 = vpop.f32.mrb[0].mxu0
      %601 = vmatprep.mubr.bf16.mxu0 0
      %602 = vmatmul.mubr.bf16.gmra.mrb[0].mxu0 %v401
      %v603 = vpop.f32.mrb[0].mxu0
      %v604 = vadd.f32 %v441, %v603
      %v605 = vpop.f32.mrb[0].mxu0
      %v606 = vpop.f32.mrb[0].mxu0
      %v607 = vadd.f32 %v442, %v606
      %v608 = vpop.f32.mrb[0].mxu0
      %609 = vmatprep.mubr.bf16.mxu0 0
      %610 = vmatmul.mubr.bf16.gmra.mrb[0].mxu0 %v402
      %v611 = vpop.f32.mrb[0].mxu0
      %v612 = vadd.f32 %v443, %v611
      %v613 = vpop.f32.mrb[0].mxu0
      %v614 = vpop.f32.mrb[0].mxu0
      %v615 = vadd.f32 %v444, %v614
      %v616 = vpop.f32.mrb[0].mxu0
      %617 = vmatprep.mubr.bf16.mxu0 0
      %618 = vmatmul.mubr.bf16.gmra.mrb[0].mxu0 %v403
      %v619 = vpop.f32.mrb[0].mxu0
      %v620 = vadd.f32 %v445, %v619
      %v621 = vpop.f32.mrb[0].mxu0
      %v622 = vpop.f32.mrb[0].mxu0
      %v623 = vadd.f32 %v446, %v622
      %v624 = vpop.f32.mrb[0].mxu0
      %625 = vmatprep.mubr.bf16.mxu0 0
      %626 = vmatmul.mubr.bf16.gmra.mrb[0].mxu0 %v404
      %v627 = vpop.f32.mrb[0].mxu0
      %v628 = vadd.f32 %v447, %v627
      %v629 = vpop.f32.mrb[0].mxu0
      %v630 = vpop.f32.mrb[0].mxu0
      %v631 = vadd.f32 %v448, %v630
      %v632 = vpop.f32.mrb[0].mxu0
      %633 = vmatprep.mubr.bf16.mxu0 0
      %634 = vmatmul.mubr.bf16.gmra.mrb[0].mxu0 %v405
      %v635 = vpop.f32.mrb[0].mxu0
      %v636 = vadd.f32 %v449, %v635
      %v637 = vpop.f32.mrb[0].mxu0
      %v638 = vpop.f32.mrb[0].mxu0
      %v639 = vadd.f32 %v450, %v638
      %v640 = vpop.f32.mrb[0].mxu0
      %641 = vmatprep.mubr.bf16.mxu0 0
      %642 = vmatmul.mubr.bf16.gmra.mrb[0].mxu0 %v406
      %v643 = vpop.f32.mrb[0].mxu0
      %v644 = vadd.f32 %v451, %v643
      %v645 = vpop.f32.mrb[0].mxu0
      %v646 = vpop.f32.mrb[0].mxu0
      %v647 = vadd.f32 %v452, %v646
      %v648 = vpop.f32.mrb[0].mxu0
      %649 = vmatprep.mubr.bf16.mxu0 0
      %650 = vmatmul.mubr.bf16.gmra.mrb[0].mxu0 %v407
      %v651 = vpop.f32.mrb[0].mxu0
      %v652 = vadd.f32 %v453, %v651
      %v653 = vpop.f32.mrb[0].mxu0
      %v654 = vpop.f32.mrb[0].mxu0
      %v655 = vadd.f32 %v454, %v654
      %v656 = vpop.f32.mrb[0].mxu0
      %657 = vmatprep.mubr.bf16.mxu0 0
      %658 = vmatmul.mubr.bf16.gmra.mrb[0].mxu0 %v408
      %v659 = vpop.f32.mrb[0].mxu0
      %v660 = vadd.f32 %v455, %v659
      %v661 = vpop.f32.mrb[0].mxu0
      %v662 = vpop.f32.mrb[0].mxu0
      %v663 = vadd.f32 %v456, %v662
      %v664 = vpop.f32.mrb[0].mxu0
      %665 = vdwg.mxu0
      %666 = vst [vmem:[%s248] sm:$0xff] %v540
      %667 = vst [vmem:[%s248 + $0x8] sm:$0xff] %v543
      %668 = vst [vmem:[%s248 + $0x10] sm:$0xff] %v548
      %669 = vst [vmem:[%s248 + $0x18] sm:$0xff] %v551
      %670 = vst [vmem:[%s248 + $0x20] sm:$0xff] %v556
      %671 = vst [vmem:[%s248 + $0x28] sm:$0xff] %v559
      %672 = vst [vmem:[%s248 + $0x30] sm:$0xff] %v564
      %673 = vst [vmem:[%s248 + $0x38] sm:$0xff] %v567
      %674 = vst [vmem:[%s248 + $0x40] sm:$0xff] %v572
      %675 = vst [vmem:[%s248 + $0x48] sm:$0xff] %v575
      %676 = vst [vmem:[%s248 + $0x50] sm:$0xff] %v580
      %677 = vst [vmem:[%s248 + $0x58] sm:$0xff] %v583
      %678 = vst [vmem:[%s248 + $0x60] sm:$0xff] %v588
      %679 = vst [vmem:[%s248 + $0x68] sm:$0xff] %v591
      %680 = vst [vmem:[%s248 + $0x70] sm:$0xff] %v596
      %681 = vst [vmem:[%s248 + $0x78] sm:$0xff] %v599
      %682 = vst [vmem:[%s248 + $0x80] sm:$0xff] %v604
      %683 = vst [vmem:[%s248 + $0x88] sm:$0xff] %v607
      %684 = vst [vmem:[%s248 + $0x90] sm:$0xff] %v612
      %685 = vst [vmem:[%s248 + $0x98] sm:$0xff] %v615
      %686 = vst [vmem:[%s248 + $0xa0] sm:$0xff] %v620
      %687 = vst [vmem:[%s248 + $0xa8] sm:$0xff] %v623
      %688 = vst [vmem:[%s248 + $0xb0] sm:$0xff] %v628
      %689 = vst [vmem:[%s248 + $0xb8] sm:$0xff] %v631
      %690 = vst [vmem:[%s248 + $0xc0] sm:$0xff] %v636
      %691 = vst [vmem:[%s248 + $0xc8] sm:$0xff] %v639
      %692 = vst [vmem:[%s248 + $0xd0] sm:$0xff] %v644
      %693 = vst [vmem:[%s248 + $0xd8] sm:$0xff] %v647
      %694 = vst [vmem:[%s248 + $0xe0] sm:$0xff] %v652
      %695 = vst [vmem:[%s248 + $0xe8] sm:$0xff] %v655
      %696 = vst [vmem:[%s248 + $0xf0] sm:$0xff] %v660
      %697 = vst [vmem:[%s248 + $0xf8] sm:$0xff] %v663
      %s698 = smul.u32 32, %s16
      %p699 = scmp.lt.s32.totalorder %s698, 63
      %s700 = scalar_select %p699, %s698, 63
      %s701 = smul.addr %s700, 8
      %s702 = scalar_lea.vmem %s5, %s701
      // Predicated region
      $region41: #{residual_block.5} parent=39 // pred_check
        %p703 = pneg %p149
      $region42: #{residual_block.5} parent=39 // pred_check_branch
        %705 = sbr.rel (%p703) target = $region44
      $region43: #{residual_block.5} parent=39 // pred_region
        %s706 = smul.u32 32, %s16
      $region44: #{residual_block.5} parent=39 // pred_fallthru
        _
    $region40: #{residual_block.5} parent=5 // pred_fallthru
      _
    %p707 = scmp.le.s32.totalorder 2, %s11
    // Predicated region
    $region45: #{residual_block.5} parent=5 // pred_check
      %p708 = pneg %p707
    $region46: #{residual_block.5} parent=5 // pred_check_branch
      %710 = sbr.rel (%p708) target = $region48
    $region47: #{residual_block.5} parent=5 // pred_region
      %s711 = ssub.s32 %s11, 2
      // Predicated region
      $region49: #{residual_block.5} parent=47 // pred_check
        %p712 = pneg %p155
      $region50: #{residual_block.5} parent=47 // pred_check_branch
        %714 = sbr.rel (%p712) target = $region52
      $region51: #{residual_block.5} parent=47 // pred_region
        %s715 = smul.u32 32, %s17
        %p716 = scmp.lt.s32.totalorder %s715, 63
        %s717 = scalar_select %p716, %s715, 63
        %s718 = smul.addr %s717, 8
        %s719 = scalar_lea.vmem %s5, %s718
      $region52: #{residual_block.5} parent=47 // pred_fallthru
        _
    $region48: #{residual_block.5} parent=5 // pred_fallthru
      _
  $region6: #{residual_block.5} parent=0 // loop_footer
    %s15 = sadd.s32 1, %s11
  $region7: #{residual_block.5} parent=0 // loop_footer_branch
    %10 = sbr.rel target = $region3
  $region8: #{residual_block.5} parent=0 // loop_exit
    _

// kernel: residual_block.3
$region0: #{residual_block.3}
  #allocation0 [shape = 'u32[]', space=smem, size = 0x4, offset = 0x4, fixed_abs, tag = 'smem constant byte address 0x4 - core index']
  #allocation1 [shape = 'u32[144,128]{1,0:T(1,128)}', space=vmem, size = 0x12000, scoped, tag = 'internal scratch']
  %s0 = inlined_call_operand.vmem [shape: f32[512,128], index: 0, kind: input, shape index: {}]
  %s1 = inlined_call_operand.vmem [shape: f32[1,128], index: 1, kind: input, shape index: {}]
  %s2 = inlined_call_operand.vmem [shape: f32[1,128], index: 2, kind: input, shape index: {}]
  %s3 = inlined_call_operand.vmem [shape: bf16[128,128], index: 3, kind: input, shape index: {}]
  %s4 = inlined_call_operand.vmem [shape: bf16[128,128], index: 4, kind: input, shape index: {}]
  %s5 = inlined_call_operand.vmem [shape: f32[512,128], index: 5, kind: output, shape index: {0}]
  %s6 = inlined_call_operand.vmem [shape: f32[2,2,128], index: 6, kind: output, shape index: {1}]
  %s7 = inlined_call_operand.vmem [shape: f32[512,128], index: 7, kind: output, shape index: {2}]
  %8 = xla_tuple %s5, %s6, %s7
  %s9 = sld [smem:[#allocation0]]
  $region69: #{residual_block.3} parent=0
    _
  %s11 = ssub.s32 1, %s9
  %s12 = scalar_select 0, %s11, %s9
  loop: start=0, step=1, limit=4
  $region2: #{residual_block.3} parent=0 // loop_pre_header
    _
  $region3: #{residual_block.3} parent=0 // loop_header
    %s14 = sphi 0, %s18
    %p15 = scmp.ge.s32.totalorder %s14, 4
    %s24 = sphi 0, %s26
    %s27 = sphi 0, %s24
    %s28 = sphi 0, %s27
    %s44 = sphi 0, %s28
    %s48 = sphi 0, %s48
    %s50 = sphi 0, %s48
    %s51 = sphi 0, %s50
    %s65 = sphi 0, %s51
    %s69 = sphi 0, %s69
    %s71 = sphi 0, %s69
    %s72 = sphi 0, %s71
    %s86 = sphi 0, %s72
    %s90 = sphi 0, %s90
    %s92 = sphi 0, %s90
    %s93 = sphi 0, %s92
    %s107 = sphi 0, %s93
    %s111 = sphi 0, %s111
    %s113 = sphi 0, %s111
    %s114 = sphi 0, %s113
    %s128 = sphi 0, %s114
    %s134 = sphi 0, %s136
    %s137 = sphi 0, %s134
    %s138 = sphi 0, %s137
    %s154 = sphi 0, %s138
    %s160 = sphi 0, %s162
    %s163 = sphi 0, %s160
    %s164 = sphi 0, %s163
    %s180 = sphi 0, %s164
    %s186 = sphi 0, %s188
    %s189 = sphi 0, %s186
    %s190 = sphi 0, %s189
    %s206 = sphi 0, %s190
  $region4: #{residual_block.3} parent=0 // loop_header_branch
    %17 = sbr.rel (%p15) target = $region8
  $region5: #{residual_block.3} parent=0 // loop_body
    %s19 = ssub.s32 %s14, 1
    %s20 = ssub.s32 %s14, 2
    %s21 = sadd.s32 %s14, 1
    %s22 = ssub.s32 %s14, %s21
    %p23 = scmp.eq.s32.totalorder %s22, 0
    %s25 = sadd.s32 %s24, 1
    %s26 = scalar_select %p23, %s24, %s25
    %p29 = pneg %p23
    %p30 = scmp.eq.s32.totalorder %s14, 1
    %p31 = por %p29, %p30
    %p32 = scmp.ne.s32.totalorder %s24, %s27
    %p33 = scmp.eq.s32.totalorder %s14, 0
    %p34 = por %p32, %p33
    %p35 = scmp.ne.s32.totalorder %s24, %s27
    %p36 = scmp.eq.s32.totalorder %s19, 1
    %p37 = por %p35, %p36
    %p38 = scmp.ne.s32.totalorder %s27, %s28
    %p39 = scmp.eq.s32.totalorder %s19, 0
    %p40 = por %p38, %p39
    %p41 = scmp.ne.s32.totalorder %s27, %s28
    %p42 = scmp.eq.s32.totalorder %s20, 1
    %p43 = por %p41, %p42
    %p45 = scmp.ne.s32.totalorder %s28, %s44
    %p46 = scmp.eq.s32.totalorder %s20, 0
    %p47 = por %p45, %p46
    %s49 = sadd.s32 %s48, 1
    %p52 = scmp.eq.s32.totalorder %s14, 1
    %p53 = scmp.ne.s32.totalorder %s48, %s50
    %p54 = scmp.eq.s32.totalorder %s14, 0
    %p55 = por %p53, %p54
    %p56 = scmp.ne.s32.totalorder %s48, %s50
    %p57 = scmp.eq.s32.totalorder %s19, 1
    %p58 = por %p56, %p57
    %p59 = scmp.ne.s32.totalorder %s50, %s51
    %p60 = scmp.eq.s32.totalorder %s19, 0
    %p61 = por %p59, %p60
    %p62 = scmp.ne.s32.totalorder %s50, %s51
    %p63 = scmp.eq.s32.totalorder %s20, 1
    %p64 = por %p62, %p63
    %p66 = scmp.ne.s32.totalorder %s51, %s65
    %p67 = scmp.eq.s32.totalorder %s20, 0
    %p68 = por %p66, %p67
    %s70 = sadd.s32 %s69, 1
    %p73 = scmp.eq.s32.totalorder %s14, 1
    %p74 = scmp.ne.s32.totalorder %s69, %s71
    %p75 = scmp.eq.s32.totalorder %s14, 0
    %p76 = por %p74, %p75
    %p77 = scmp.ne.s32.totalorder %s69, %s71
    %p78 = scmp.eq.s32.totalorder %s19, 1
    %p79 = por %p77, %p78
    %p80 = scmp.ne.s32.totalorder %s71, %s72
    %p81 = scmp.eq.s32.totalorder %s19, 0
    %p82 = por %p80, %p81
    %p83 = scmp.ne.s32.totalorder %s71, %s72
    %p84 = scmp.eq.s32.totalorder %s20, 1
    %p85 = por %p83, %p84
    %p87 = scmp.ne.s32.totalorder %s72, %s86
    %p88 = scmp.eq.s32.totalorder %s20, 0
    %p89 = por %p87, %p88
    %s91 = sadd.s32 %s90, 1
    %p94 = scmp.eq.s32.totalorder %s14, 1
    %p95 = scmp.ne.s32.totalorder %s90, %s92
    %p96 = scmp.eq.s32.totalorder %s14, 0
    %p97 = por %p95, %p96
    %p98 = scmp.ne.s32.totalorder %s90, %s92
    %p99 = scmp.eq.s32.totalorder %s19, 1
    %p100 = por %p98, %p99
    %p101 = scmp.ne.s32.totalorder %s92, %s93
    %p102 = scmp.eq.s32.totalorder %s19, 0
    %p103 = por %p101, %p102
    %p104 = scmp.ne.s32.totalorder %s92, %s93
    %p105 = scmp.eq.s32.totalorder %s20, 1
    %p106 = por %p104, %p105
    %p108 = scmp.ne.s32.totalorder %s93, %s107
    %p109 = scmp.eq.s32.totalorder %s20, 0
    %p110 = por %p108, %p109
    %s112 = sadd.s32 %s111, 1
    %p115 = scmp.eq.s32.totalorder %s14, 1
    %p116 = scmp.ne.s32.totalorder %s111, %s113
    %p117 = scmp.eq.s32.totalorder %s14, 0
    %p118 = por %p116, %p117
    %p119 = scmp.ne.s32.totalorder %s111, %s113
    %p120 = scmp.eq.s32.totalorder %s19, 1
    %p121 = por %p119, %p120
    %p122 = scmp.ne.s32.totalorder %s113, %s114
    %p123 = scmp.eq.s32.totalorder %s19, 0
    %p124 = por %p122, %p123
    %p125 = scmp.ne.s32.totalorder %s113, %s114
    %p126 = scmp.eq.s32.totalorder %s20, 1
    %p127 = por %p125, %p126
    %p129 = scmp.ne.s32.totalorder %s114, %s128
    %p130 = scmp.eq.s32.totalorder %s20, 0
    %p131 = por %p129, %p130
    %s132 = ssub.s32 %s14, %s21
    %p133 = scmp.eq.s32.totalorder %s132, 0
    %s135 = sadd.s32 %s134, 1
    %s136 = scalar_select %p133, %s134, %s135
    %p139 = pneg %p133
    %p140 = scmp.eq.s32.totalorder %s14, 1
    %p141 = por %p139, %p140
    %p142 = scmp.ne.s32.totalorder %s134, %s137
    %p143 = scmp.eq.s32.totalorder %s14, 0
    %p144 = por %p142, %p143
    %p145 = scmp.ne.s32.totalorder %s134, %s137
    %p146 = scmp.eq.s32.totalorder %s19, 1
    %p147 = por %p145, %p146
    %p148 = scmp.ne.s32.totalorder %s137, %s138
    %p149 = scmp.eq.s32.totalorder %s19, 0
    %p150 = por %p148, %p149
    %p151 = scmp.ne.s32.totalorder %s137, %s138
    %p152 = scmp.eq.s32.totalorder %s20, 1
    %p153 = por %p151, %p152
    %p155 = scmp.ne.s32.totalorder %s138, %s154
    %p156 = scmp.eq.s32.totalorder %s20, 0
    %p157 = por %p155, %p156
    %s158 = ssub.s32 %s14, %s21
    %p159 = scmp.eq.s32.totalorder %s158, 0
    %s161 = sadd.s32 %s160, 1
    %s162 = scalar_select %p159, %s160, %s161
    %p165 = pneg %p159
    %p166 = scmp.eq.s32.totalorder %s14, 1
    %p167 = por %p165, %p166
    %p168 = scmp.ne.s32.totalorder %s160, %s163
    %p169 = scmp.eq.s32.totalorder %s14, 0
    %p170 = por %p168, %p169
    %p171 = scmp.ne.s32.totalorder %s160, %s163
    %p172 = scmp.eq.s32.totalorder %s19, 1
    %p173 = por %p171, %p172
    %p174 = scmp.ne.s32.totalorder %s163, %s164
    %p175 = scmp.eq.s32.totalorder %s19, 0
    %p176 = por %p174, %p175
    %p177 = scmp.ne.s32.totalorder %s163, %s164
    %p178 = scmp.eq.s32.totalorder %s20, 1
    %p179 = por %p177, %p178
    %p181 = scmp.ne.s32.totalorder %s164, %s180
    %p182 = scmp.eq.s32.totalorder %s20, 0
    %p183 = por %p181, %p182
    %s184 = ssub.s32 %s14, %s21
    %p185 = scmp.eq.s32.totalorder %s184, 0
    %s187 = sadd.s32 %s186, 1
    %s188 = scalar_select %p185, %s186, %s187
    %p191 = pneg %p185
    %p192 = scmp.eq.s32.totalorder %s14, 1
    %p193 = por %p191, %p192
    %p194 = scmp.ne.s32.totalorder %s186, %s189
    %p195 = scmp.eq.s32.totalorder %s14, 0
    %p196 = por %p194, %p195
    %p197 = scmp.ne.s32.totalorder %s186, %s189
    %p198 = scmp.eq.s32.totalorder %s19, 1
    %p199 = por %p197, %p198
    %p200 = scmp.ne.s32.totalorder %s189, %s190
    %p201 = scmp.eq.s32.totalorder %s19, 0
    %p202 = por %p200, %p201
    %p203 = scmp.ne.s32.totalorder %s189, %s190
    %p204 = scmp.eq.s32.totalorder %s20, 1
    %p205 = por %p203, %p204
    %p207 = scmp.ne.s32.totalorder %s190, %s206
    %p208 = scmp.eq.s32.totalorder %s20, 0
    %p209 = por %p207, %p208
    %p210 = scmp.le.s32.totalorder 1, %s14
    %p211 = scmp.lt.s32.totalorder %s14, 3
    %p212 = pnand %p210, %p211
    %p213 = pneg %p212
    // Predicated region
    $region9: #{residual_block.3} parent=5 // pred_check
      _
    $region10: #{residual_block.3} parent=5 // pred_check_branch
      %215 = sbr.rel (%p212) target = $region12
    $region11: #{residual_block.3} parent=5 // pred_region
      %s216 = ssub.s32 %s14, 1
      // Predicated region
      $region13: #{residual_block.3} parent=11 // pred_check
        %p217 = pneg %p61
      $region14: #{residual_block.3} parent=11 // pred_check_branch
        %219 = sbr.rel (%p217) target = $region16
      $region15: #{residual_block.3} parent=11 // pred_region
        _
      $region16: #{residual_block.3} parent=11 // pred_fallthru
        _
      // Predicated region
      $region17: #{residual_block.3} parent=11 // pred_check
        %p220 = pneg %p82
      $region18: #{residual_block.3} parent=11 // pred_check_branch
        %222 = sbr.rel (%p220) target = $region20
      $region19: #{residual_block.3} parent=11 // pred_region
        _
      $region20: #{residual_block.3} parent=11 // pred_fallthru
        _
      // Predicated region
      $region21: #{residual_block.3} parent=11 // pred_check
        %p223 = pneg %p103
      $region22: #{residual_block.3} parent=11 // pred_check_branch
        %225 = sbr.rel (%p223) target = $region24
      $region23: #{residual_block.3} parent=11 // pred_region
        _
      $region24: #{residual_block.3} parent=11 // pred_fallthru
        _
      // Predicated region
      $region25: #{residual_block.3} parent=11 // pred_check
        %p226 = pneg %p124
      $region26: #{residual_block.3} parent=11 // pred_check_branch
        %228 = sbr.rel (%p226) target = $region28
      $region27: #{residual_block.3} parent=11 // pred_region
        _
      $region28: #{residual_block.3} parent=11 // pred_fallthru
        _
    $region12: #{residual_block.3} parent=5 // pred_fallthru
      _
    %p229 = scmp.lt.s32.totalorder %s14, 2
    // Predicated region
    $region29: #{residual_block.3} parent=5 // pred_check
      %p230 = pneg %p229
    $region30: #{residual_block.3} parent=5 // pred_check_branch
      %232 = sbr.rel (%p230) target = $region32
    $region31: #{residual_block.3} parent=5 // pred_region
      // Predicated region
      $region33: #{residual_block.3} parent=31 // pred_check
        %p233 = pneg %p34
      $region34: #{residual_block.3} parent=31 // pred_check_branch
        %235 = sbr.rel (%p233) target = $region36
      $region35: #{residual_block.3} parent=31 // pred_region
        %s236 = smul.u32 32, %s14
        %p237 = scmp.lt.s32.totalorder %s236, 63
        %s238 = scalar_select %p237, %s236, 63
        %s239 = smul.addr %s238, 8
        %s240 = scalar_lea.vmem %s0, %s239
        %s241 = smul.u32 32, %s14
      $region36: #{residual_block.3} parent=31 // pred_fallthru
        _
    $region32: #{residual_block.3} parent=5 // pred_fallthru
      _
    %p242 = scmp.le.s32.totalorder 1, %s14
    %p243 = scmp.lt.s32.totalorder %s14, 3
    %p244 = pnand %p242, %p243
    %p245 = pneg %p244
    // Predicated region
    $region37: #{residual_block.3} parent=5 // pred_check
      _
    $region38: #{residual_block.3} parent=5 // pred_check_branch
      %247 = sbr.rel (%p244) target = $region40
    $region39: #{residual_block.3} parent=5 // pred_region
      %s248 = ssub.s32 %s14, 1
      %s249 = smul.u32 32, %s19
      %p250 = scmp.lt.s32.totalorder %s249, 63
      %s251 = scalar_select %p250, %s249, 63
      %s252 = smul.addr %s251, 8
      %s253 = scalar_lea.vmem %s0, %s252
      %p254 = pneg %p40
      %p255 = pneg %p37
      %p256 = pneg %p61
      %p257 = pneg %p58
      %p258 = pneg %p82
      %p259 = pneg %p79
      %p260 = pneg %p103
      %p261 = pneg %p100
      %p262 = pneg %p124
      %p263 = pneg %p121
      %p264 = pneg %p150
      %p265 = pneg %p147
      %s266 = smul.u32 32, %s19
      %p267 = scmp.lt.s32.totalorder %s266, 63
      %s268 = scalar_select %p267, %s266, 63
      %s269 = smul.addr %s268, 8
      %s270 = scalar_lea.vmem %s5, %s269
      %p271 = pneg %p176
      %p272 = pneg %p173
      %p273 = scmp.lt.s32.totalorder %s19, 1
      %s274 = scalar_select %p273, %s19, 1
      %s275 = smul.addr %s274, 2
      %s276 = scalar_lea.vmem %s6, %s275
      %p277 = pneg %p202
      %p278 = pneg %p199
      %s279 = smul.u32 32, %s19
      %p280 = scmp.lt.s32.totalorder %s279, 63
      %s281 = scalar_select %p280, %s279, 63
      %s282 = smul.addr %s281, 8
      %s283 = scalar_lea.vmem %s7, %s282
      %s284 = smul.u32 32, %s19
      %p285 = scmp.lt.s32.totalorder %s284, 63
      %s286 = scalar_select %p285, %s284, 63
      %s287 = smul.addr %s286, 8
      %s288 = scalar_lea.vmem %s0, %s287
      %s289 = smul.u32 32, %s19
      %s290 = smul.u32 32, %s19
      %p291 = scmp.lt.s32.totalorder %s290, 63
      %s292 = scalar_select %p291, %s290, 63
      %s293 = smul.addr %s292, 8
      %s294 = scalar_lea.vmem %s5, %s293
      %s295 = smul.u32 32, %s19
      %p296 = scmp.lt.s32.totalorder %s19, 1
      %s297 = scalar_select %p296, %s19, 1
      %s298 = smul.addr %s297, 2
      %s299 = scalar_lea.vmem %s6, %s298
      %s300 = smul.u32 32, %s19
      %p301 = scmp.lt.s32.totalorder %s300, 63
      %s302 = scalar_select %p301, %s300, 63
      %s303 = smul.addr %s302, 8
      %s304 = scalar_lea.vmem %s7, %s303
      %s305 = smul.u32 32, %s19
      %v307 = vld [vmem:[%s288] sm:$0xff]
      %v308 = vld [vmem:[%s288 + $0x8] sm:$0xff]
      %v309 = vld [vmem:[%s288 + $0x10] sm:$0xff]
      %v310 = vld [vmem:[%s288 + $0x18] sm:$0xff]
      %v311 = vld [vmem:[%s288 + $0x20] sm:$0xff]
      %v312 = vld [vmem:[%s288 + $0x28] sm:$0xff]
      %v313 = vld [vmem:[%s288 + $0x30] sm:$0xff]
      %v314 = vld [vmem:[%s288 + $0x38] sm:$0xff]
      %v315 = vld [vmem:[%s288 + $0x40] sm:$0xff]
      %v316 = vld [vmem:[%s288 + $0x48] sm:$0xff]
      %v317 = vld [vmem:[%s288 + $0x50] sm:$0xff]
      %v318 = vld [vmem:[%s288 + $0x58] sm:$0xff]
      %v319 = vld [vmem:[%s288 + $0x60] sm:$0xff]
      %v320 = vld [vmem:[%s288 + $0x68] sm:$0xff]
      %v321 = vld [vmem:[%s288 + $0x70] sm:$0xff]
      %v322 = vld [vmem:[%s288 + $0x78] sm:$0xff]
      %v323 = vld [vmem:[%s288 + $0x80] sm:$0xff]
      %v324 = vld [vmem:[%s288 + $0x88] sm:$0xff]
      %v325 = vld [vmem:[%s288 + $0x90] sm:$0xff]
      %v326 = vld [vmem:[%s288 + $0x98] sm:$0xff]
      %v327 = vld [vmem:[%s288 + $0xa0] sm:$0xff]
      %v328 = vld [vmem:[%s288 + $0xa8] sm:$0xff]
      %v329 = vld [vmem:[%s288 + $0xb0] sm:$0xff]
      %v330 = vld [vmem:[%s288 + $0xb8] sm:$0xff]
      %v331 = vld [vmem:[%s288 + $0xc0] sm:$0xff]
      %v332 = vld [vmem:[%s288 + $0xc8] sm:$0xff]
      %v333 = vld [vmem:[%s288 + $0xd0] sm:$0xff]
      %v334 = vld [vmem:[%s288 + $0xd8] sm:$0xff]
      %v335 = vld [vmem:[%s288 + $0xe0] sm:$0xff]
      %v336 = vld [vmem:[%s288 + $0xe8] sm:$0xff]
      %v337 = vld [vmem:[%s288 + $0xf0] sm:$0xff]
      %v338 = vld [vmem:[%s288 + $0xf8] sm:$0xff]
      %v339 = vpack.c.bf16 %v308, %v307
      %v340 = vpack.c.bf16 %v310, %v309
      %v341 = vpack.c.bf16 %v312, %v311
      %v342 = vpack.c.bf16 %v314, %v313
      %v343 = vpack.c.bf16 %v316, %v315
      %v344 = vpack.c.bf16 %v318, %v317
      %v345 = vpack.c.bf16 %v320, %v319
      %v346 = vpack.c.bf16 %v322, %v321
      %v347 = vpack.c.bf16 %v324, %v323
      %v348 = vpack.c.bf16 %v326, %v325
      %v349 = vpack.c.bf16 %v328, %v327
      %v350 = vpack.c.bf16 %v330, %v329
      %v351 = vpack.c.bf16 %v332, %v331
      %v352 = vpack.c.bf16 %v334, %v333
      %v353 = vpack.c.bf16 %v336, %v335
      %v354 = vpack.c.bf16 %v338, %v337
      %v355 = vld [vmem:[%s4] sm:$0xf]
      %v356 = vld [vmem:[%s4 + $0x4] sm:$0xf]
      %v357 = vld [vmem:[%s4 + $0x8] sm:$0xf]
      %v358 = vld [vmem:[%s4 + $0xc] sm:$0xf]
      %v359 = vld [vmem:[%s4 + $0x10] sm:$0xf]
      %v360 = vld [vmem:[%s4 + $0x14] sm:$0xf]
      %v361 = vld [vmem:[%s4 + $0x18] sm:$0xf]
      %v362 = vld [vmem:[%s4 + $0x1c] sm:$0xf]
      %v363 = vld [vmem:[%s4 + $0x20] sm:$0xf]
      %v364 = vld [vmem:[%s4 + $0x24] sm:$0xf]
      %v365 = vld [vmem:[%s4 + $0x28] sm:$0xf]
      %v366 = vld [vmem:[%s4 + $0x2c] sm:$0xf]
      %v367 = vld [vmem:[%s4 + $0x30] sm:$0xf]
      %v368 = vld [vmem:[%s4 + $0x34] sm:$0xf]
      %v369 = vld [vmem:[%s4 + $0x38] sm:$0xf]
      %v370 = vld [vmem:[%s4 + $0x3c] sm:$0xf]
      %v387 = vunpack.c.l.b16 %v355
      %v388 = vunpack.c.l.b16 %v356
      %v389 = vunpack.c.l.b16 %v357
      %v390 = vunpack.c.l.b16 %v358
      %v391 = vunpack.c.l.b16 %v359
      %v392 = vunpack.c.l.b16 %v360
      %v393 = vunpack.c.l.b16 %v361
      %v394 = vunpack.c.l.b16 %v362
      %v395 = vunpack.c.l.b16 %v363
      %v396 = vunpack.c.l.b16 %v364
      %v397 = vunpack.c.l.b16 %v365
      %v398 = vunpack.c.l.b16 %v366
      %v399 = vunpack.c.l.b16 %v367
      %v400 = vunpack.c.l.b16 %v368
      %v401 = vunpack.c.l.b16 %v369
      %v402 = vunpack.c.l.b16 %v370
      %v403 = vpack.c.b16 %v388, %v387
      %v404 = vpack.c.b16 %v390, %v389
      %v405 = vpack.c.b16 %v392, %v391
      %v406 = vpack.c.b16 %v394, %v393
      %v407 = vpack.c.b16 %v396, %v395
      %v408 = vpack.c.b16 %v398, %v397
      %v409 = vpack.c.b16 %v400, %v399
      %v410 = vpack.c.b16 %v402, %v401
      %419 = vmatprep.subr.bf16.mxu0 0
      %420 = vmatpush1.bf16.msra.mxu0 %v403
      %421 = vmatprep.subr.bf16.mxu0 0
      %422 = vmatpush1.bf16.msra.mxu0 %v404
      %423 = vmatprep.subr.bf16.mxu0 0
      %424 = vmatpush1.bf16.msra.mxu0 %v405
      %425 = vmatprep.subr.bf16.mxu0 0
      %426 = vmatpush1.bf16.msra.mxu0 %v406
      %427 = vmatprep.subr.bf16.mxu0 0
      %428 = vmatpush1.bf16.msra.mxu0 %v407
      %429 = vmatprep.subr.bf16.mxu0 0
      %430 = vmatpush1.bf16.msra.mxu0 %v408
      %431 = vmatprep.subr.bf16.mxu0 0
      %432 = vmatpush1.bf16.msra.mxu0 %v409
      %433 = vmatprep.subr.bf16.mxu0 0
      %434 = vmatpush1.bf16.msra.mxu0 %v410
      %435 = vmatprep.subr.bf16.mxu0 0
      %436 = vmatpush1.bf16.msra.mxu0 0
      %437 = vmatprep.subr.bf16.mxu0 0
      %438 = vmatpush1.bf16.msra.mxu0 0
      %439 = vmatprep.subr.bf16.mxu0 0
      %440 = vmatpush1.bf16.msra.mxu0 0
      %441 = vmatprep.subr.bf16.mxu0 0
      %442 = vmatpush1.bf16.msra.mxu0 0
      %443 = vmatprep.subr.bf16.mxu0 0
      %444 = vmatpush1.bf16.msra.mxu0 0
      %445 = vmatprep.subr.bf16.mxu0 0
      %446 = vmatpush1.bf16.msra.mxu0 0
      %447 = vmatprep.subr.bf16.mxu0 0
      %448 = vmatpush1.bf16.msra.mxu0 0
      %449 = vmatprep.subr.bf16.mxu0 0
      %450 = vmatpush1.bf16.msra.mxu0 0
      %451 = vmatprep.mubr.bf16.mxu0 0
      %452 = vmatmul.mubr.bf16.gmra.mrb[0].mxu0 %v339
      %v453 = vpop.f32.mrb[0].mxu0
      %v454 = vadd.f32 0.0, %v453
      %v455 = vpop.f32.mrb[0].mxu0
      %v456 = vpop.f32.mrb[0].mxu0
      %v457 = vadd.f32 0.0, %v456
      %v458 = vpop.f32.mrb[0].mxu0
      %459 = vmatprep.mubr.bf16.mxu0 0
      %460 = vmatmul.mubr.bf16.gmra.mrb[0].mxu0 %v340
      %v461 = vpop.f32.mrb[0].mxu0
      %v462 = vadd.f32 0.0, %v461
      %v463 = vpop.f32.mrb[0].mxu0
      %v464 = vpop.f32.mrb[0].mxu0
      %v465 = vadd.f32 0.0, %v464
      %v466 = vpop.f32.mrb[0].mxu0
      %467 = vmatprep.mubr.bf16.mxu0 0
      %468 = vmatmul.mubr.bf16.gmra.mrb[0].mxu0 %v341
      %v469 = vpop.f32.mrb[0].mxu0
      %v470 = vadd.f32 0.0, %v469
      %v471 = vpop.f32.mrb[0].mxu0
      %v472 = vpop.f32.mrb[0].mxu0
      %v473 = vadd.f32 0.0, %v472
      %v474 = vpop.f32.mrb[0].mxu0
      %475 = vmatprep.mubr.bf16.mxu0 0
      %476 = vmatmul.mubr.bf16.gmra.mrb[0].mxu0 %v342
      %v477 = vpop.f32.mrb[0].mxu0
      %v478 = vadd.f32 0.0, %v477
      %v479 = vpop.f32.mrb[0].mxu0
      %v480 = vpop.f32.mrb[0].mxu0
      %v481 = vadd.f32 0.0, %v480
      %v482 = vpop.f32.mrb[0].mxu0
      %483 = vmatprep.mubr.bf16.mxu0 0
      %484 = vmatmul.mubr.bf16.gmra.mrb[0].mxu0 %v343
      %v485 = vpop.f32.mrb[0].mxu0
      %v486 = vadd.f32 0.0, %v485
      %v487 = vpop.f32.mrb[0].mxu0
      %v488 = vpop.f32.mrb[0].mxu0
      %v489 = vadd.f32 0.0, %v488
      %v490 = vpop.f32.mrb[0].mxu0
      %491 = vmatprep.mubr.bf16.mxu0 0
      %492 = vmatmul.mubr.bf16.gmra.mrb[0].mxu0 %v344
      %v493 = vpop.f32.mrb[0].mxu0
      %v494 = vadd.f32 0.0, %v493
      %v495 = vpop.f32.mrb[0].mxu0
      %v496 = vpop.f32.mrb[0].mxu0
      %v497 = vadd.f32 0.0, %v496
      %v498 = vpop.f32.mrb[0].mxu0
      %499 = vmatprep.mubr.bf16.mxu0 0
      %500 = vmatmul.mubr.bf16.gmra.mrb[0].mxu0 %v345
      %v501 = vpop.f32.mrb[0].mxu0
      %v502 = vadd.f32 0.0, %v501
      %v503 = vpop.f32.mrb[0].mxu0
      %v504 = vpop.f32.mrb[0].mxu0
      %v505 = vadd.f32 0.0, %v504
      %v506 = vpop.f32.mrb[0].mxu0
      %507 = vmatprep.mubr.bf16.mxu0 0
      %508 = vmatmul.mubr.bf16.gmra.mrb[0].mxu0 %v346
      %v509 = vpop.f32.mrb[0].mxu0
      %v510 = vadd.f32 0.0, %v509
      %v511 = vpop.f32.mrb[0].mxu0
      %v512 = vpop.f32.mrb[0].mxu0
      %v513 = vadd.f32 0.0, %v512
      %v514 = vpop.f32.mrb[0].mxu0
      %515 = vmatprep.mubr.bf16.mxu0 0
      %516 = vmatmul.mubr.bf16.gmra.mrb[0].mxu0 %v347
      %v517 = vpop.f32.mrb[0].mxu0
      %v518 = vadd.f32 0.0, %v517
      %v519 = vpop.f32.mrb[0].mxu0
      %v520 = vpop.f32.mrb[0].mxu0
      %v521 = vadd.f32 0.0, %v520
      %v522 = vpop.f32.mrb[0].mxu0
      %523 = vmatprep.mubr.bf16.mxu0 0
      %524 = vmatmul.mubr.bf16.gmra.mrb[0].mxu0 %v348
      %v525 = vpop.f32.mrb[0].mxu0
      %v526 = vadd.f32 0.0, %v525
      %v527 = vpop.f32.mrb[0].mxu0
      %v528 = vpop.f32.mrb[0].mxu0
      %v529 = vadd.f32 0.0, %v528
      %v530 = vpop.f32.mrb[0].mxu0
      %531 = vmatprep.mubr.bf16.mxu0 0
      %532 = vmatmul.mubr.bf16.gmra.mrb[0].mxu0 %v349
      %v533 = vpop.f32.mrb[0].mxu0
      %v534 = vadd.f32 0.0, %v533
      %v535 = vpop.f32.mrb[0].mxu0
      %v536 = vpop.f32.mrb[0].mxu0
      %v537 = vadd.f32 0.0, %v536
      %v538 = vpop.f32.mrb[0].mxu0
      %539 = vmatprep.mubr.bf16.mxu0 0
      %540 = vmatmul.mubr.bf16.gmra.mrb[0].mxu0 %v350
      %v541 = vpop.f32.mrb[0].mxu0
      %v542 = vadd.f32 0.0, %v541
      %v543 = vpop.f32.mrb[0].mxu0
      %v544 = vpop.f32.mrb[0].mxu0
      %v545 = vadd.f32 0.0, %v544
      %v546 = vpop.f32.mrb[0].mxu0
      %547 = vmatprep.mubr.bf16.mxu0 0
      %548 = vmatmul.mubr.bf16.gmra.mrb[0].mxu0 %v351
      %v549 = vpop.f32.mrb[0].mxu0
      %v550 = vadd.f32 0.0, %v549
      %v551 = vpop.f32.mrb[0].mxu0
      %v552 = vpop.f32.mrb[0].mxu0
      %v553 = vadd.f32 0.0, %v552
      %v554 = vpop.f32.mrb[0].mxu0
      %555 = vmatprep.mubr.bf16.mxu0 0
      %556 = vmatmul.mubr.bf16.gmra.mrb[0].mxu0 %v352
      %v557 = vpop.f32.mrb[0].mxu0
      %v558 = vadd.f32 0.0, %v557
      %v559 = vpop.f32.mrb[0].mxu0
      %v560 = vpop.f32.mrb[0].mxu0
      %v561 = vadd.f32 0.0, %v560
      %v562 = vpop.f32.mrb[0].mxu0
      %563 = vmatprep.mubr.bf16.mxu0 0
      %564 = vmatmul.mubr.bf16.gmra.mrb[0].mxu0 %v353
      %v565 = vpop.f32.mrb[0].mxu0
      %v566 = vadd.f32 0.0, %v565
      %v567 = vpop.f32.mrb[0].mxu0
      %v568 = vpop.f32.mrb[0].mxu0
      %v569 = vadd.f32 0.0, %v568
      %v570 = vpop.f32.mrb[0].mxu0
      %571 = vmatprep.mubr.bf16.mxu0 0
      %572 = vmatmul.mubr.bf16.gmra.mrb[0].mxu0 %v354
      %v573 = vpop.f32.mrb[0].mxu0
      %v574 = vadd.f32 0.0, %v573
      %v575 = vpop.f32.mrb[0].mxu0
      %v576 = vpop.f32.mrb[0].mxu0
      %v577 = vadd.f32 0.0, %v576
      %v578 = vpop.f32.mrb[0].mxu0
      %579 = vdwg.mxu0
      %580 = vst [vmem:[%s304] sm:$0xff] %v454
      %581 = vst [vmem:[%s304 + $0x8] sm:$0xff] %v457
      %582 = vst [vmem:[%s304 + $0x10] sm:$0xff] %v462
      %583 = vst [vmem:[%s304 + $0x18] sm:$0xff] %v465
      %584 = vst [vmem:[%s304 + $0x20] sm:$0xff] %v470
      %585 = vst [vmem:[%s304 + $0x28] sm:$0xff] %v473
      %586 = vst [vmem:[%s304 + $0x30] sm:$0xff] %v478
      %587 = vst [vmem:[%s304 + $0x38] sm:$0xff] %v481
      %588 = vst [vmem:[%s304 + $0x40] sm:$0xff] %v486
      %589 = vst [vmem:[%s304 + $0x48] sm:$0xff] %v489
      %590 = vst [vmem:[%s304 + $0x50] sm:$0xff] %v494
      %591 = vst [vmem:[%s304 + $0x58] sm:$0xff] %v497
      %592 = vst [vmem:[%s304 + $0x60] sm:$0xff] %v502
      %593 = vst [vmem:[%s304 + $0x68] sm:$0xff] %v505
      %594 = vst [vmem:[%s304 + $0x70] sm:$0xff] %v510
      %595 = vst [vmem:[%s304 + $0x78] sm:$0xff] %v513
      %596 = vst [vmem:[%s304 + $0x80] sm:$0xff] %v518
      %597 = vst [vmem:[%s304 + $0x88] sm:$0xff] %v521
      %598 = vst [vmem:[%s304 + $0x90] sm:$0xff] %v526
      %599 = vst [vmem:[%s304 + $0x98] sm:$0xff] %v529
      %600 = vst [vmem:[%s304 + $0xa0] sm:$0xff] %v534
      %601 = vst [vmem:[%s304 + $0xa8] sm:$0xff] %v537
      %602 = vst [vmem:[%s304 + $0xb0] sm:$0xff] %v542
      %603 = vst [vmem:[%s304 + $0xb8] sm:$0xff] %v545
      %604 = vst [vmem:[%s304 + $0xc0] sm:$0xff] %v550
      %605 = vst [vmem:[%s304 + $0xc8] sm:$0xff] %v553
      %606 = vst [vmem:[%s304 + $0xd0] sm:$0xff] %v558
      %607 = vst [vmem:[%s304 + $0xd8] sm:$0xff] %v561
      %608 = vst [vmem:[%s304 + $0xe0] sm:$0xff] %v566
      %609 = vst [vmem:[%s304 + $0xe8] sm:$0xff] %v569
      %610 = vst [vmem:[%s304 + $0xf0] sm:$0xff] %v574
      %611 = vst [vmem:[%s304 + $0xf8] sm:$0xff] %v577
      %v612 = vld [vmem:[%s1] sm:$0x1]
      %v614 = vlaneseq
      %v615 = vshrl.u32 %v614, 7
      %v616 = vsub.s32 0, %v615
      %v617 = vrot.slane %v612, %v616
      %v619 = vmul.f32 %v307, %v617
      %v620 = vmul.f32 %v308, %v617
      %v621 = vmul.f32 %v309, %v617
      %v622 = vmul.f32 %v310, %v617
      %v623 = vmul.f32 %v311, %v617
      %v624 = vmul.f32 %v312, %v617
      %v625 = vmul.f32 %v313, %v617
      %v626 = vmul.f32 %v314, %v617
      %v627 = vmul.f32 %v315, %v617
      %v628 = vmul.f32 %v316, %v617
      %v629 = vmul.f32 %v317, %v617
      %v630 = vmul.f32 %v318, %v617
      %v631 = vmul.f32 %v319, %v617
      %v632 = vmul.f32 %v320, %v617
      %v633 = vmul.f32 %v321, %v617
      %v634 = vmul.f32 %v322, %v617
      %v635 = vmul.f32 %v323, %v617
      %v636 = vmul.f32 %v324, %v617
      %v637 = vmul.f32 %v325, %v617
      %v638 = vmul.f32 %v326, %v617
      %v639 = vmul.f32 %v327, %v617
      %v640 = vmul.f32 %v328, %v617
      %v641 = vmul.f32 %v329, %v617
      %v642 = vmul.f32 %v330, %v617
      %v643 = vmul.f32 %v331, %v617
      %v644 = vmul.f32 %v332, %v617
      %v645 = vmul.f32 %v333, %v617
      %v646 = vmul.f32 %v334, %v617
      %v647 = vmul.f32 %v335, %v617
      %v648 = vmul.f32 %v336, %v617
      %v649 = vmul.f32 %v337, %v617
      %v650 = vmul.f32 %v338, %v617
      %v651 = vld [vmem:[%s2] sm:$0x1]
      %v653 = vlaneseq
      %v654 = vshrl.u32 %v653, 7
      %v655 = vsub.s32 0, %v654
      %v656 = vrot.slane %v651, %v655
      %v658 = vadd.f32 %v619, %v656
      %v659 = vadd.f32 %v620, %v656
      %v660 = vadd.f32 %v621, %v656
      %v661 = vadd.f32 %v622, %v656
      %v662 = vadd.f32 %v623, %v656
      %v663 = vadd.f32 %v624, %v656
      %v664 = vadd.f32 %v625, %v656
      %v665 = vadd.f32 %v626, %v656
      %v666 = vadd.f32 %v627, %v656
      %v667 = vadd.f32 %v628, %v656
      %v668 = vadd.f32 %v629, %v656
      %v669 = vadd.f32 %v630, %v656
      %v670 = vadd.f32 %v631, %v656
      %v671 = vadd.f32 %v632, %v656
      %v672 = vadd.f32 %v633, %v656
      %v673 = vadd.f32 %v634, %v656
      %v674 = vadd.f32 %v635, %v656
      %v675 = vadd.f32 %v636, %v656
      %v676 = vadd.f32 %v637, %v656
      %v677 = vadd.f32 %v638, %v656
      %v678 = vadd.f32 %v639, %v656
      %v679 = vadd.f32 %v640, %v656
      %v680 = vadd.f32 %v641, %v656
      %v681 = vadd.f32 %v642, %v656
      %v682 = vadd.f32 %v643, %v656
      %v683 = vadd.f32 %v644, %v656
      %v684 = vadd.f32 %v645, %v656
      %v685 = vadd.f32 %v646, %v656
      %v686 = vadd.f32 %v647, %v656
      %v687 = vadd.f32 %v648, %v656
      %v688 = vadd.f32 %v649, %v656
      %v689 = vadd.f32 %v650, %v656
      %v690 = vmax.f32 %v658, 0.0
      %v691 = vmax.f32 %v659, 0.0
      %v692 = vmax.f32 %v660, 0.0
      %v693 = vmax.f32 %v661, 0.0
      %v694 = vmax.f32 %v662, 0.0
      %v695 = vmax.f32 %v663, 0.0
      %v696 = vmax.f32 %v664, 0.0
      %v697 = vmax.f32 %v665, 0.0
      %v698 = vmax.f32 %v666, 0.0
      %v699 = vmax.f32 %v667, 0.0
      %v700 = vmax.f32 %v668, 0.0
      %v701 = vmax.f32 %v669, 0.0
      %v702 = vmax.f32 %v670, 0.0
      %v703 = vmax.f32 %v671, 0.0
      %v704 = vmax.f32 %v672, 0.0
      %v705 = vmax.f32 %v673, 0.0
      %v706 = vmax.f32 %v674, 0.0
      %v707 = vmax.f32 %v675, 0.0
      %v708 = vmax.f32 %v676, 0.0
      %v709 = vmax.f32 %v677, 0.0
      %v710 = vmax.f32 %v678, 0.0
      %v711 = vmax.f32 %v679, 0.0
      %v712 = vmax.f32 %v680, 0.0
      %v713 = vmax.f32 %v681, 0.0
      %v714 = vmax.f32 %v682, 0.0
      %v715 = vmax.f32 %v683, 0.0
      %v716 = vmax.f32 %v684, 0.0
      %v717 = vmax.f32 %v685, 0.0
      %v718 = vmax.f32 %v686, 0.0
      %v719 = vmax.f32 %v687, 0.0
      %v720 = vmax.f32 %v688, 0.0
      %v721 = vmax.f32 %v689, 0.0
      %v722 = vpack.c.bf16 %v691, %v690
      %v723 = vpack.c.bf16 %v693, %v692
      %v724 = vpack.c.bf16 %v695, %v694
      %v725 = vpack.c.bf16 %v697, %v696
      %v726 = vpack.c.bf16 %v699, %v698
      %v727 = vpack.c.bf16 %v701, %v700
      %v728 = vpack.c.bf16 %v703, %v702
      %v729 = vpack.c.bf16 %v705, %v704
      %v730 = vpack.c.bf16 %v707, %v706
      %v731 = vpack.c.bf16 %v709, %v708
      %v732 = vpack.c.bf16 %v711, %v710
      %v733 = vpack.c.bf16 %v713, %v712
      %v734 = vpack.c.bf16 %v715, %v714
      %v735 = vpack.c.bf16 %v717, %v716
      %v736 = vpack.c.bf16 %v719, %v718
      %v737 = vpack.c.bf16 %v721, %v720
      %v738 = vld [vmem:[%s3] sm:$0xf]
      %v739 = vld [vmem:[%s3 + $0x4] sm:$0xf]
      %v740 = vld [vmem:[%s3 + $0x8] sm:$0xf]
      %v741 = vld [vmem:[%s3 + $0xc] sm:$0xf]
      %v742 = vld [vmem:[%s3 + $0x10] sm:$0xf]
      %v743 = vld [vmem:[%s3 + $0x14] sm:$0xf]
      %v744 = vld [vmem:[%s3 + $0x18] sm:$0xf]
      %v745 = vld [vmem:[%s3 + $0x1c] sm:$0xf]
      %v746 = vld [vmem:[%s3 + $0x20] sm:$0xf]
      %v747 = vld [vmem:[%s3 + $0x24] sm:$0xf]
      %v748 = vld [vmem:[%s3 + $0x28] sm:$0xf]
      %v749 = vld [vmem:[%s3 + $0x2c] sm:$0xf]
      %v750 = vld [vmem:[%s3 + $0x30] sm:$0xf]
      %v751 = vld [vmem:[%s3 + $0x34] sm:$0xf]
      %v752 = vld [vmem:[%s3 + $0x38] sm:$0xf]
      %v753 = vld [vmem:[%s3 + $0x3c] sm:$0xf]
      %v770 = vunpack.c.l.b16 %v738
      %v771 = vunpack.c.l.b16 %v739
      %v772 = vunpack.c.l.b16 %v740
      %v773 = vunpack.c.l.b16 %v741
      %v774 = vunpack.c.l.b16 %v742
      %v775 = vunpack.c.l.b16 %v743
      %v776 = vunpack.c.l.b16 %v744
      %v777 = vunpack.c.l.b16 %v745
      %v778 = vunpack.c.l.b16 %v746
      %v779 = vunpack.c.l.b16 %v747
      %v780 = vunpack.c.l.b16 %v748
      %v781 = vunpack.c.l.b16 %v749
      %v782 = vunpack.c.l.b16 %v750
      %v783 = vunpack.c.l.b16 %v751
      %v784 = vunpack.c.l.b16 %v752
      %v785 = vunpack.c.l.b16 %v753
      %v786 = vpack.c.b16 %v771, %v770
      %v787 = vpack.c.b16 %v773, %v772
      %v788 = vpack.c.b16 %v775, %v774
      %v789 = vpack.c.b16 %v777, %v776
      %v790 = vpack.c.b16 %v779, %v778
      %v791 = vpack.c.b16 %v781, %v780
      %v792 = vpack.c.b16 %v783, %v782
      %v793 = vpack.c.b16 %v785, %v784
      %802 = vmatprep.subr.bf16.mxu0 0
      %803 = vmatpush1.bf16.msra.mxu0 %v786
      %804 = vmatprep.subr.bf16.mxu0 0
      %805 = vmatpush1.bf16.msra.mxu0 %v787
      %806 = vmatprep.subr.bf16.mxu0 0
      %807 = vmatpush1.bf16.msra.mxu0 %v788
      %808 = vmatprep.subr.bf16.mxu0 0
      %809 = vmatpush1.bf16.msra.mxu0 %v789
      %810 = vmatprep.subr.bf16.mxu0 0
      %811 = vmatpush1.bf16.msra.mxu0 %v790
      %812 = vmatprep.subr.bf16.mxu0 0
      %813 = vmatpush1.bf16.msra.mxu0 %v791
      %814 = vmatprep.subr.bf16.mxu0 0
      %815 = vmatpush1.bf16.msra.mxu0 %v792
      %816 = vmatprep.subr.bf16.mxu0 0
      %817 = vmatpush1.bf16.msra.mxu0 %v793
      %818 = vmatprep.subr.bf16.mxu0 0
      %819 = vmatpush1.bf16.msra.mxu0 0
      %820 = vmatprep.subr.bf16.mxu0 0
      %821 = vmatpush1.bf16.msra.mxu0 0
      %822 = vmatprep.subr.bf16.mxu0 0
      %823 = vmatpush1.bf16.msra.mxu0 0
      %824 = vmatprep.subr.bf16.mxu0 0
      %825 = vmatpush1.bf16.msra.mxu0 0
      %826 = vmatprep.subr.bf16.mxu0 0
      %827 = vmatpush1.bf16.msra.mxu0 0
      %828 = vmatprep.subr.bf16.mxu0 0
      %829 = vmatpush1.bf16.msra.mxu0 0
      %830 = vmatprep.subr.bf16.mxu0 0
      %831 = vmatpush1.bf16.msra.mxu0 0
      %832 = vmatprep.subr.bf16.mxu0 0
      %833 = vmatpush1.bf16.msra.mxu0 0
      %834 = vmatprep.mubr.bf16.mxu0 0
      %835 = vmatmul.mubr.bf16.gmra.mrb[0].mxu0 %v722
      %v836 = vpop.f32.mrb[0].mxu0
      %v837 = vadd.f32 0.0, %v836
      %v838 = vpop.f32.mrb[0].mxu0
      %v839 = vpop.f32.mrb[0].mxu0
      %v840 = vadd.f32 0.0, %v839
      %v841 = vpop.f32.mrb[0].mxu0
      %842 = vmatprep.mubr.bf16.mxu0 0
      %843 = vmatmul.mubr.bf16.gmra.mrb[0].mxu0 %v723
      %v844 = vpop.f32.mrb[0].mxu0
      %v845 = vadd.f32 0.0, %v844
      %v846 = vpop.f32.mrb[0].mxu0
      %v847 = vpop.f32.mrb[0].mxu0
      %v848 = vadd.f32 0.0, %v847
      %v849 = vpop.f32.mrb[0].mxu0
      %850 = vmatprep.mubr.bf16.mxu0 0
      %851 = vmatmul.mubr.bf16.gmra.mrb[0].mxu0 %v724
      %v852 = vpop.f32.mrb[0].mxu0
      %v853 = vadd.f32 0.0, %v852
      %v854 = vpop.f32.mrb[0].mxu0
      %v855 = vpop.f32.mrb[0].mxu0
      %v856 = vadd.f32 0.0, %v855
      %v857 = vpop.f32.mrb[0].mxu0
      %858 = vmatprep.mubr.bf16.mxu0 0
      %859 = vmatmul.mubr.bf16.gmra.mrb[0].mxu0 %v725
      %v860 = vpop.f32.mrb[0].mxu0
      %v861 = vadd.f32 0.0, %v860
      %v862 = vpop.f32.mrb[0].mxu0
      %v863 = vpop.f32.mrb[0].mxu0
      %v864 = vadd.f32 0.0, %v863
      %v865 = vpop.f32.mrb[0].mxu0
      %866 = vmatprep.mubr.bf16.mxu0 0
      %867 = vmatmul.mubr.bf16.gmra.mrb[0].mxu0 %v726
      %v868 = vpop.f32.mrb[0].mxu0
      %v869 = vadd.f32 0.0, %v868
      %v870 = vpop.f32.mrb[0].mxu0
      %v871 = vpop.f32.mrb[0].mxu0
      %v872 = vadd.f32 0.0, %v871
      %v873 = vpop.f32.mrb[0].mxu0
      %874 = vmatprep.mubr.bf16.mxu0 0
      %875 = vmatmul.mubr.bf16.gmra.mrb[0].mxu0 %v727
      %v876 = vpop.f32.mrb[0].mxu0
      %v877 = vadd.f32 0.0, %v876
      %v878 = vpop.f32.mrb[0].mxu0
      %v879 = vpop.f32.mrb[0].mxu0
      %v880 = vadd.f32 0.0, %v879
      %v881 = vpop.f32.mrb[0].mxu0
      %882 = vmatprep.mubr.bf16.mxu0 0
      %883 = vmatmul.mubr.bf16.gmra.mrb[0].mxu0 %v728
      %v884 = vpop.f32.mrb[0].mxu0
      %v885 = vadd.f32 0.0, %v884
      %v886 = vpop.f32.mrb[0].mxu0
      %v887 = vpop.f32.mrb[0].mxu0
      %v888 = vadd.f32 0.0, %v887
      %v889 = vpop.f32.mrb[0].mxu0
      %890 = vmatprep.mubr.bf16.mxu0 0
      %891 = vmatmul.mubr.bf16.gmra.mrb[0].mxu0 %v729
      %v892 = vpop.f32.mrb[0].mxu0
      %v893 = vadd.f32 0.0, %v892
      %v894 = vpop.f32.mrb[0].mxu0
      %v895 = vpop.f32.mrb[0].mxu0
      %v896 = vadd.f32 0.0, %v895
      %v897 = vpop.f32.mrb[0].mxu0
      %898 = vmatprep.mubr.bf16.mxu0 0
      %899 = vmatmul.mubr.bf16.gmra.mrb[0].mxu0 %v730
      %v900 = vpop.f32.mrb[0].mxu0
      %v901 = vadd.f32 0.0, %v900
      %v902 = vpop.f32.mrb[0].mxu0
      %v903 = vpop.f32.mrb[0].mxu0
      %v904 = vadd.f32 0.0, %v903
      %v905 = vpop.f32.mrb[0].mxu0
      %906 = vmatprep.mubr.bf16.mxu0 0
      %907 = vmatmul.mubr.bf16.gmra.mrb[0].mxu0 %v731
      %v908 = vpop.f32.mrb[0].mxu0
      %v909 = vadd.f32 0.0, %v908
      %v910 = vpop.f32.mrb[0].mxu0
      %v911 = vpop.f32.mrb[0].mxu0
      %v912 = vadd.f32 0.0, %v911
      %v913 = vpop.f32.mrb[0].mxu0
      %914 = vmatprep.mubr.bf16.mxu0 0
      %915 = vmatmul.mubr.bf16.gmra.mrb[0].mxu0 %v732
      %v916 = vpop.f32.mrb[0].mxu0
      %v917 = vadd.f32 0.0, %v916
      %v918 = vpop.f32.mrb[0].mxu0
      %v919 = vpop.f32.mrb[0].mxu0
      %v920 = vadd.f32 0.0, %v919
      %v921 = vpop.f32.mrb[0].mxu0
      %922 = vmatprep.mubr.bf16.mxu0 0
      %923 = vmatmul.mubr.bf16.gmra.mrb[0].mxu0 %v733
      %v924 = vpop.f32.mrb[0].mxu0
      %v925 = vadd.f32 0.0, %v924
      %v926 = vpop.f32.mrb[0].mxu0
      %v927 = vpop.f32.mrb[0].mxu0
      %v928 = vadd.f32 0.0, %v927
      %v929 = vpop.f32.mrb[0].mxu0
      %930 = vmatprep.mubr.bf16.mxu0 0
      %931 = vmatmul.mubr.bf16.gmra.mrb[0].mxu0 %v734
      %v932 = vpop.f32.mrb[0].mxu0
      %v933 = vadd.f32 0.0, %v932
      %v934 = vpop.f32.mrb[0].mxu0
      %v935 = vpop.f32.mrb[0].mxu0
      %v936 = vadd.f32 0.0, %v935
      %v937 = vpop.f32.mrb[0].mxu0
      %938 = vmatprep.mubr.bf16.mxu0 0
      %939 = vmatmul.mubr.bf16.gmra.mrb[0].mxu0 %v735
      %v940 = vpop.f32.mrb[0].mxu0
      %v941 = vadd.f32 0.0, %v940
      %v942 = vpop.f32.mrb[0].mxu0
      %v943 = vpop.f32.mrb[0].mxu0
      %v944 = vadd.f32 0.0, %v943
      %v945 = vpop.f32.mrb[0].mxu0
      %946 = vmatprep.mubr.bf16.mxu0 0
      %947 = vmatmul.mubr.bf16.gmra.mrb[0].mxu0 %v736
      %v948 = vpop.f32.mrb[0].mxu0
      %v949 = vadd.f32 0.0, %v948
      %v950 = vpop.f32.mrb[0].mxu0
      %v951 = vpop.f32.mrb[0].mxu0
      %v952 = vadd.f32 0.0, %v951
      %v953 = vpop.f32.mrb[0].mxu0
      %954 = vmatprep.mubr.bf16.mxu0 0
      %955 = vmatmul.mubr.bf16.gmra.mrb[0].mxu0 %v737
      %v956 = vpop.f32.mrb[0].mxu0
      %v957 = vadd.f32 0.0, %v956
      %v958 = vpop.f32.mrb[0].mxu0
      %v959 = vpop.f32.mrb[0].mxu0
      %v960 = vadd.f32 0.0, %v959
      %v961 = vpop.f32.mrb[0].mxu0
      %962 = vdwg.mxu0
      %963 = vst [vmem:[%s294] sm:$0xff] %v837
      %964 = vst [vmem:[%s294 + $0x8] sm:$0xff] %v840
      %965 = vst [vmem:[%s294 + $0x10] sm:$0xff] %v845
      %966 = vst [vmem:[%s294 + $0x18] sm:$0xff] %v848
      %967 = vst [vmem:[%s294 + $0x20] sm:$0xff] %v853
      %968 = vst [vmem:[%s294 + $0x28] sm:$0xff] %v856
      %969 = vst [vmem:[%s294 + $0x30] sm:$0xff] %v861
      %970 = vst [vmem:[%s294 + $0x38] sm:$0xff] %v864
      %971 = vst [vmem:[%s294 + $0x40] sm:$0xff] %v869
      %972 = vst [vmem:[%s294 + $0x48] sm:$0xff] %v872
      %973 = vst [vmem:[%s294 + $0x50] sm:$0xff] %v877
      %974 = vst [vmem:[%s294 + $0x58] sm:$0xff] %v880
      %975 = vst [vmem:[%s294 + $0x60] sm:$0xff] %v885
      %976 = vst [vmem:[%s294 + $0x68] sm:$0xff] %v888
      %977 = vst [vmem:[%s294 + $0x70] sm:$0xff] %v893
      %978 = vst [vmem:[%s294 + $0x78] sm:$0xff] %v896
      %979 = vst [vmem:[%s294 + $0x80] sm:$0xff] %v901
      %980 = vst [vmem:[%s294 + $0x88] sm:$0xff] %v904
      %981 = vst [vmem:[%s294 + $0x90] sm:$0xff] %v909
      %982 = vst [vmem:[%s294 + $0x98] sm:$0xff] %v912
      %983 = vst [vmem:[%s294 + $0xa0] sm:$0xff] %v917
      %984 = vst [vmem:[%s294 + $0xa8] sm:$0xff] %v920
      %985 = vst [vmem:[%s294 + $0xb0] sm:$0xff] %v925
      %986 = vst [vmem:[%s294 + $0xb8] sm:$0xff] %v928
      %987 = vst [vmem:[%s294 + $0xc0] sm:$0xff] %v933
      %988 = vst [vmem:[%s294 + $0xc8] sm:$0xff] %v936
      %989 = vst [vmem:[%s294 + $0xd0] sm:$0xff] %v941
      %990 = vst [vmem:[%s294 + $0xd8] sm:$0xff] %v944
      %991 = vst [vmem:[%s294 + $0xe0] sm:$0xff] %v949
      %992 = vst [vmem:[%s294 + $0xe8] sm:$0xff] %v952
      %993 = vst [vmem:[%s294 + $0xf0] sm:$0xff] %v957
      %994 = vst [vmem:[%s294 + $0xf8] sm:$0xff] %v960
      %v995 = vadd.f32 %v837, %v840
      %v996 = vadd.f32 %v995, %v845
      %v997 = vadd.f32 %v996, %v848
      %v998 = vadd.f32 %v997, %v853
      %v999 = vadd.f32 %v998, %v856
      %v1000 = vadd.f32 %v999, %v861
      %v1001 = vadd.f32 %v1000, %v864
      %v1002 = vadd.f32 %v1001, %v869
      %v1003 = vadd.f32 %v1002, %v872
      %v1004 = vadd.f32 %v1003, %v877
      %v1005 = vadd.f32 %v1004, %v880
      %v1006 = vadd.f32 %v1005, %v885
      %v1007 = vadd.f32 %v1006, %v888
      %v1008 = vadd.f32 %v1007, %v893
      %v1009 = vadd.f32 %v1008, %v896
      %v1010 = vadd.f32 %v1009, %v901
      %v1011 = vadd.f32 %v1010, %v904
      %v1012 = vadd.f32 %v1011, %v909
      %v1013 = vadd.f32 %v1012, %v912
      %v1014 = vadd.f32 %v1013, %v917
      %v1015 = vadd.f32 %v1014, %v920
      %v1016 = vadd.f32 %v1015, %v925
      %v1017 = vadd.f32 %v1016, %v928
      %v1018 = vadd.f32 %v1017, %v933
      %v1019 = vadd.f32 %v1018, %v936
      %v1020 = vadd.f32 %v1019, %v941
      %v1021 = vadd.f32 %v1020, %v944
      %v1022 = vadd.f32 %v1021, %v949
      %v1023 = vadd.f32 %v1022, %v952
      %v1024 = vadd.f32 %v1023, %v957
      %v1025 = vadd.f32 %v1024, %v960
      %v1026 = vrot.slane %v1025, 4
      %v1027 = vadd.f32 %v1025, %v1026
      %v1028 = vrot.slane %v1027, 2
      %v1029 = vadd.f32 %v1027, %v1028
      %v1030 = vrot.slane %v1029, 1
      %v1031 = vadd.f32 %v1029, %v1030
      %v1032 = vmul.f32 %v837, %v837
      %v1033 = vmul.f32 %v840, %v840
      %v1034 = vmul.f32 %v845, %v845
      %v1035 = vmul.f32 %v848, %v848
      %v1036 = vmul.f32 %v853, %v853
      %v1037 = vmul.f32 %v856, %v856
      %v1038 = vmul.f32 %v861, %v861
      %v1039 = vmul.f32 %v864, %v864
      %v1040 = vmul.f32 %v869, %v869
      %v1041 = vmul.f32 %v872, %v872
      %v1042 = vmul.f32 %v877, %v877
      %v1043 = vmul.f32 %v880, %v880
      %v1044 = vmul.f32 %v885, %v885
      %v1045 = vmul.f32 %v888, %v888
      %v1046 = vmul.f32 %v893, %v893
      %v1047 = vmul.f32 %v896, %v896
      %v1048 = vmul.f32 %v901, %v901
      %v1049 = vmul.f32 %v904, %v904
      %v1050 = vmul.f32 %v909, %v909
      %v1051 = vmul.f32 %v912, %v912
      %v1052 = vmul.f32 %v917, %v917
      %v1053 = vmul.f32 %v920, %v920
      %v1054 = vmul.f32 %v925, %v925
      %v1055 = vmul.f32 %v928, %v928
      %v1056 = vmul.f32 %v933, %v933
      %v1057 = vmul.f32 %v936, %v936
      %v1058 = vmul.f32 %v941, %v941
      %v1059 = vmul.f32 %v944, %v944
      %v1060 = vmul.f32 %v949, %v949
      %v1061 = vmul.f32 %v952, %v952
      %v1062 = vmul.f32 %v957, %v957
      %v1063 = vmul.f32 %v960, %v960
      %v1064 = vadd.f32 %v1032, %v1033
      %v1065 = vadd.f32 %v1064, %v1034
      %v1066 = vadd.f32 %v1065, %v1035
      %v1067 = vadd.f32 %v1066, %v1036
      %v1068 = vadd.f32 %v1067, %v1037
      %v1069 = vadd.f32 %v1068, %v1038
      %v1070 = vadd.f32 %v1069, %v1039
      %v1071 = vadd.f32 %v1070, %v1040
      %v1072 = vadd.f32 %v1071, %v1041
      %v1073 = vadd.f32 %v1072, %v1042
      %v1074 = vadd.f32 %v1073, %v1043
      %v1075 = vadd.f32 %v1074, %v1044
      %v1076 = vadd.f32 %v1075, %v1045
      %v1077 = vadd.f32 %v1076, %v1046
      %v1078 = vadd.f32 %v1077, %v1047
      %v1079 = vadd.f32 %v1078, %v1048
      %v1080 = vadd.f32 %v1079, %v1049
      %v1081 = vadd.f32 %v1080, %v1050
      %v1082 = vadd.f32 %v1081, %v1051
      %v1083 = vadd.f32 %v1082, %v1052
      %v1084 = vadd.f32 %v1083, %v1053
      %v1085 = vadd.f32 %v1084, %v1054
      %v1086 = vadd.f32 %v1085, %v1055
      %v1087 = vadd.f32 %v1086, %v1056
      %v1088 = vadd.f32 %v1087, %v1057
      %v1089 = vadd.f32 %v1088, %v1058
      %v1090 = vadd.f32 %v1089, %v1059
      %v1091 = vadd.f32 %v1090, %v1060
      %v1092 = vadd.f32 %v1091, %v1061
      %v1093 = vadd.f32 %v1092, %v1062
      %v1094 = vadd.f32 %v1093, %v1063
      %v1095 = vrot.slane %v1094, 4
      %v1096 = vadd.f32 %v1094, %v1095
      %v1097 = vrot.slane %v1096, 2
      %v1098 = vadd.f32 %v1096, %v1097
      %v1099 = vrot.slane %v1098, 1
      %v1100 = vadd.f32 %v1098, %v1099
      %vm1101 = vcmask 1040384
      %v1102 = vsel %vm1101, %v1031, %v1100
      %1103 = vst [vmem:[%s299] sm:$0x3] %v1102
      %s1104 = smul.u32 32, %s19
      %p1105 = scmp.lt.s32.totalorder %s1104, 63
      %s1106 = scalar_select %p1105, %s1104, 63
      %s1107 = smul.addr %s1106, 8
      %s1108 = scalar_lea.vmem %s5, %s1107
      %p1109 = scmp.lt.s32.totalorder %s19, 1
      %s1110 = scalar_select %p1109, %s19, 1
      %s1111 = smul.addr %s1110, 2
      %s1112 = scalar_lea.vmem %s6, %s1111
      %s1113 = smul.u32 32, %s19
      %p1114 = scmp.lt.s32.totalorder %s1113, 63
      %s1115 = scalar_select %p1114, %s1113, 63
      %s1116 = smul.addr %s1115, 8
      %s1117 = scalar_lea.vmem %s7, %s1116
      // Predicated region
      $region41: #{residual_block.3} parent=39 // pred_check
        %p1118 = pneg %p147
      $region42: #{residual_block.3} parent=39 // pred_check_branch
        %1120 = sbr.rel (%p1118) target = $region44
      $region43: #{residual_block.3} parent=39 // pred_region
        %s1121 = smul.u32 32, %s19
      $region44: #{residual_block.3} parent=39 // pred_fallthru
        _
      // Predicated region
      $region45: #{residual_block.3} parent=39 // pred_check
        %p1122 = pneg %p173
      $region46: #{residual_block.3} parent=39 // pred_check_branch
        %1124 = sbr.rel (%p1122) target = $region48
      $region47: #{residual_block.3} parent=39 // pred_region
        _
      $region48: #{residual_block.3} parent=39 // pred_fallthru
        _
      // Predicated region
      $region49: #{residual_block.3} parent=39 // pred_check
        %p1125 = pneg %p199
      $region50: #{residual_block.3} parent=39 // pred_check_branch
        %1127 = sbr.rel (%p1125) target = $region52
      $region51: #{residual_block.3} parent=39 // pred_region
        %s1128 = smul.u32 32, %s19
      $region52: #{residual_block.3} parent=39 // pred_fallthru
        _
    $region40: #{residual_block.3} parent=5 // pred_fallthru
      _
    %p1129 = scmp.le.s32.totalorder 2, %s14
    // Predicated region
    $region53: #{residual_block.3} parent=5 // pred_check
      %p1130 = pneg %p1129
    $region54: #{residual_block.3} parent=5 // pred_check_branch
      %1132 = sbr.rel (%p1130) target = $region56
    $region55: #{residual_block.3} parent=5 // pred_region
      %s1133 = ssub.s32 %s14, 2
      // Predicated region
      $region57: #{residual_block.3} parent=55 // pred_check
        %p1134 = pneg %p153
      $region58: #{residual_block.3} parent=55 // pred_check_branch
        %1136 = sbr.rel (%p1134) target = $region60
      $region59: #{residual_block.3} parent=55 // pred_region
        %s1137 = smul.u32 32, %s20
        %p1138 = scmp.lt.s32.totalorder %s1137, 63
        %s1139 = scalar_select %p1138, %s1137, 63
        %s1140 = smul.addr %s1139, 8
        %s1141 = scalar_lea.vmem %s5, %s1140
      $region60: #{residual_block.3} parent=55 // pred_fallthru
        _
      // Predicated region
      $region61: #{residual_block.3} parent=55 // pred_check
        %p1142 = pneg %p179
      $region62: #{residual_block.3} parent=55 // pred_check_branch
        %1144 = sbr.rel (%p1142) target = $region64
      $region63: #{residual_block.3} parent=55 // pred_region
        %p1145 = scmp.lt.s32.totalorder %s20, 1
        %s1146 = scalar_select %p1145, %s20, 1
        %s1147 = smul.addr %s1146, 2
        %s1148 = scalar_lea.vmem %s6, %s1147
      $region64: #{residual_block.3} parent=55 // pred_fallthru
        _
      // Predicated region
      $region65: #{residual_block.3} parent=55 // pred_check
        %p1149 = pneg %p205
      $region66: #{residual_block.3} parent=55 // pred_check_branch
        %1151 = sbr.rel (%p1149) target = $region68
      $region67: #{residual_block.3} parent=55 // pred_region
        %s1152 = smul.u32 32, %s20
        %p1153 = scmp.lt.s32.totalorder %s1152, 63
        %s1154 = scalar_select %p1153, %s1152, 63
        %s1155 = smul.addr %s1154, 8
        %s1156 = scalar_lea.vmem %s7, %s1155
      $region68: #{residual_block.3} parent=55 // pred_fallthru
        _
    $region56: #{residual_block.3} parent=5 // pred_fallthru
      _
  $region6: #{residual_block.3} parent=0 // loop_footer
    %s18 = sadd.s32 1, %s14
  $region7: #{residual_block.3} parent=0 // loop_footer_branch
    %13 = sbr.rel target = $region3
  $region8: #{residual_block.3} parent=0 // loop_exit
    _

// kernel: residual_block.4
$region0: #{residual_block.4}
  #allocation0 [shape = 'u32[]', space=smem, size = 0x4, offset = 0x4, fixed_abs, tag = 'smem constant byte address 0x4 - core index']
  #allocation1 [shape = 'u32[144,128]{1,0:T(1,128)}', space=vmem, size = 0x12000, scoped, tag = 'internal scratch']
  %s0 = inlined_call_operand.vmem [shape: f32[2,16,16,128], index: 0, kind: input, shape index: {}]
  %s1 = inlined_call_operand.vmem [shape: f32[1,128], index: 1, kind: input, shape index: {}]
  %s2 = inlined_call_operand.vmem [shape: f32[1,128], index: 2, kind: input, shape index: {}]
  %s3 = inlined_call_operand.vmem [shape: bf16[1152,128], index: 3, kind: input, shape index: {}]
  %s4 = inlined_call_operand.vmem [shape: f32[2,16,16,128], index: 4, kind: output, shape index: {0}]
  %s5 = inlined_call_operand.vmem [shape: f32[2,2,128], index: 5, kind: output, shape index: {1}]
  %6 = xla_tuple %s4, %s5
  %s7 = sld [smem:[#allocation0]]
  $region57: #{residual_block.4} parent=0
    _
  %s9 = ssub.s32 1, %s7
  %s10 = scalar_select 0, %s9, %s7
  loop: start=0, step=1, limit=4
  $region2: #{residual_block.4} parent=0 // loop_pre_header
    _
  $region3: #{residual_block.4} parent=0 // loop_header
    %s12 = sphi 0, %s16
    %p13 = scmp.ge.s32.totalorder %s12, 4
    %s22 = sphi 0, %s24
    %s25 = sphi 0, %s22
    %s26 = sphi 0, %s25
    %s42 = sphi 0, %s26
    %s46 = sphi 0, %s46
    %s48 = sphi 0, %s46
    %s49 = sphi 0, %s48
    %s63 = sphi 0, %s49
    %s67 = sphi 0, %s67
    %s69 = sphi 0, %s67
    %s70 = sphi 0, %s69
    %s84 = sphi 0, %s70
    %s88 = sphi 0, %s88
    %s90 = sphi 0, %s88
    %s91 = sphi 0, %s90
    %s105 = sphi 0, %s91
    %s111 = sphi 0, %s113
    %s114 = sphi 0, %s111
    %s115 = sphi 0, %s114
    %s131 = sphi 0, %s115
    %s137 = sphi 0, %s139
    %s140 = sphi 0, %s137
    %s141 = sphi 0, %s140
    %s157 = sphi 0, %s141
  $region4: #{residual_block.4} parent=0 // loop_header_branch
    %15 = sbr.rel (%p13) target = $region8
  $region5: #{residual_block.4} parent=0 // loop_body
    %s17 = ssub.s32 %s12, 1
    %s18 = ssub.s32 %s12, 2
    %s19 = sadd.s32 %s12, 1
    %s20 = ssub.s32 %s12, %s19
    %p21 = scmp.eq.s32.totalorder %s20, 0
    %s23 = sadd.s32 %s22, 1
    %s24 = scalar_select %p21, %s22, %s23
    %p27 = pneg %p21
    %p28 = scmp.eq.s32.totalorder %s12, 1
    %p29 = por %p27, %p28
    %p30 = scmp.ne.s32.totalorder %s22, %s25
    %p31 = scmp.eq.s32.totalorder %s12, 0
    %p32 = por %p30, %p31
    %p33 = scmp.ne.s32.totalorder %s22, %s25
    %p34 = scmp.eq.s32.totalorder %s17, 1
    %p35 = por %p33, %p34
    %p36 = scmp.ne.s32.totalorder %s25, %s26
    %p37 = scmp.eq.s32.totalorder %s17, 0
    %p38 = por %p36, %p37
    %p39 = scmp.ne.s32.totalorder %s25, %s26
    %p40 = scmp.eq.s32.totalorder %s18, 1
    %p41 = por %p39, %p40
    %p43 = scmp.ne.s32.totalorder %s26, %s42
    %p44 = scmp.eq.s32.totalorder %s18, 0
    %p45 = por %p43, %p44
    %s47 = sadd.s32 %s46, 1
    %p50 = scmp.eq.s32.totalorder %s12, 1
    %p51 = scmp.ne.s32.totalorder %s46, %s48
    %p52 = scmp.eq.s32.totalorder %s12, 0
    %p53 = por %p51, %p52
    %p54 = scmp.ne.s32.totalorder %s46, %s48
    %p55 = scmp.eq.s32.totalorder %s17, 1
    %p56 = por %p54, %p55
    %p57 = scmp.ne.s32.totalorder %s48, %s49
    %p58 = scmp.eq.s32.totalorder %s17, 0
    %p59 = por %p57, %p58
    %p60 = scmp.ne.s32.totalorder %s48, %s49
    %p61 = scmp.eq.s32.totalorder %s18, 1
    %p62 = por %p60, %p61
    %p64 = scmp.ne.s32.totalorder %s49, %s63
    %p65 = scmp.eq.s32.totalorder %s18, 0
    %p66 = por %p64, %p65
    %s68 = sadd.s32 %s67, 1
    %p71 = scmp.eq.s32.totalorder %s12, 1
    %p72 = scmp.ne.s32.totalorder %s67, %s69
    %p73 = scmp.eq.s32.totalorder %s12, 0
    %p74 = por %p72, %p73
    %p75 = scmp.ne.s32.totalorder %s67, %s69
    %p76 = scmp.eq.s32.totalorder %s17, 1
    %p77 = por %p75, %p76
    %p78 = scmp.ne.s32.totalorder %s69, %s70
    %p79 = scmp.eq.s32.totalorder %s17, 0
    %p80 = por %p78, %p79
    %p81 = scmp.ne.s32.totalorder %s69, %s70
    %p82 = scmp.eq.s32.totalorder %s18, 1
    %p83 = por %p81, %p82
    %p85 = scmp.ne.s32.totalorder %s70, %s84
    %p86 = scmp.eq.s32.totalorder %s18, 0
    %p87 = por %p85, %p86
    %s89 = sadd.s32 %s88, 1
    %p92 = scmp.eq.s32.totalorder %s12, 1
    %p93 = scmp.ne.s32.totalorder %s88, %s90
    %p94 = scmp.eq.s32.totalorder %s12, 0
    %p95 = por %p93, %p94
    %p96 = scmp.ne.s32.totalorder %s88, %s90
    %p97 = scmp.eq.s32.totalorder %s17, 1
    %p98 = por %p96, %p97
    %p99 = scmp.ne.s32.totalorder %s90, %s91
    %p100 = scmp.eq.s32.totalorder %s17, 0
    %p101 = por %p99, %p100
    %p102 = scmp.ne.s32.totalorder %s90, %s91
    %p103 = scmp.eq.s32.totalorder %s18, 1
    %p104 = por %p102, %p103
    %p106 = scmp.ne.s32.totalorder %s91, %s105
    %p107 = scmp.eq.s32.totalorder %s18, 0
    %p108 = por %p106, %p107
    %s109 = ssub.s32 %s12, %s19
    %p110 = scmp.eq.s32.totalorder %s109, 0
    %s112 = sadd.s32 %s111, 1
    %s113 = scalar_select %p110, %s111, %s112
    %p116 = pneg %p110
    %p117 = scmp.eq.s32.totalorder %s12, 1
    %p118 = por %p116, %p117
    %p119 = scmp.ne.s32.totalorder %s111, %s114
    %p120 = scmp.eq.s32.totalorder %s12, 0
    %p121 = por %p119, %p120
    %p122 = scmp.ne.s32.totalorder %s111, %s114
    %p123 = scmp.eq.s32.totalorder %s17, 1
    %p124 = por %p122, %p123
    %p125 = scmp.ne.s32.totalorder %s114, %s115
    %p126 = scmp.eq.s32.totalorder %s17, 0
    %p127 = por %p125, %p126
    %p128 = scmp.ne.s32.totalorder %s114, %s115
    %p129 = scmp.eq.s32.totalorder %s18, 1
    %p130 = por %p128, %p129
    %p132 = scmp.ne.s32.totalorder %s115, %s131
    %p133 = scmp.eq.s32.totalorder %s18, 0
    %p134 = por %p132, %p133
    %s135 = ssub.s32 %s12, %s19
    %p136 = scmp.eq.s32.totalorder %s135, 0
    %s138 = sadd.s32 %s137, 1
    %s139 = scalar_select %p136, %s137, %s138
    %p142 = pneg %p136
    %p143 = scmp.eq.s32.totalorder %s12, 1
    %p144 = por %p142, %p143
    %p145 = scmp.ne.s32.totalorder %s137, %s140
    %p146 = scmp.eq.s32.totalorder %s12, 0
    %p147 = por %p145, %p146
    %p148 = scmp.ne.s32.totalorder %s137, %s140
    %p149 = scmp.eq.s32.totalorder %s17, 1
    %p150 = por %p148, %p149
    %p151 = scmp.ne.s32.totalorder %s140, %s141
    %p152 = scmp.eq.s32.totalorder %s17, 0
    %p153 = por %p151, %p152
    %p154 = scmp.ne.s32.totalorder %s140, %s141
    %p155 = scmp.eq.s32.totalorder %s18, 1
    %p156 = por %p154, %p155
    %p158 = scmp.ne.s32.totalorder %s141, %s157
    %p159 = scmp.eq.s32.totalorder %s18, 0
    %p160 = por %p158, %p159
    %p161 = scmp.le.s32.totalorder 1, %s12
    %p162 = scmp.lt.s32.totalorder %s12, 3
    %p163 = pnand %p161, %p162
    %p164 = pneg %p163
    // Predicated region
    $region9: #{residual_block.4} parent=5 // pred_check
      _
    $region10: #{residual_block.4} parent=5 // pred_check_branch
      %166 = sbr.rel (%p163) target = $region12
    $region11: #{residual_block.4} parent=5 // pred_region
      %s167 = ssub.s32 %s12, 1
      // Predicated region
      $region13: #{residual_block.4} parent=11 // pred_check
        %p168 = pneg %p59
      $region14: #{residual_block.4} parent=11 // pred_check_branch
        %170 = sbr.rel (%p168) target = $region16
      $region15: #{residual_block.4} parent=11 // pred_region
        _
      $region16: #{residual_block.4} parent=11 // pred_fallthru
        _
      // Predicated region
      $region17: #{residual_block.4} parent=11 // pred_check
        %p171 = pneg %p80
      $region18: #{residual_block.4} parent=11 // pred_check_branch
        %173 = sbr.rel (%p171) target = $region20
      $region19: #{residual_block.4} parent=11 // pred_region
        _
      $region20: #{residual_block.4} parent=11 // pred_fallthru
        _
      // Predicated region
      $region21: #{residual_block.4} parent=11 // pred_check
        %p174 = pneg %p101
      $region22: #{residual_block.4} parent=11 // pred_check_branch
        %176 = sbr.rel (%p174) target = $region24
      $region23: #{residual_block.4} parent=11 // pred_region
        _
      $region24: #{residual_block.4} parent=11 // pred_fallthru
        _
    $region12: #{residual_block.4} parent=5 // pred_fallthru
      _
    %p177 = scmp.lt.s32.totalorder %s12, 2
    // Predicated region
    $region25: #{residual_block.4} parent=5 // pred_check
      %p178 = pneg %p177
    $region26: #{residual_block.4} parent=5 // pred_check_branch
      %180 = sbr.rel (%p178) target = $region28
    $region27: #{residual_block.4} parent=5 // pred_region
      // Predicated region
      $region29: #{residual_block.4} parent=27 // pred_check
        %p181 = pneg %p32
      $region30: #{residual_block.4} parent=27 // pred_check_branch
        %183 = sbr.rel (%p181) target = $region32
      $region31: #{residual_block.4} parent=27 // pred_region
        %p184 = scmp.lt.s32.totalorder %s12, 1
        %s185 = scalar_select %p184, %s12, 1
        %s186 = smul.addr %s185, 32
        %s187 = smul.addr %s186, 8
        %s188 = scalar_lea.vmem %s0, %s187
      $region32: #{residual_block.4} parent=27 // pred_fallthru
        _
    $region28: #{residual_block.4} parent=5 // pred_fallthru
      _
    %p189 = scmp.le.s32.totalorder 1, %s12
    %p190 = scmp.lt.s32.totalorder %s12, 3
    %p191 = pnand %p189, %p190
    %p192 = pneg %p191
    // Predicated region
    $region33: #{residual_block.4} parent=5 // pred_check
      _
    $region34: #{residual_block.4} parent=5 // pred_check_branch
      %194 = sbr.rel (%p191) target = $region36
    $region35: #{residual_block.4} parent=5 // pred_region
      %s195 = ssub.s32 %s12, 1
      %p196 = scmp.lt.s32.totalorder %s17, 1
      %s197 = scalar_select %p196, %s17, 1
      %s198 = smul.addr %s197, 32
      %s199 = smul.addr %s198, 8
      %s200 = scalar_lea.vmem %s0, %s199
      %p201 = pneg %p38
      %p202 = pneg %p35
      %p203 = pneg %p59
      %p204 = pneg %p56
      %p205 = pneg %p80
      %p206 = pneg %p77
      %p207 = pneg %p101
      %p208 = pneg %p98
      %p209 = pneg %p127
      %p210 = pneg %p124
      %p211 = scmp.lt.s32.totalorder %s17, 1
      %s212 = scalar_select %p211, %s17, 1
      %s213 = smul.addr %s212, 32
      %s214 = smul.addr %s213, 8
      %s215 = scalar_lea.vmem %s4, %s214
      %p216 = pneg %p153
      %p217 = pneg %p150
      %p218 = scmp.lt.s32.totalorder %s17, 1
      %s219 = scalar_select %p218, %s17, 1
      %s220 = smul.addr %s219, 2
      %s221 = scalar_lea.vmem %s5, %s220
      %p222 = scmp.lt.s32.totalorder %s17, 1
      %s223 = scalar_select %p222, %s17, 1
      %s224 = smul.addr %s223, 32
      %s225 = smul.addr %s224, 8
      %s226 = scalar_lea.vmem %s0, %s225
      %p227 = scmp.lt.s32.totalorder %s17, 1
      %s228 = scalar_select %p227, %s17, 1
      %s229 = smul.addr %s228, 32
      %s230 = smul.addr %s229, 8
      %s231 = scalar_lea.vmem %s4, %s230
      %p232 = scmp.lt.s32.totalorder %s17, 1
      %s233 = scalar_select %p232, %s17, 1
      %s234 = smul.addr %s233, 2
      %s235 = scalar_lea.vmem %s5, %s234
      %v237 = vld [vmem:[%s226] sm:$0xff]
      %v238 = vld [vmem:[%s226 + $0x8] sm:$0xff]
      %v239 = vld [vmem:[%s226 + $0x10] sm:$0xff]
      %v240 = vld [vmem:[%s226 + $0x18] sm:$0xff]
      %v241 = vld [vmem:[%s226 + $0x20] sm:$0xff]
      %v242 = vld [vmem:[%s226 + $0x28] sm:$0xff]
      %v243 = vld [vmem:[%s226 + $0x30] sm:$0xff]
      %v244 = vld [vmem:[%s226 + $0x38] sm:$0xff]
      %v245 = vld [vmem:[%s226 + $0x40] sm:$0xff]
      %v246 = vld [vmem:[%s226 + $0x48] sm:$0xff]
      %v247 = vld [vmem:[%s226 + $0x50] sm:$0xff]
      %v248 = vld [vmem:[%s226 + $0x58] sm:$0xff]
      %v249 = vld [vmem:[%s226 + $0x60] sm:$0xff]
      %v250 = vld [vmem:[%s226 + $0x68] sm:$0xff]
      %v251 = vld [vmem:[%s226 + $0x70] sm:$0xff]
      %v252 = vld [vmem:[%s226 + $0x78] sm:$0xff]
      %v253 = vld [vmem:[%s226 + $0x80] sm:$0xff]
      %v254 = vld [vmem:[%s226 + $0x88] sm:$0xff]
      %v255 = vld [vmem:[%s226 + $0x90] sm:$0xff]
      %v256 = vld [vmem:[%s226 + $0x98] sm:$0xff]
      %v257 = vld [vmem:[%s226 + $0xa0] sm:$0xff]
      %v258 = vld [vmem:[%s226 + $0xa8] sm:$0xff]
      %v259 = vld [vmem:[%s226 + $0xb0] sm:$0xff]
      %v260 = vld [vmem:[%s226 + $0xb8] sm:$0xff]
      %v261 = vld [vmem:[%s226 + $0xc0] sm:$0xff]
      %v262 = vld [vmem:[%s226 + $0xc8] sm:$0xff]
      %v263 = vld [vmem:[%s226 + $0xd0] sm:$0xff]
      %v264 = vld [vmem:[%s226 + $0xd8] sm:$0xff]
      %v265 = vld [vmem:[%s226 + $0xe0] sm:$0xff]
      %v266 = vld [vmem:[%s226 + $0xe8] sm:$0xff]
      %v267 = vld [vmem:[%s226 + $0xf0] sm:$0xff]
      %v268 = vld [vmem:[%s226 + $0xf8] sm:$0xff]
      %v269 = vld [vmem:[%s1] sm:$0x1]
      %v271 = vlaneseq
      %v272 = vshrl.u32 %v271, 7
      %v273 = vsub.s32 0, %v272
      %v274 = vrot.slane %v269, %v273
      %v276 = vmul.f32 %v237, %v274
      %v277 = vmul.f32 %v238, %v274
      %v278 = vmul.f32 %v239, %v274
      %v279 = vmul.f32 %v240, %v274
      %v280 = vmul.f32 %v241, %v274
      %v281 = vmul.f32 %v242, %v274
      %v282 = vmul.f32 %v243, %v274
      %v283 = vmul.f32 %v244, %v274
      %v284 = vmul.f32 %v245, %v274
      %v285 = vmul.f32 %v246, %v274
      %v286 = vmul.f32 %v247, %v274
      %v287 = vmul.f32 %v248, %v274
      %v288 = vmul.f32 %v249, %v274
      %v289 = vmul.f32 %v250, %v274
      %v290 = vmul.f32 %v251, %v274
      %v291 = vmul.f32 %v252, %v274
      %v292 = vmul.f32 %v253, %v274
      %v293 = vmul.f32 %v254, %v274
      %v294 = vmul.f32 %v255, %v274
      %v295 = vmul.f32 %v256, %v274
      %v296 = vmul.f32 %v257, %v274
      %v297 = vmul.f32 %v258, %v274
      %v298 = vmul.f32 %v259, %v274
      %v299 = vmul.f32 %v260, %v274
      %v300 = vmul.f32 %v261, %v274
      %v301 = vmul.f32 %v262, %v274
      %v302 = vmul.f32 %v263, %v274
      %v303 = vmul.f32 %v264, %v274
      %v304 = vmul.f32 %v265, %v274
      %v305 = vmul.f32 %v266, %v274
      %v306 = vmul.f32 %v267, %v274
      %v307 = vmul.f32 %v268, %v274
      %v308 = vld [vmem:[%s2] sm:$0x1]
      %v310 = vlaneseq
      %v311 = vshrl.u32 %v310, 7
      %v312 = vsub.s32 0, %v311
      %v313 = vrot.slane %v308, %v312
      %v315 = vadd.f32 %v276, %v313
      %v316 = vadd.f32 %v277, %v313
      %v317 = vadd.f32 %v278, %v313
      %v318 = vadd.f32 %v279, %v313
      %v319 = vadd.f32 %v280, %v313
      %v320 = vadd.f32 %v281, %v313
      %v321 = vadd.f32 %v282, %v313
      %v322 = vadd.f32 %v283, %v313
      %v323 = vadd.f32 %v284, %v313
      %v324 = vadd.f32 %v285, %v313
      %v325 = vadd.f32 %v286, %v313
      %v326 = vadd.f32 %v287, %v313
      %v327 = vadd.f32 %v288, %v313
      %v328 = vadd.f32 %v289, %v313
      %v329 = vadd.f32 %v290, %v313
      %v330 = vadd.f32 %v291, %v313
      %v331 = vadd.f32 %v292, %v313
      %v332 = vadd.f32 %v293, %v313
      %v333 = vadd.f32 %v294, %v313
      %v334 = vadd.f32 %v295, %v313
      %v335 = vadd.f32 %v296, %v313
      %v336 = vadd.f32 %v297, %v313
      %v337 = vadd.f32 %v298, %v313
      %v338 = vadd.f32 %v299, %v313
      %v339 = vadd.f32 %v300, %v313
      %v340 = vadd.f32 %v301, %v313
      %v341 = vadd.f32 %v302, %v313
      %v342 = vadd.f32 %v303, %v313
      %v343 = vadd.f32 %v304, %v313
      %v344 = vadd.f32 %v305, %v313
      %v345 = vadd.f32 %v306, %v313
      %v346 = vadd.f32 %v307, %v313
      %v347 = vmax.f32 %v315, 0.0
      %v348 = vmax.f32 %v316, 0.0
      %v349 = vmax.f32 %v317, 0.0
      %v350 = vmax.f32 %v318, 0.0
      %v351 = vmax.f32 %v319, 0.0
      %v352 = vmax.f32 %v320, 0.0
      %v353 = vmax.f32 %v321, 0.0
      %v354 = vmax.f32 %v322, 0.0
      %v355 = vmax.f32 %v323, 0.0
      %v356 = vmax.f32 %v324, 0.0
      %v357 = vmax.f32 %v325, 0.0
      %v358 = vmax.f32 %v326, 0.0
      %v359 = vmax.f32 %v327, 0.0
      %v360 = vmax.f32 %v328, 0.0
      %v361 = vmax.f32 %v329, 0.0
      %v362 = vmax.f32 %v330, 0.0
      %v363 = vmax.f32 %v331, 0.0
      %v364 = vmax.f32 %v332, 0.0
      %v365 = vmax.f32 %v333, 0.0
      %v366 = vmax.f32 %v334, 0.0
      %v367 = vmax.f32 %v335, 0.0
      %v368 = vmax.f32 %v336, 0.0
      %v369 = vmax.f32 %v337, 0.0
      %v370 = vmax.f32 %v338, 0.0
      %v371 = vmax.f32 %v339, 0.0
      %v372 = vmax.f32 %v340, 0.0
      %v373 = vmax.f32 %v341, 0.0
      %v374 = vmax.f32 %v342, 0.0
      %v375 = vmax.f32 %v343, 0.0
      %v376 = vmax.f32 %v344, 0.0
      %v377 = vmax.f32 %v345, 0.0
      %v378 = vmax.f32 %v346, 0.0
      %v379 = vpack.c.bf16 %v348, %v347
      %v380 = vpack.c.bf16 %v350, %v349
      %v381 = vpack.c.bf16 %v352, %v351
      %v382 = vpack.c.bf16 %v354, %v353
      %v383 = vpack.c.bf16 %v356, %v355
      %v384 = vpack.c.bf16 %v358, %v357
      %v385 = vpack.c.bf16 %v360, %v359
      %v386 = vpack.c.bf16 %v362, %v361
      %v387 = vpack.c.bf16 %v364, %v363
      %v388 = vpack.c.bf16 %v366, %v365
      %v389 = vpack.c.bf16 %v368, %v367
      %v390 = vpack.c.bf16 %v370, %v369
      %v391 = vpack.c.bf16 %v372, %v371
      %v392 = vpack.c.bf16 %v374, %v373
      %v393 = vpack.c.bf16 %v376, %v375
      %v394 = vpack.c.bf16 %v378, %v377
      %v396 = vshrl.u32 0, 16
      %v398 = vrot.slane %v396, 7
      %v399 = vshll.u32 0, 16
      %v401 = vor.u32 %v398, %v399
      %v403 = vshrl.u32 %v379, 16
      %v405 = vrot.slane %v403, 7
      %v406 = vshll.u32 %v379, 16
      %v408 = vor.u32 %v405, %v406
      %v410 = vshrl.u32 %v380, 16
      %v412 = vrot.slane %v410, 7
      %v413 = vshll.u32 %v380, 16
      %v415 = vor.u32 %v412, %v413
      %v417 = vshrl.u32 %v381, 16
      %v419 = vrot.slane %v417, 7
      %v420 = vshll.u32 %v381, 16
      %v422 = vor.u32 %v419, %v420
      %v424 = vshrl.u32 %v382, 16
      %v426 = vrot.slane %v424, 7
      %v427 = vshll.u32 %v382, 16
      %v429 = vor.u32 %v426, %v427
      %v431 = vshrl.u32 %v383, 16
      %v433 = vrot.slane %v431, 7
      %v434 = vshll.u32 %v383, 16
      %v436 = vor.u32 %v433, %v434
      %v438 = vshrl.u32 %v384, 16
      %v440 = vrot.slane %v438, 7
      %v441 = vshll.u32 %v384, 16
      %v443 = vor.u32 %v440, %v441
      %v445 = vshrl.u32 %v385, 16
      %v447 = vrot.slane %v445, 7
      %v448 = vshll.u32 %v385, 16
      %v450 = vor.u32 %v447, %v448
      %v452 = vshrl.u32 %v386, 16
      %v454 = vrot.slane %v452, 7
      %v455 = vshll.u32 %v386, 16
      %v457 = vor.u32 %v454, %v455
      %v459 = vshrl.u32 %v387, 16
      %v461 = vrot.slane %v459, 7
      %v462 = vshll.u32 %v387, 16
      %v464 = vor.u32 %v461, %v462
      %v466 = vshrl.u32 %v388, 16
      %v468 = vrot.slane %v466, 7
      %v469 = vshll.u32 %v388, 16
      %v471 = vor.u32 %v468, %v469
      %v473 = vshrl.u32 %v389, 16
      %v475 = vrot.slane %v473, 7
      %v476 = vshll.u32 %v389, 16
      %v478 = vor.u32 %v475, %v476
      %v480 = vshrl.u32 %v390, 16
      %v482 = vrot.slane %v480, 7
      %v483 = vshll.u32 %v390, 16
      %v485 = vor.u32 %v482, %v483
      %v487 = vshrl.u32 %v391, 16
      %v489 = vrot.slane %v487, 7
      %v490 = vshll.u32 %v391, 16
      %v492 = vor.u32 %v489, %v490
      %v494 = vshrl.u32 %v392, 16
      %v496 = vrot.slane %v494, 7
      %v497 = vshll.u32 %v392, 16
      %v499 = vor.u32 %v496, %v497
      %v501 = vshrl.u32 %v393, 16
      %v503 = vrot.slane %v501, 7
      %v504 = vshll.u32 %v393, 16
      %v506 = vor.u32 %v503, %v504
      %v508 = vshrl.u32 %v394, 16
      %v510 = vrot.slane %v508, 7
      %v511 = vshll.u32 %v394, 16
      %v513 = vor.u32 %v510, %v511
      %vm548 = vcmask 1040384
      %vm549 = vsmask.f32 256
      %vm550 = vmand %vm548, %vm549
      %v551 = vsel %vm550, 0, %v401
      %v552 = vsel %vm550, 0, %v408
      %v553 = vsel %vm550, 0, %v415
      %v554 = vsel %vm550, 0, %v422
      %v555 = vsel %vm550, 0, %v429
      %v556 = vsel %vm550, 0, %v436
      %v557 = vsel %vm550, 0, %v443
      %v558 = vsel %vm550, 0, %v450
      %v559 = vsel %vm550, 0, %v457
      %v560 = vsel %vm550, 0, %v464
      %v561 = vsel %vm550, 0, %v471
      %v562 = vsel %vm550, 0, %v478
      %v563 = vsel %vm550, 0, %v485
      %v564 = vsel %vm550, 0, %v492
      %v565 = vsel %vm550, 0, %v499
      %v566 = vsel %vm550, 0, %v506
      %v567 = vsel %vm550, 0, %v513
      %v568 = vsel %vm550, %v398, 0
      %v569 = vsel %vm550, %v405, 0
      %v570 = vsel %vm550, %v412, 0
      %v571 = vsel %vm550, %v419, 0
      %v572 = vsel %vm550, %v426, 0
      %v573 = vsel %vm550, %v433, 0
      %v574 = vsel %vm550, %v440, 0
      %v575 = vsel %vm550, %v447, 0
      %v576 = vsel %vm550, %v454, 0
      %v577 = vsel %vm550, %v461, 0
      %v578 = vsel %vm550, %v468, 0
      %v579 = vsel %vm550, %v475, 0
      %v580 = vsel %vm550, %v482, 0
      %v581 = vsel %vm550, %v489, 0
      %v582 = vsel %vm550, %v496, 0
      %v583 = vsel %vm550, %v503, 0
      %v584 = vsel %vm550, %v510, 0
      %vm585 = vsmask.f32 7424
      %v587 = vshrl.u32 %v551, 16
      %v589 = vshll.u32 %v551, 16
      %v591 = vrot.slane %v589, 1
      %v592 = vor.u32 %v587, %v591
      %v594 = vshll.u32 %v568, 16
      %v596 = vrot.slane %v594, 1
      %v597 = vsel %vm585, %v592, %v596
      %v599 = vshrl.u32 %v552, 16
      %v601 = vshll.u32 %v552, 16
      %v603 = vrot.slane %v601, 1
      %v604 = vor.u32 %v599, %v603
      %v606 = vshll.u32 %v569, 16
      %v608 = vrot.slane %v606, 1
      %v609 = vsel %vm585, %v604, %v608
      %v611 = vshrl.u32 %v553, 16
      %v613 = vshll.u32 %v553, 16
      %v615 = vrot.slane %v613, 1
      %v616 = vor.u32 %v611, %v615
      %v618 = vshll.u32 %v570, 16
      %v620 = vrot.slane %v618, 1
      %v621 = vsel %vm585, %v616, %v620
      %v623 = vshrl.u32 %v554, 16
      %v625 = vshll.u32 %v554, 16
      %v627 = vrot.slane %v625, 1
      %v628 = vor.u32 %v623, %v627
      %v630 = vshll.u32 %v571, 16
      %v632 = vrot.slane %v630, 1
      %v633 = vsel %vm585, %v628, %v632
      %v635 = vshrl.u32 %v555, 16
      %v637 = vshll.u32 %v555, 16
      %v639 = vrot.slane %v637, 1
      %v640 = vor.u32 %v635, %v639
      %v642 = vshll.u32 %v572, 16
      %v644 = vrot.slane %v642, 1
      %v645 = vsel %vm585, %v640, %v644
      %v647 = vshrl.u32 %v556, 16
      %v649 = vshll.u32 %v556, 16
      %v651 = vrot.slane %v649, 1
      %v652 = vor.u32 %v647, %v651
      %v654 = vshll.u32 %v573, 16
      %v656 = vrot.slane %v654, 1
      %v657 = vsel %vm585, %v652, %v656
      %v659 = vshrl.u32 %v557, 16
      %v661 = vshll.u32 %v557, 16
      %v663 = vrot.slane %v661, 1
      %v664 = vor.u32 %v659, %v663
      %v666 = vshll.u32 %v574, 16
      %v668 = vrot.slane %v666, 1
      %v669 = vsel %vm585, %v664, %v668
      %v671 = vshrl.u32 %v558, 16
      %v673 = vshll.u32 %v558, 16
      %v675 = vrot.slane %v673, 1
      %v676 = vor.u32 %v671, %v675
      %v678 = vshll.u32 %v575, 16
      %v680 = vrot.slane %v678, 1
      %v681 = vsel %vm585, %v676, %v680
      %v683 = vshrl.u32 %v559, 16
      %v685 = vshll.u32 %v559, 16
      %v687 = vrot.slane %v685, 1
      %v688 = vor.u32 %v683, %v687
      %v690 = vshll.u32 %v576, 16
      %v692 = vrot.slane %v690, 1
      %v693 = vsel %vm585, %v688, %v692
      %v695 = vshrl.u32 %v560, 16
      %v697 = vshll.u32 %v560, 16
      %v699 = vrot.slane %v697, 1
      %v700 = vor.u32 %v695, %v699
      %v702 = vshll.u32 %v577, 16
      %v704 = vrot.slane %v702, 1
      %v705 = vsel %vm585, %v700, %v704
      %v707 = vshrl.u32 %v561, 16
      %v709 = vshll.u32 %v561, 16
      %v711 = vrot.slane %v709, 1
      %v712 = vor.u32 %v707, %v711
      %v714 = vshll.u32 %v578, 16
      %v716 = vrot.slane %v714, 1
      %v717 = vsel %vm585, %v712, %v716
      %v719 = vshrl.u32 %v562, 16
      %v721 = vshll.u32 %v562, 16
      %v723 = vrot.slane %v721, 1
      %v724 = vor.u32 %v719, %v723
      %v726 = vshll.u32 %v579, 16
      %v728 = vrot.slane %v726, 1
      %v729 = vsel %vm585, %v724, %v728
      %v731 = vshrl.u32 %v563, 16
      %v733 = vshll.u32 %v563, 16
      %v735 = vrot.slane %v733, 1
      %v736 = vor.u32 %v731, %v735
      %v738 = vshll.u32 %v580, 16
      %v740 = vrot.slane %v738, 1
      %v741 = vsel %vm585, %v736, %v740
      %v743 = vshrl.u32 %v564, 16
      %v745 = vshll.u32 %v564, 16
      %v747 = vrot.slane %v745, 1
      %v748 = vor.u32 %v743, %v747
      %v750 = vshll.u32 %v581, 16
      %v752 = vrot.slane %v750, 1
      %v753 = vsel %vm585, %v748, %v752
      %v755 = vshrl.u32 %v565, 16
      %v757 = vshll.u32 %v565, 16
      %v759 = vrot.slane %v757, 1
      %v760 = vor.u32 %v755, %v759
      %v762 = vshll.u32 %v582, 16
      %v764 = vrot.slane %v762, 1
      %v765 = vsel %vm585, %v760, %v764
      %v767 = vshrl.u32 %v566, 16
      %v769 = vshll.u32 %v566, 16
      %v771 = vrot.slane %v769, 1
      %v772 = vor.u32 %v767, %v771
      %v774 = vshll.u32 %v583, 16
      %v776 = vrot.slane %v774, 1
      %v777 = vsel %vm585, %v772, %v776
      %vm826 = vcmask 1046528
      %v827 = vrot.slane %v551, 1
      %v828 = vrot.slane %v568, 1
      %v829 = vsel %vm826, %v827, %v828
      %v830 = vrot.slane %v552, 1
      %v831 = vrot.slane %v569, 1
      %v832 = vsel %vm826, %v830, %v831
      %v833 = vrot.slane %v553, 1
      %v834 = vrot.slane %v570, 1
      %v835 = vsel %vm826, %v833, %v834
      %v836 = vrot.slane %v554, 1
      %v837 = vrot.slane %v571, 1
      %v838 = vsel %vm826, %v836, %v837
      %v839 = vrot.slane %v555, 1
      %v840 = vrot.slane %v572, 1
      %v841 = vsel %vm826, %v839, %v840
      %v842 = vrot.slane %v556, 1
      %v843 = vrot.slane %v573, 1
      %v844 = vsel %vm826, %v842, %v843
      %v845 = vrot.slane %v557, 1
      %v846 = vrot.slane %v574, 1
      %v847 = vsel %vm826, %v845, %v846
      %v848 = vrot.slane %v558, 1
      %v849 = vrot.slane %v575, 1
      %v850 = vsel %vm826, %v848, %v849
      %v851 = vrot.slane %v559, 1
      %v852 = vrot.slane %v576, 1
      %v853 = vsel %vm826, %v851, %v852
      %v854 = vrot.slane %v560, 1
      %v855 = vrot.slane %v577, 1
      %v856 = vsel %vm826, %v854, %v855
      %v857 = vrot.slane %v561, 1
      %v858 = vrot.slane %v578, 1
      %v859 = vsel %vm826, %v857, %v858
      %v860 = vrot.slane %v562, 1
      %v861 = vrot.slane %v579, 1
      %v862 = vsel %vm826, %v860, %v861
      %v863 = vrot.slane %v563, 1
      %v864 = vrot.slane %v580, 1
      %v865 = vsel %vm826, %v863, %v864
      %v866 = vrot.slane %v564, 1
      %v867 = vrot.slane %v581, 1
      %v868 = vsel %vm826, %v866, %v867
      %v869 = vrot.slane %v565, 1
      %v870 = vrot.slane %v582, 1
      %v871 = vsel %vm826, %v869, %v870
      %v872 = vrot.slane %v566, 1
      %v873 = vrot.slane %v583, 1
      %v874 = vsel %vm826, %v872, %v873
      %v892 = vshrl.u32 %v567, 16
      %v894 = vshll.u32 %v567, 16
      %v896 = vrot.slane %v894, 1
      %v897 = vor.u32 %v892, %v896
      %v899 = vshll.u32 %v584, 16
      %v901 = vrot.slane %v899, 1
      %v902 = vsel %vm585, %v897, %v901
      %v906 = vrot.slane %v567, 1
      %v907 = vrot.slane %v584, 1
      %v908 = vsel %vm826, %v906, %v907
      %v910 = vld [vmem:[%s3] sm:$0xf]
      %v911 = vld [vmem:[%s3 + $0x4] sm:$0xf]
      %v912 = vld [vmem:[%s3 + $0x8] sm:$0xf]
      %v913 = vld [vmem:[%s3 + $0xc] sm:$0xf]
      %v914 = vld [vmem:[%s3 + $0x10] sm:$0xf]
      %v915 = vld [vmem:[%s3 + $0x14] sm:$0xf]
      %v916 = vld [vmem:[%s3 + $0x18] sm:$0xf]
      %v917 = vld [vmem:[%s3 + $0x1c] sm:$0xf]
      %v918 = vld [vmem:[%s3 + $0x20] sm:$0xf]
      %v919 = vld [vmem:[%s3 + $0x24] sm:$0xf]
      %v920 = vld [vmem:[%s3 + $0x28] sm:$0xf]
      %v921 = vld [vmem:[%s3 + $0x2c] sm:$0xf]
      %v922 = vld [vmem:[%s3 + $0x30] sm:$0xf]
      %v923 = vld [vmem:[%s3 + $0x34] sm:$0xf]
      %v924 = vld [vmem:[%s3 + $0x38] sm:$0xf]
      %v925 = vld [vmem:[%s3 + $0x3c] sm:$0xf]
      %v926 = vld [vmem:[%s3 + $0x40] sm:$0xf]
      %v927 = vld [vmem:[%s3 + $0x44] sm:$0xf]
      %v928 = vld [vmem:[%s3 + $0x48] sm:$0xf]
      %v929 = vld [vmem:[%s3 + $0x4c] sm:$0xf]
      %v930 = vld [vmem:[%s3 + $0x50] sm:$0xf]
      %v931 = vld [vmem:[%s3 + $0x54] sm:$0xf]
      %v932 = vld [vmem:[%s3 + $0x58] sm:$0xf]
      %v933 = vld [vmem:[%s3 + $0x5c] sm:$0xf]
      %v934 = vld [vmem:[%s3 + $0x60] sm:$0xf]
      %v935 = vld [vmem:[%s3 + $0x64] sm:$0xf]
      %v936 = vld [vmem:[%s3 + $0x68] sm:$0xf]
      %v937 = vld [vmem:[%s3 + $0x6c] sm:$0xf]
      %v938 = vld [vmem:[%s3 + $0x70] sm:$0xf]
      %v939 = vld [vmem:[%s3 + $0x74] sm:$0xf]
      %v940 = vld [vmem:[%s3 + $0x78] sm:$0xf]
      %v941 = vld [vmem:[%s3 + $0x7c] sm:$0xf]
      %v942 = vld [vmem:[%s3 + $0x80] sm:$0xf]
      %v943 = vld [vmem:[%s3 + $0x84] sm:$0xf]
      %v944 = vld [vmem:[%s3 + $0x88] sm:$0xf]
      %v945 = vld [vmem:[%s3 + $0x8c] sm:$0xf]
      %v946 = vld [vmem:[%s3 + $0x90] sm:$0xf]
      %v947 = vld [vmem:[%s3 + $0x94] sm:$0xf]
      %v948 = vld [vmem:[%s3 + $0x98] sm:$0xf]
      %v949 = vld [vmem:[%s3 + $0x9c] sm:$0xf]
      %v950 = vld [vmem:[%s3 + $0xa0] sm:$0xf]
      %v951 = vld [vmem:[%s3 + $0xa4] sm:$0xf]
      %v952 = vld [vmem:[%s3 + $0xa8] sm:$0xf]
      %v953 = vld [vmem:[%s3 + $0xac] sm:$0xf]
      %v954 = vld [vmem:[%s3 + $0xb0] sm:$0xf]
      %v955 = vld [vmem:[%s3 + $0xb4] sm:$0xf]
      %v956 = vld [vmem:[%s3 + $0xb8] sm:$0xf]
      %v957 = vld [vmem:[%s3 + $0xbc] sm:$0xf]
      %v958 = vld [vmem:[%s3 + $0xc0] sm:$0xf]
      %v959 = vld [vmem:[%s3 + $0xc4] sm:$0xf]
      %v960 = vld [vmem:[%s3 + $0xc8] sm:$0xf]
      %v961 = vld [vmem:[%s3 + $0xcc] sm:$0xf]
      %v962 = vld [vmem:[%s3 + $0xd0] sm:$0xf]
      %v963 = vld [vmem:[%s3 + $0xd4] sm:$0xf]
      %v964 = vld [vmem:[%s3 + $0xd8] sm:$0xf]
      %v965 = vld [vmem:[%s3 + $0xdc] sm:$0xf]
      %v966 = vld [vmem:[%s3 + $0xe0] sm:$0xf]
      %v967 = vld [vmem:[%s3 + $0xe4] sm:$0xf]
      %v968 = vld [vmem:[%s3 + $0xe8] sm:$0xf]
      %v969 = vld [vmem:[%s3 + $0xec] sm:$0xf]
      %v970 = vld [vmem:[%s3 + $0xf0] sm:$0xf]
      %v971 = vld [vmem:[%s3 + $0xf4] sm:$0xf]
      %v972 = vld [vmem:[%s3 + $0xf8] sm:$0xf]
      %v973 = vld [vmem:[%s3 + $0xfc] sm:$0xf]
      %v974 = vld [vmem:[%s3 + $0x100] sm:$0xf]
      %v975 = vld [vmem:[%s3 + $0x104] sm:$0xf]
      %v976 = vld [vmem:[%s3 + $0x108] sm:$0xf]
      %v977 = vld [vmem:[%s3 + $0x10c] sm:$0xf]
      %v978 = vld [vmem:[%s3 + $0x110] sm:$0xf]
      %v979 = vld [vmem:[%s3 + $0x114] sm:$0xf]
      %v980 = vld [vmem:[%s3 + $0x118] sm:$0xf]
      %v981 = vld [vmem:[%s3 + $0x11c] sm:$0xf]
      %v982 = vld [vmem:[%s3 + $0x120] sm:$0xf]
      %v983 = vld [vmem:[%s3 + $0x124] sm:$0xf]
      %v984 = vld [vmem:[%s3 + $0x128] sm:$0xf]
      %v985 = vld [vmem:[%s3 + $0x12c] sm:$0xf]
      %v986 = vld [vmem:[%s3 + $0x130] sm:$0xf]
      %v987 = vld [vmem:[%s3 + $0x134] sm:$0xf]
      %v988 = vld [vmem:[%s3 + $0x138] sm:$0xf]
      %v989 = vld [vmem:[%s3 + $0x13c] sm:$0xf]
      %v990 = vld [vmem:[%s3 + $0x140] sm:$0xf]
      %v991 = vld [vmem:[%s3 + $0x144] sm:$0xf]
      %v992 = vld [vmem:[%s3 + $0x148] sm:$0xf]
      %v993 = vld [vmem:[%s3 + $0x14c] sm:$0xf]
      %v994 = vld [vmem:[%s3 + $0x150] sm:$0xf]
      %v995 = vld [vmem:[%s3 + $0x154] sm:$0xf]
      %v996 = vld [vmem:[%s3 + $0x158] sm:$0xf]
      %v997 = vld [vmem:[%s3 + $0x15c] sm:$0xf]
      %v998 = vld [vmem:[%s3 + $0x160] sm:$0xf]
      %v999 = vld [vmem:[%s3 + $0x164] sm:$0xf]
      %v1000 = vld [vmem:[%s3 + $0x168] sm:$0xf]
      %v1001 = vld [vmem:[%s3 + $0x16c] sm:$0xf]
      %v1002 = vld [vmem:[%s3 + $0x170] sm:$0xf]
      %v1003 = vld [vmem:[%s3 + $0x174] sm:$0xf]
      %v1004 = vld [vmem:[%s3 + $0x178] sm:$0xf]
      %v1005 = vld [vmem:[%s3 + $0x17c] sm:$0xf]
      %v1006 = vld [vmem:[%s3 + $0x180] sm:$0xf]
      %v1007 = vld [vmem:[%s3 + $0x184] sm:$0xf]
      %v1008 = vld [vmem:[%s3 + $0x188] sm:$0xf]
      %v1009 = vld [vmem:[%s3 + $0x18c] sm:$0xf]
      %v1010 = vld [vmem:[%s3 + $0x190] sm:$0xf]
      %v1011 = vld [vmem:[%s3 + $0x194] sm:$0xf]
      %v1012 = vld [vmem:[%s3 + $0x198] sm:$0xf]
      %v1013 = vld [vmem:[%s3 + $0x19c] sm:$0xf]
      %v1014 = vld [vmem:[%s3 + $0x1a0] sm:$0xf]
      %v1015 = vld [vmem:[%s3 + $0x1a4] sm:$0xf]
      %v1016 = vld [vmem:[%s3 + $0x1a8] sm:$0xf]
      %v1017 = vld [vmem:[%s3 + $0x1ac] sm:$0xf]
      %v1018 = vld [vmem:[%s3 + $0x1b0] sm:$0xf]
      %v1019 = vld [vmem:[%s3 + $0x1b4] sm:$0xf]
      %v1020 = vld [vmem:[%s3 + $0x1b8] sm:$0xf]
      %v1021 = vld [vmem:[%s3 + $0x1bc] sm:$0xf]
      %v1022 = vld [vmem:[%s3 + $0x1c0] sm:$0xf]
      %v1023 = vld [vmem:[%s3 + $0x1c4] sm:$0xf]
      %v1024 = vld [vmem:[%s3 + $0x1c8] sm:$0xf]
      %v1025 = vld [vmem:[%s3 + $0x1cc] sm:$0xf]
      %v1026 = vld [vmem:[%s3 + $0x1d0] sm:$0xf]
      %v1027 = vld [vmem:[%s3 + $0x1d4] sm:$0xf]
      %v1028 = vld [vmem:[%s3 + $0x1d8] sm:$0xf]
      %v1029 = vld [vmem:[%s3 + $0x1dc] sm:$0xf]
      %v1030 = vld [vmem:[%s3 + $0x1e0] sm:$0xf]
      %v1031 = vld [vmem:[%s3 + $0x1e4] sm:$0xf]
      %v1032 = vld [vmem:[%s3 + $0x1e8] sm:$0xf]
      %v1033 = vld [vmem:[%s3 + $0x1ec] sm:$0xf]
      %v1034 = vld [vmem:[%s3 + $0x1f0] sm:$0xf]
      %v1035 = vld [vmem:[%s3 + $0x1f4] sm:$0xf]
      %v1036 = vld [vmem:[%s3 + $0x1f8] sm:$0xf]
      %v1037 = vld [vmem:[%s3 + $0x1fc] sm:$0xf]
      %v1038 = vld [vmem:[%s3 + $0x200] sm:$0xf]
      %v1039 = vld [vmem:[%s3 + $0x204] sm:$0xf]
      %v1040 = vld [vmem:[%s3 + $0x208] sm:$0xf]
      %v1041 = vld [vmem:[%s3 + $0x20c] sm:$0xf]
      %v1042 = vld [vmem:[%s3 + $0x210] sm:$0xf]
      %v1043 = vld [vmem:[%s3 + $0x214] sm:$0xf]
      %v1044 = vld [vmem:[%s3 + $0x218] sm:$0xf]
      %v1045 = vld [vmem:[%s3 + $0x21c] sm:$0xf]
      %v1046 = vld [vmem:[%s3 + $0x220] sm:$0xf]
      %v1047 = vld [vmem:[%s3 + $0x224] sm:$0xf]
      %v1048 = vld [vmem:[%s3 + $0x228] sm:$0xf]
      %v1049 = vld [vmem:[%s3 + $0x22c] sm:$0xf]
      %v1050 = vld [vmem:[%s3 + $0x230] sm:$0xf]
      %v1051 = vld [vmem:[%s3 + $0x234] sm:$0xf]
      %v1052 = vld [vmem:[%s3 + $0x238] sm:$0xf]
      %v1053 = vld [vmem:[%s3 + $0x23c] sm:$0xf]
      %v1198 = vunpack.c.l.b16 %v910
      %v1199 = vunpack.c.l.b16 %v911
      %v1200 = vunpack.c.l.b16 %v912
      %v1201 = vunpack.c.l.b16 %v913
      %v1202 = vunpack.c.l.b16 %v914
      %v1203 = vunpack.c.l.b16 %v915
      %v1204 = vunpack.c.l.b16 %v916
      %v1205 = vunpack.c.l.b16 %v917
      %v1206 = vunpack.c.l.b16 %v918
      %v1207 = vunpack.c.l.b16 %v919
      %v1208 = vunpack.c.l.b16 %v920
      %v1209 = vunpack.c.l.b16 %v921
      %v1210 = vunpack.c.l.b16 %v922
      %v1211 = vunpack.c.l.b16 %v923
      %v1212 = vunpack.c.l.b16 %v924
      %v1213 = vunpack.c.l.b16 %v925
      %v1214 = vunpack.c.l.b16 %v926
      %v1215 = vunpack.c.l.b16 %v927
      %v1216 = vunpack.c.l.b16 %v928
      %v1217 = vunpack.c.l.b16 %v929
      %v1218 = vunpack.c.l.b16 %v930
      %v1219 = vunpack.c.l.b16 %v931
      %v1220 = vunpack.c.l.b16 %v932
      %v1221 = vunpack.c.l.b16 %v933
      %v1222 = vunpack.c.l.b16 %v934
      %v1223 = vunpack.c.l.b16 %v935
      %v1224 = vunpack.c.l.b16 %v936
      %v1225 = vunpack.c.l.b16 %v937
      %v1226 = vunpack.c.l.b16 %v938
      %v1227 = vunpack.c.l.b16 %v939
      %v1228 = vunpack.c.l.b16 %v940
      %v1229 = vunpack.c.l.b16 %v941
      %v1230 = vunpack.c.l.b16 %v942
      %v1231 = vunpack.c.l.b16 %v943
      %v1232 = vunpack.c.l.b16 %v944
      %v1233 = vunpack.c.l.b16 %v945
      %v1234 = vunpack.c.l.b16 %v946
      %v1235 = vunpack.c.l.b16 %v947
      %v1236 = vunpack.c.l.b16 %v948
      %v1237 = vunpack.c.l.b16 %v949
      %v1238 = vunpack.c.l.b16 %v950
      %v1239 = vunpack.c.l.b16 %v951
      %v1240 = vunpack.c.l.b16 %v952
      %v1241 = vunpack.c.l.b16 %v953
      %v1242 = vunpack.c.l.b16 %v954
      %v1243 = vunpack.c.l.b16 %v955
      %v1244 = vunpack.c.l.b16 %v956
      %v1245 = vunpack.c.l.b16 %v957
      %v1246 = vunpack.c.l.b16 %v958
      %v1247 = vunpack.c.l.b16 %v959
      %v1248 = vunpack.c.l.b16 %v960
      %v1249 = vunpack.c.l.b16 %v961
      %v1250 = vunpack.c.l.b16 %v962
      %v1251 = vunpack.c.l.b16 %v963
      %v1252 = vunpack.c.l.b16 %v964
      %v1253 = vunpack.c.l.b16 %v965
      %v1254 = vunpack.c.l.b16 %v966
      %v1255 = vunpack.c.l.b16 %v967
      %v1256 = vunpack.c.l.b16 %v968
      %v1257 = vunpack.c.l.b16 %v969
      %v1258 = vunpack.c.l.b16 %v970
      %v1259 = vunpack.c.l.b16 %v971
      %v1260 = vunpack.c.l.b16 %v972
      %v1261 = vunpack.c.l.b16 %v973
      %v1262 = vunpack.c.l.b16 %v974
      %v1263 = vunpack.c.l.b16 %v975
      %v1264 = vunpack.c.l.b16 %v976
      %v1265 = vunpack.c.l.b16 %v977
      %v1266 = vunpack.c.l.b16 %v978
      %v1267 = vunpack.c.l.b16 %v979
      %v1268 = vunpack.c.l.b16 %v980
      %v1269 = vunpack.c.l.b16 %v981
      %v1270 = vunpack.c.l.b16 %v982
      %v1271 = vunpack.c.l.b16 %v983
      %v1272 = vunpack.c.l.b16 %v984
      %v1273 = vunpack.c.l.b16 %v985
      %v1274 = vunpack.c.l.b16 %v986
      %v1275 = vunpack.c.l.b16 %v987
      %v1276 = vunpack.c.l.b16 %v988
      %v1277 = vunpack.c.l.b16 %v989
      %v1278 = vunpack.c.l.b16 %v990
      %v1279 = vunpack.c.l.b16 %v991
      %v1280 = vunpack.c.l.b16 %v992
      %v1281 = vunpack.c.l.b16 %v993
      %v1282 = vunpack.c.l.b16 %v994
      %v1283 = vunpack.c.l.b16 %v995
      %v1284 = vunpack.c.l.b16 %v996
      %v1285 = vunpack.c.l.b16 %v997
      %v1286 = vunpack.c.l.b16 %v998
      %v1287 = vunpack.c.l.b16 %v999
      %v1288 = vunpack.c.l.b16 %v1000
      %v1289 = vunpack.c.l.b16 %v1001
      %v1290 = vunpack.c.l.b16 %v1002
      %v1291 = vunpack.c.l.b16 %v1003
      %v1292 = vunpack.c.l.b16 %v1004
      %v1293 = vunpack.c.l.b16 %v1005
      %v1294 = vunpack.c.l.b16 %v1006
      %v1295 = vunpack.c.l.b16 %v1007
      %v1296 = vunpack.c.l.b16 %v1008
      %v1297 = vunpack.c.l.b16 %v1009
      %v1298 = vunpack.c.l.b16 %v1010
      %v1299 = vunpack.c.l.b16 %v1011
      %v1300 = vunpack.c.l.b16 %v1012
      %v1301 = vunpack.c.l.b16 %v1013
      %v1302 = vunpack.c.l.b16 %v1014
      %v1303 = vunpack.c.l.b16 %v1015
      %v1304 = vunpack.c.l.b16 %v1016
      %v1305 = vunpack.c.l.b16 %v1017
      %v1306 = vunpack.c.l.b16 %v1018
      %v1307 = vunpack.c.l.b16 %v1019
      %v1308 = vunpack.c.l.b16 %v1020
      %v1309 = vunpack.c.l.b16 %v1021
      %v1310 = vunpack.c.l.b16 %v1022
      %v1311 = vunpack.c.l.b16 %v1023
      %v1312 = vunpack.c.l.b16 %v1024
      %v1313 = vunpack.c.l.b16 %v1025
      %v1314 = vunpack.c.l.b16 %v1026
      %v1315 = vunpack.c.l.b16 %v1027
      %v1316 = vunpack.c.l.b16 %v1028
      %v1317 = vunpack.c.l.b16 %v1029
      %v1318 = vunpack.c.l.b16 %v1030
      %v1319 = vunpack.c.l.b16 %v1031
      %v1320 = vunpack.c.l.b16 %v1032
      %v1321 = vunpack.c.l.b16 %v1033
      %v1322 = vunpack.c.l.b16 %v1034
      %v1323 = vunpack.c.l.b16 %v1035
      %v1324 = vunpack.c.l.b16 %v1036
      %v1325 = vunpack.c.l.b16 %v1037
      %v1326 = vunpack.c.l.b16 %v1038
      %v1327 = vunpack.c.l.b16 %v1039
      %v1328 = vunpack.c.l.b16 %v1040
      %v1329 = vunpack.c.l.b16 %v1041
      %v1330 = vunpack.c.l.b16 %v1042
      %v1331 = vunpack.c.l.b16 %v1043
      %v1332 = vunpack.c.l.b16 %v1044
      %v1333 = vunpack.c.l.b16 %v1045
      %v1334 = vunpack.c.l.b16 %v1046
      %v1335 = vunpack.c.l.b16 %v1047
      %v1336 = vunpack.c.l.b16 %v1048
      %v1337 = vunpack.c.l.b16 %v1049
      %v1338 = vunpack.c.l.b16 %v1050
      %v1339 = vunpack.c.l.b16 %v1051
      %v1340 = vunpack.c.l.b16 %v1052
      %v1341 = vunpack.c.l.b16 %v1053
      %v1342 = vpack.c.b16 %v1199, %v1198
      %v1343 = vpack.c.b16 %v1201, %v1200
      %v1344 = vpack.c.b16 %v1203, %v1202
      %v1345 = vpack.c.b16 %v1205, %v1204
      %v1346 = vpack.c.b16 %v1207, %v1206
      %v1347 = vpack.c.b16 %v1209, %v1208
      %v1348 = vpack.c.b16 %v1211, %v1210
      %v1349 = vpack.c.b16 %v1213, %v1212
      %v1350 = vpack.c.b16 %v1215, %v1214
      %v1351 = vpack.c.b16 %v1217, %v1216
      %v1352 = vpack.c.b16 %v1219, %v1218
      %v1353 = vpack.c.b16 %v1221, %v1220
      %v1354 = vpack.c.b16 %v1223, %v1222
      %v1355 = vpack.c.b16 %v1225, %v1224
      %v1356 = vpack.c.b16 %v1227, %v1226
      %v1357 = vpack.c.b16 %v1229, %v1228
      %v1358 = vpack.c.b16 %v1231, %v1230
      %v1359 = vpack.c.b16 %v1233, %v1232
      %v1360 = vpack.c.b16 %v1235, %v1234
      %v1361 = vpack.c.b16 %v1237, %v1236
      %v1362 = vpack.c.b16 %v1239, %v1238
      %v1363 = vpack.c.b16 %v1241, %v1240
      %v1364 = vpack.c.b16 %v1243, %v1242
      %v1365 = vpack.c.b16 %v1245, %v1244
      %v1366 = vpack.c.b16 %v1247, %v1246
      %v1367 = vpack.c.b16 %v1249, %v1248
      %v1368 = vpack.c.b16 %v1251, %v1250
      %v1369 = vpack.c.b16 %v1253, %v1252
      %v1370 = vpack.c.b16 %v1255, %v1254
      %v1371 = vpack.c.b16 %v1257, %v1256
      %v1372 = vpack.c.b16 %v1259, %v1258
      %v1373 = vpack.c.b16 %v1261, %v1260
      %v1374 = vpack.c.b16 %v1263, %v1262
      %v1375 = vpack.c.b16 %v1265, %v1264
      %v1376 = vpack.c.b16 %v1267, %v1266
      %v1377 = vpack.c.b16 %v1269, %v1268
      %v1378 = vpack.c.b16 %v1271, %v1270
      %v1379 = vpack.c.b16 %v1273, %v1272
      %v1380 = vpack.c.b16 %v1275, %v1274
      %v1381 = vpack.c.b16 %v1277, %v1276
      %v1382 = vpack.c.b16 %v1279, %v1278
      %v1383 = vpack.c.b16 %v1281, %v1280
      %v1384 = vpack.c.b16 %v1283, %v1282
      %v1385 = vpack.c.b16 %v1285, %v1284
      %v1386 = vpack.c.b16 %v1287, %v1286
      %v1387 = vpack.c.b16 %v1289, %v1288
      %v1388 = vpack.c.b16 %v1291, %v1290
      %v1389 = vpack.c.b16 %v1293, %v1292
      %v1390 = vpack.c.b16 %v1295, %v1294
      %v1391 = vpack.c.b16 %v1297, %v1296
      %v1392 = vpack.c.b16 %v1299, %v1298
      %v1393 = vpack.c.b16 %v1301, %v1300
      %v1394 = vpack.c.b16 %v1303, %v1302
      %v1395 = vpack.c.b16 %v1305, %v1304
      %v1396 = vpack.c.b16 %v1307, %v1306
      %v1397 = vpack.c.b16 %v1309, %v1308
      %v1398 = vpack.c.b16 %v1311, %v1310
      %v1399 = vpack.c.b16 %v1313, %v1312
      %v1400 = vpack.c.b16 %v1315, %v1314
      %v1401 = vpack.c.b16 %v1317, %v1316
      %v1402 = vpack.c.b16 %v1319, %v1318
      %v1403 = vpack.c.b16 %v1321, %v1320
      %v1404 = vpack.c.b16 %v1323, %v1322
      %v1405 = vpack.c.b16 %v1325, %v1324
      %v1406 = vpack.c.b16 %v1327, %v1326
      %v1407 = vpack.c.b16 %v1329, %v1328
      %v1408 = vpack.c.b16 %v1331, %v1330
      %v1409 = vpack.c.b16 %v1333, %v1332
      %v1410 = vpack.c.b16 %v1335, %v1334
      %v1411 = vpack.c.b16 %v1337, %v1336
      %v1412 = vpack.c.b16 %v1339, %v1338
      %v1413 = vpack.c.b16 %v1341, %v1340
      %1486 = vmatprep.subr.bf16.mxu0 0
      %1487 = vmatpush1.bf16.msra.mxu0 %v1342
      %1488 = vmatprep.subr.bf16.mxu0 0
      %1489 = vmatpush1.bf16.msra.mxu0 %v1343
      %1490 = vmatprep.subr.bf16.mxu0 0
      %1491 = vmatpush1.bf16.msra.mxu0 %v1344
      %1492 = vmatprep.subr.bf16.mxu0 0
      %1493 = vmatpush1.bf16.msra.mxu0 %v1345
      %1494 = vmatprep.subr.bf16.mxu0 0
      %1495 = vmatpush1.bf16.msra.mxu0 %v1346
      %1496 = vmatprep.subr.bf16.mxu0 0
      %1497 = vmatpush1.bf16.msra.mxu0 %v1347
      %1498 = vmatprep.subr.bf16.mxu0 0
      %1499 = vmatpush1.bf16.msra.mxu0 %v1348
      %1500 = vmatprep.subr.bf16.mxu0 0
      %1501 = vmatpush1.bf16.msra.mxu0 %v1349
      %1502 = vmatprep.subr.bf16.mxu0 0
      %1503 = vmatpush1.bf16.msra.mxu0 %v1350
      %1504 = vmatprep.subr.bf16.mxu0 0
      %1505 = vmatpush1.bf16.msra.mxu0 %v1351
      %1506 = vmatprep.subr.bf16.mxu0 0
      %1507 = vmatpush1.bf16.msra.mxu0 %v1352
      %1508 = vmatprep.subr.bf16.mxu0 0
      %1509 = vmatpush1.bf16.msra.mxu0 %v1353
      %1510 = vmatprep.subr.bf16.mxu0 0
      %1511 = vmatpush1.bf16.msra.mxu0 %v1354
      %1512 = vmatprep.subr.bf16.mxu0 0
      %1513 = vmatpush1.bf16.msra.mxu0 %v1355
      %1514 = vmatprep.subr.bf16.mxu0 0
      %1515 = vmatpush1.bf16.msra.mxu0 %v1356
      %1516 = vmatprep.subr.bf16.mxu0 0
      %1517 = vmatpush1.bf16.msra.mxu0 %v1357
      %1518 = vmatprep.mubr.bf16.mxu0 %v597
      %1519 = vmatmul.mubr.bf16.gmra.mrb[0].mxu0 %v551
      %v1520 = vpop.f32.mrb[0].mxu0
      %v1521 = vadd.f32 0.0, %v1520
      %v1522 = vpop.f32.mrb[0].mxu0
      %v1523 = vpop.f32.mrb[0].mxu0
      %v1524 = vadd.f32 0.0, %v1523
      %v1525 = vpop.f32.mrb[0].mxu0
      %1526 = vmatprep.mubr.bf16.mxu0 %v609
      %1527 = vmatmul.mubr.bf16.gmra.mrb[0].mxu0 %v552
      %v1528 = vpop.f32.mrb[0].mxu0
      %v1529 = vadd.f32 0.0, %v1528
      %v1530 = vpop.f32.mrb[0].mxu0
      %v1531 = vpop.f32.mrb[0].mxu0
      %v1532 = vadd.f32 0.0, %v1531
      %v1533 = vpop.f32.mrb[0].mxu0
      %1534 = vmatprep.mubr.bf16.mxu0 %v621
      %1535 = vmatmul.mubr.bf16.gmra.mrb[0].mxu0 %v553
      %v1536 = vpop.f32.mrb[0].mxu0
      %v1537 = vadd.f32 0.0, %v1536
      %v1538 = vpop.f32.mrb[0].mxu0
      %v1539 = vpop.f32.mrb[0].mxu0
      %v1540 = vadd.f32 0.0, %v1539
      %v1541 = vpop.f32.mrb[0].mxu0
      %1542 = vmatprep.mubr.bf16.mxu0 %v633
      %1543 = vmatmul.mubr.bf16.gmra.mrb[0].mxu0 %v554
      %v1544 = vpop.f32.mrb[0].mxu0
      %v1545 = vadd.f32 0.0, %v1544
      %v1546 = vpop.f32.mrb[0].mxu0
      %v1547 = vpop.f32.mrb[0].mxu0
      %v1548 = vadd.f32 0.0, %v1547
      %v1549 = vpop.f32.mrb[0].mxu0
      %1550 = vmatprep.mubr.bf16.mxu0 %v645
      %1551 = vmatmul.mubr.bf16.gmra.mrb[0].mxu0 %v555
      %v1552 = vpop.f32.mrb[0].mxu0
      %v1553 = vadd.f32 0.0, %v1552
      %v1554 = vpop.f32.mrb[0].mxu0
      %v1555 = vpop.f32.mrb[0].mxu0
      %v1556 = vadd.f32 0.0, %v1555
      %v1557 = vpop.f32.mrb[0].mxu0
      %1558 = vmatprep.mubr.bf16.mxu0 %v657
      %1559 = vmatmul.mubr.bf16.gmra.mrb[0].mxu0 %v556
      %v1560 = vpop.f32.mrb[0].mxu0
      %v1561 = vadd.f32 0.0, %v1560
      %v1562 = vpop.f32.mrb[0].mxu0
      %v1563 = vpop.f32.mrb[0].mxu0
      %v1564 = vadd.f32 0.0, %v1563
      %v1565 = vpop.f32.mrb[0].mxu0
      %1566 = vmatprep.mubr.bf16.mxu0 %v669
      %1567 = vmatmul.mubr.bf16.gmra.mrb[0].mxu0 %v557
      %v1568 = vpop.f32.mrb[0].mxu0
      %v1569 = vadd.f32 0.0, %v1568
      %v1570 = vpop.f32.mrb[0].mxu0
      %v1571 = vpop.f32.mrb[0].mxu0
      %v1572 = vadd.f32 0.0, %v1571
      %v1573 = vpop.f32.mrb[0].mxu0
      %1574 = vmatprep.mubr.bf16.mxu0 %v681
      %1575 = vmatmul.mubr.bf16.gmra.mrb[0].mxu0 %v558
      %v1576 = vpop.f32.mrb[0].mxu0
      %v1577 = vadd.f32 0.0, %v1576
      %v1578 = vpop.f32.mrb[0].mxu0
      %v1579 = vpop.f32.mrb[0].mxu0
      %v1580 = vadd.f32 0.0, %v1579
      %v1581 = vpop.f32.mrb[0].mxu0
      %1582 = vmatprep.mubr.bf16.mxu0 %v693
      %1583 = vmatmul.mubr.bf16.gmra.mrb[0].mxu0 %v559
      %v1584 = vpop.f32.mrb[0].mxu0
      %v1585 = vadd.f32 0.0, %v1584
      %v1586 = vpop.f32.mrb[0].mxu0
      %v1587 = vpop.f32.mrb[0].mxu0
      %v1588 = vadd.f32 0.0, %v1587
      %v1589 = vpop.f32.mrb[0].mxu0
      %1590 = vmatprep.mubr.bf16.mxu0 %v705
      %1591 = vmatmul.mubr.bf16.gmra.mrb[0].mxu0 %v560
      %v1592 = vpop.f32.mrb[0].mxu0
      %v1593 = vadd.f32 0.0, %v1592
      %v1594 = vpop.f32.mrb[0].mxu0
      %v1595 = vpop.f32.mrb[0].mxu0
      %v1596 = vadd.f32 0.0, %v1595
      %v1597 = vpop.f32.mrb[0].mxu0
      %1598 = vmatprep.mubr.bf16.mxu0 %v717
      %1599 = vmatmul.mubr.bf16.gmra.mrb[0].mxu0 %v561
      %v1600 = vpop.f32.mrb[0].mxu0
      %v1601 = vadd.f32 0.0, %v1600
      %v1602 = vpop.f32.mrb[0].mxu0
      %v1603 = vpop.f32.mrb[0].mxu0
      %v1604 = vadd.f32 0.0, %v1603
      %v1605 = vpop.f32.mrb[0].mxu0
      %1606 = vmatprep.mubr.bf16.mxu0 %v729
      %1607 = vmatmul.mubr.bf16.gmra.mrb[0].mxu0 %v562
      %v1608 = vpop.f32.mrb[0].mxu0
      %v1609 = vadd.f32 0.0, %v1608
      %v1610 = vpop.f32.mrb[0].mxu0
      %v1611 = vpop.f32.mrb[0].mxu0
      %v1612 = vadd.f32 0.0, %v1611
      %v1613 = vpop.f32.mrb[0].mxu0
      %1614 = vmatprep.mubr.bf16.mxu0 %v741
      %1615 = vmatmul.mubr.bf16.gmra.mrb[0].mxu0 %v563
      %v1616 = vpop.f32.mrb[0].mxu0
      %v1617 = vadd.f32 0.0, %v1616
      %v1618 = vpop.f32.mrb[0].mxu0
      %v1619 = vpop.f32.mrb[0].mxu0
      %v1620 = vadd.f32 0.0, %v1619
      %v1621 = vpop.f32.mrb[0].mxu0
      %1622 = vmatprep.mubr.bf16.mxu0 %v753
      %1623 = vmatmul.mubr.bf16.gmra.mrb[0].mxu0 %v564
      %v1624 = vpop.f32.mrb[0].mxu0
      %v1625 = vadd.f32 0.0, %v1624
      %v1626 = vpop.f32.mrb[0].mxu0
      %v1627 = vpop.f32.mrb[0].mxu0
      %v1628 = vadd.f32 0.0, %v1627
      %v1629 = vpop.f32.mrb[0].mxu0
      %1630 = vmatprep.mubr.bf16.mxu0 %v765
      %1631 = vmatmul.mubr.bf16.gmra.mrb[0].mxu0 %v565
      %v1632 = vpop.f32.mrb[0].mxu0
      %v1633 = vadd.f32 0.0, %v1632
      %v1634 = vpop.f32.mrb[0].mxu0
      %v1635 = vpop.f32.mrb[0].mxu0
      %v1636 = vadd.f32 0.0, %v1635
      %v1637 = vpop.f32.mrb[0].mxu0
      %1638 = vmatprep.mubr.bf16.mxu0 %v777
      %1639 = vmatmul.mubr.bf16.gmra.mrb[0].mxu0 %v566
      %v1640 = vpop.f32.mrb[0].mxu0
      %v1641 = vadd.f32 0.0, %v1640
      %v1642 = vpop.f32.mrb[0].mxu0
      %v1643 = vpop.f32.mrb[0].mxu0
      %v1644 = vadd.f32 0.0, %v1643
      %v1645 = vpop.f32.mrb[0].mxu0
      %1646 = vdwg.mxu0
      %1647 = vmatprep.subr.bf16.mxu0 0
      %1648 = vmatpush1.bf16.msra.mxu0 %v1358
      %1649 = vmatprep.subr.bf16.mxu0 0
      %1650 = vmatpush1.bf16.msra.mxu0 %v1359
      %1651 = vmatprep.subr.bf16.mxu0 0
      %1652 = vmatpush1.bf16.msra.mxu0 %v1360
      %1653 = vmatprep.subr.bf16.mxu0 0
      %1654 = vmatpush1.bf16.msra.mxu0 %v1361
      %1655 = vmatprep.subr.bf16.mxu0 0
      %1656 = vmatpush1.bf16.msra.mxu0 %v1362
      %1657 = vmatprep.subr.bf16.mxu0 0
      %1658 = vmatpush1.bf16.msra.mxu0 %v1363
      %1659 = vmatprep.subr.bf16.mxu0 0
      %1660 = vmatpush1.bf16.msra.mxu0 %v1364
      %1661 = vmatprep.subr.bf16.mxu0 0
      %1662 = vmatpush1.bf16.msra.mxu0 %v1365
      %1663 = vmatprep.subr.bf16.mxu0 0
      %1664 = vmatpush1.bf16.msra.mxu0 %v1366
      %1665 = vmatprep.subr.bf16.mxu0 0
      %1666 = vmatpush1.bf16.msra.mxu0 %v1367
      %1667 = vmatprep.subr.bf16.mxu0 0
      %1668 = vmatpush1.bf16.msra.mxu0 %v1368
      %1669 = vmatprep.subr.bf16.mxu0 0
      %1670 = vmatpush1.bf16.msra.mxu0 %v1369
      %1671 = vmatprep.subr.bf16.mxu0 0
      %1672 = vmatpush1.bf16.msra.mxu0 %v1370
      %1673 = vmatprep.subr.bf16.mxu0 0
      %1674 = vmatpush1.bf16.msra.mxu0 %v1371
      %1675 = vmatprep.subr.bf16.mxu0 0
      %1676 = vmatpush1.bf16.msra.mxu0 %v1372
      %1677 = vmatprep.subr.bf16.mxu0 0
      %1678 = vmatpush1.bf16.msra.mxu0 %v1373
      %1679 = vmatprep.mubr.bf16.mxu0 %v552
      %1680 = vmatmul.mubr.bf16.gmra.mrb[0].mxu0 %v829
      %v1681 = vpop.f32.mrb[0].mxu0
      %v1682 = vadd.f32 %v1521, %v1681
      %v1683 = vpop.f32.mrb[0].mxu0
      %v1684 = vpop.f32.mrb[0].mxu0
      %v1685 = vadd.f32 %v1524, %v1684
      %v1686 = vpop.f32.mrb[0].mxu0
      %1687 = vmatprep.mubr.bf16.mxu0 %v553
      %1688 = vmatmul.mubr.bf16.gmra.mrb[0].mxu0 %v832
      %v1689 = vpop.f32.mrb[0].mxu0
      %v1690 = vadd.f32 %v1529, %v1689
      %v1691 = vpop.f32.mrb[0].mxu0
      %v1692 = vpop.f32.mrb[0].mxu0
      %v1693 = vadd.f32 %v1532, %v1692
      %v1694 = vpop.f32.mrb[0].mxu0
      %1695 = vmatprep.mubr.bf16.mxu0 %v554
      %1696 = vmatmul.mubr.bf16.gmra.mrb[0].mxu0 %v835
      %v1697 = vpop.f32.mrb[0].mxu0
      %v1698 = vadd.f32 %v1537, %v1697
      %v1699 = vpop.f32.mrb[0].mxu0
      %v1700 = vpop.f32.mrb[0].mxu0
      %v1701 = vadd.f32 %v1540, %v1700
      %v1702 = vpop.f32.mrb[0].mxu0
      %1703 = vmatprep.mubr.bf16.mxu0 %v555
      %1704 = vmatmul.mubr.bf16.gmra.mrb[0].mxu0 %v838
      %v1705 = vpop.f32.mrb[0].mxu0
      %v1706 = vadd.f32 %v1545, %v1705
      %v1707 = vpop.f32.mrb[0].mxu0
      %v1708 = vpop.f32.mrb[0].mxu0
      %v1709 = vadd.f32 %v1548, %v1708
      %v1710 = vpop.f32.mrb[0].mxu0
      %1711 = vmatprep.mubr.bf16.mxu0 %v556
      %1712 = vmatmul.mubr.bf16.gmra.mrb[0].mxu0 %v841
      %v1713 = vpop.f32.mrb[0].mxu0
      %v1714 = vadd.f32 %v1553, %v1713
      %v1715 = vpop.f32.mrb[0].mxu0
      %v1716 = vpop.f32.mrb[0].mxu0
      %v1717 = vadd.f32 %v1556, %v1716
      %v1718 = vpop.f32.mrb[0].mxu0
      %1719 = vmatprep.mubr.bf16.mxu0 %v557
      %1720 = vmatmul.mubr.bf16.gmra.mrb[0].mxu0 %v844
      %v1721 = vpop.f32.mrb[0].mxu0
      %v1722 = vadd.f32 %v1561, %v1721
      %v1723 = vpop.f32.mrb[0].mxu0
      %v1724 = vpop.f32.mrb[0].mxu0
      %v1725 = vadd.f32 %v1564, %v1724
      %v1726 = vpop.f32.mrb[0].mxu0
      %1727 = vmatprep.mubr.bf16.mxu0 %v558
      %1728 = vmatmul.mubr.bf16.gmra.mrb[0].mxu0 %v847
      %v1729 = vpop.f32.mrb[0].mxu0
      %v1730 = vadd.f32 %v1569, %v1729
      %v1731 = vpop.f32.mrb[0].mxu0
      %v1732 = vpop.f32.mrb[0].mxu0
      %v1733 = vadd.f32 %v1572, %v1732
      %v1734 = vpop.f32.mrb[0].mxu0
      %1735 = vmatprep.mubr.bf16.mxu0 %v559
      %1736 = vmatmul.mubr.bf16.gmra.mrb[0].mxu0 %v850
      %v1737 = vpop.f32.mrb[0].mxu0
      %v1738 = vadd.f32 %v1577, %v1737
      %v1739 = vpop.f32.mrb[0].mxu0
      %v1740 = vpop.f32.mrb[0].mxu0
      %v1741 = vadd.f32 %v1580, %v1740
      %v1742 = vpop.f32.mrb[0].mxu0
      %1743 = vmatprep.mubr.bf16.mxu0 %v560
      %1744 = vmatmul.mubr.bf16.gmra.mrb[0].mxu0 %v853
      %v1745 = vpop.f32.mrb[0].mxu0
      %v1746 = vadd.f32 %v1585, %v1745
      %v1747 = vpop.f32.mrb[0].mxu0
      %v1748 = vpop.f32.mrb[0].mxu0
      %v1749 = vadd.f32 %v1588, %v1748
      %v1750 = vpop.f32.mrb[0].mxu0
      %1751 = vmatprep.mubr.bf16.mxu0 %v561
      %1752 = vmatmul.mubr.bf16.gmra.mrb[0].mxu0 %v856
      %v1753 = vpop.f32.mrb[0].mxu0
      %v1754 = vadd.f32 %v1593, %v1753
      %v1755 = vpop.f32.mrb[0].mxu0
      %v1756 = vpop.f32.mrb[0].mxu0
      %v1757 = vadd.f32 %v1596, %v1756
      %v1758 = vpop.f32.mrb[0].mxu0
      %1759 = vmatprep.mubr.bf16.mxu0 %v562
      %1760 = vmatmul.mubr.bf16.gmra.mrb[0].mxu0 %v859
      %v1761 = vpop.f32.mrb[0].mxu0
      %v1762 = vadd.f32 %v1601, %v1761
      %v1763 = vpop.f32.mrb[0].mxu0
      %v1764 = vpop.f32.mrb[0].mxu0
      %v1765 = vadd.f32 %v1604, %v1764
      %v1766 = vpop.f32.mrb[0].mxu0
      %1767 = vmatprep.mubr.bf16.mxu0 %v563
      %1768 = vmatmul.mubr.bf16.gmra.mrb[0].mxu0 %v862
      %v1769 = vpop.f32.mrb[0].mxu0
      %v1770 = vadd.f32 %v1609, %v1769
      %v1771 = vpop.f32.mrb[0].mxu0
      %v1772 = vpop.f32.mrb[0].mxu0
      %v1773 = vadd.f32 %v1612, %v1772
      %v1774 = vpop.f32.mrb[0].mxu0
      %1775 = vmatprep.mubr.bf16.mxu0 %v564
      %1776 = vmatmul.mubr.bf16.gmra.mrb[0].mxu0 %v865
      %v1777 = vpop.f32.mrb[0].mxu0
      %v1778 = vadd.f32 %v1617, %v1777
      %v1779 = vpop.f32.mrb[0].mxu0
      %v1780 = vpop.f32.mrb[0].mxu0
      %v1781 = vadd.f32 %v1620, %v1780
      %v1782 = vpop.f32.mrb[0].mxu0
      %1783 = vmatprep.mubr.bf16.mxu0 %v565
      %1784 = vmatmul.mubr.bf16.gmra.mrb[0].mxu0 %v868
      %v1785 = vpop.f32.mrb[0].mxu0
      %v1786 = vadd.f32 %v1625, %v1785
      %v1787 = vpop.f32.mrb[0].mxu0
      %v1788 = vpop.f32.mrb[0].mxu0
      %v1789 = vadd.f32 %v1628, %v1788
      %v1790 = vpop.f32.mrb[0].mxu0
      %1791 = vmatprep.mubr.bf16.mxu0 %v566
      %1792 = vmatmul.mubr.bf16.gmra.mrb[0].mxu0 %v871
      %v1793 = vpop.f32.mrb[0].mxu0
      %v1794 = vadd.f32 %v1633, %v1793
      %v1795 = vpop.f32.mrb[0].mxu0
      %v1796 = vpop.f32.mrb[0].mxu0
      %v1797 = vadd.f32 %v1636, %v1796
      %v1798 = vpop.f32.mrb[0].mxu0
      %1799 = vmatprep.mubr.bf16.mxu0 %v567
      %1800 = vmatmul.mubr.bf16.gmra.mrb[0].mxu0 %v874
      %v1801 = vpop.f32.mrb[0].mxu0
      %v1802 = vadd.f32 %v1641, %v1801
      %v1803 = vpop.f32.mrb[0].mxu0
      %v1804 = vpop.f32.mrb[0].mxu0
      %v1805 = vadd.f32 %v1644, %v1804
      %v1806 = vpop.f32.mrb[0].mxu0
      %1807 = vdwg.mxu0
      %1808 = vmatprep.subr.bf16.mxu0 0
      %1809 = vmatpush1.bf16.msra.mxu0 %v1374
      %1810 = vmatprep.subr.bf16.mxu0 0
      %1811 = vmatpush1.bf16.msra.mxu0 %v1375
      %1812 = vmatprep.subr.bf16.mxu0 0
      %1813 = vmatpush1.bf16.msra.mxu0 %v1376
      %1814 = vmatprep.subr.bf16.mxu0 0
      %1815 = vmatpush1.bf16.msra.mxu0 %v1377
      %1816 = vmatprep.subr.bf16.mxu0 0
      %1817 = vmatpush1.bf16.msra.mxu0 %v1378
      %1818 = vmatprep.subr.bf16.mxu0 0
      %1819 = vmatpush1.bf16.msra.mxu0 %v1379
      %1820 = vmatprep.subr.bf16.mxu0 0
      %1821 = vmatpush1.bf16.msra.mxu0 %v1380
      %1822 = vmatprep.subr.bf16.mxu0 0
      %1823 = vmatpush1.bf16.msra.mxu0 %v1381
      %1824 = vmatprep.subr.bf16.mxu0 0
      %1825 = vmatpush1.bf16.msra.mxu0 %v1382
      %1826 = vmatprep.subr.bf16.mxu0 0
      %1827 = vmatpush1.bf16.msra.mxu0 %v1383
      %1828 = vmatprep.subr.bf16.mxu0 0
      %1829 = vmatpush1.bf16.msra.mxu0 %v1384
      %1830 = vmatprep.subr.bf16.mxu0 0
      %1831 = vmatpush1.bf16.msra.mxu0 %v1385
      %1832 = vmatprep.subr.bf16.mxu0 0
      %1833 = vmatpush1.bf16.msra.mxu0 %v1386
      %1834 = vmatprep.subr.bf16.mxu0 0
      %1835 = vmatpush1.bf16.msra.mxu0 %v1387
      %1836 = vmatprep.subr.bf16.mxu0 0
      %1837 = vmatpush1.bf16.msra.mxu0 %v1388
      %1838 = vmatprep.subr.bf16.mxu0 0
      %1839 = vmatpush1.bf16.msra.mxu0 %v1389
      %1840 = vmatprep.mubr.bf16.mxu0 %v832
      %1841 = vmatmul.mubr.bf16.gmra.mrb[0].mxu0 %v609
      %v1842 = vpop.f32.mrb[0].mxu0
      %v1843 = vadd.f32 %v1682, %v1842
      %v1844 = vpop.f32.mrb[0].mxu0
      %v1845 = vpop.f32.mrb[0].mxu0
      %v1846 = vadd.f32 %v1685, %v1845
      %v1847 = vpop.f32.mrb[0].mxu0
      %1848 = vmatprep.mubr.bf16.mxu0 %v835
      %1849 = vmatmul.mubr.bf16.gmra.mrb[0].mxu0 %v621
      %v1850 = vpop.f32.mrb[0].mxu0
      %v1851 = vadd.f32 %v1690, %v1850
      %v1852 = vpop.f32.mrb[0].mxu0
      %v1853 = vpop.f32.mrb[0].mxu0
      %v1854 = vadd.f32 %v1693, %v1853
      %v1855 = vpop.f32.mrb[0].mxu0
      %1856 = vmatprep.mubr.bf16.mxu0 %v838
      %1857 = vmatmul.mubr.bf16.gmra.mrb[0].mxu0 %v633
      %v1858 = vpop.f32.mrb[0].mxu0
      %v1859 = vadd.f32 %v1698, %v1858
      %v1860 = vpop.f32.mrb[0].mxu0
      %v1861 = vpop.f32.mrb[0].mxu0
      %v1862 = vadd.f32 %v1701, %v1861
      %v1863 = vpop.f32.mrb[0].mxu0
      %1864 = vmatprep.mubr.bf16.mxu0 %v841
      %1865 = vmatmul.mubr.bf16.gmra.mrb[0].mxu0 %v645
      %v1866 = vpop.f32.mrb[0].mxu0
      %v1867 = vadd.f32 %v1706, %v1866
      %v1868 = vpop.f32.mrb[0].mxu0
      %v1869 = vpop.f32.mrb[0].mxu0
      %v1870 = vadd.f32 %v1709, %v1869
      %v1871 = vpop.f32.mrb[0].mxu0
      %1872 = vmatprep.mubr.bf16.mxu0 %v844
      %1873 = vmatmul.mubr.bf16.gmra.mrb[0].mxu0 %v657
      %v1874 = vpop.f32.mrb[0].mxu0
      %v1875 = vadd.f32 %v1714, %v1874
      %v1876 = vpop.f32.mrb[0].mxu0
      %v1877 = vpop.f32.mrb[0].mxu0
      %v1878 = vadd.f32 %v1717, %v1877
      %v1879 = vpop.f32.mrb[0].mxu0
      %1880 = vmatprep.mubr.bf16.mxu0 %v847
      %1881 = vmatmul.mubr.bf16.gmra.mrb[0].mxu0 %v669
      %v1882 = vpop.f32.mrb[0].mxu0
      %v1883 = vadd.f32 %v1722, %v1882
      %v1884 = vpop.f32.mrb[0].mxu0
      %v1885 = vpop.f32.mrb[0].mxu0
      %v1886 = vadd.f32 %v1725, %v1885
      %v1887 = vpop.f32.mrb[0].mxu0
      %1888 = vmatprep.mubr.bf16.mxu0 %v850
      %1889 = vmatmul.mubr.bf16.gmra.mrb[0].mxu0 %v681
      %v1890 = vpop.f32.mrb[0].mxu0
      %v1891 = vadd.f32 %v1730, %v1890
      %v1892 = vpop.f32.mrb[0].mxu0
      %v1893 = vpop.f32.mrb[0].mxu0
      %v1894 = vadd.f32 %v1733, %v1893
      %v1895 = vpop.f32.mrb[0].mxu0
      %1896 = vmatprep.mubr.bf16.mxu0 %v853
      %1897 = vmatmul.mubr.bf16.gmra.mrb[0].mxu0 %v693
      %v1898 = vpop.f32.mrb[0].mxu0
      %v1899 = vadd.f32 %v1738, %v1898
      %v1900 = vpop.f32.mrb[0].mxu0
      %v1901 = vpop.f32.mrb[0].mxu0
      %v1902 = vadd.f32 %v1741, %v1901
      %v1903 = vpop.f32.mrb[0].mxu0
      %1904 = vmatprep.mubr.bf16.mxu0 %v856
      %1905 = vmatmul.mubr.bf16.gmra.mrb[0].mxu0 %v705
      %v1906 = vpop.f32.mrb[0].mxu0
      %v1907 = vadd.f32 %v1746, %v1906
      %v1908 = vpop.f32.mrb[0].mxu0
      %v1909 = vpop.f32.mrb[0].mxu0
      %v1910 = vadd.f32 %v1749, %v1909
      %v1911 = vpop.f32.mrb[0].mxu0
      %1912 = vmatprep.mubr.bf16.mxu0 %v859
      %1913 = vmatmul.mubr.bf16.gmra.mrb[0].mxu0 %v717
      %v1914 = vpop.f32.mrb[0].mxu0
      %v1915 = vadd.f32 %v1754, %v1914
      %v1916 = vpop.f32.mrb[0].mxu0
      %v1917 = vpop.f32.mrb[0].mxu0
      %v1918 = vadd.f32 %v1757, %v1917
      %v1919 = vpop.f32.mrb[0].mxu0
      %1920 = vmatprep.mubr.bf16.mxu0 %v862
      %1921 = vmatmul.mubr.bf16.gmra.mrb[0].mxu0 %v729
      %v1922 = vpop.f32.mrb[0].mxu0
      %v1923 = vadd.f32 %v1762, %v1922
      %v1924 = vpop.f32.mrb[0].mxu0
      %v1925 = vpop.f32.mrb[0].mxu0
      %v1926 = vadd.f32 %v1765, %v1925
      %v1927 = vpop.f32.mrb[0].mxu0
      %1928 = vmatprep.mubr.bf16.mxu0 %v865
      %1929 = vmatmul.mubr.bf16.gmra.mrb[0].mxu0 %v741
      %v1930 = vpop.f32.mrb[0].mxu0
      %v1931 = vadd.f32 %v1770, %v1930
      %v1932 = vpop.f32.mrb[0].mxu0
      %v1933 = vpop.f32.mrb[0].mxu0
      %v1934 = vadd.f32 %v1773, %v1933
      %v1935 = vpop.f32.mrb[0].mxu0
      %1936 = vmatprep.mubr.bf16.mxu0 %v868
      %1937 = vmatmul.mubr.bf16.gmra.mrb[0].mxu0 %v753
      %v1938 = vpop.f32.mrb[0].mxu0
      %v1939 = vadd.f32 %v1778, %v1938
      %v1940 = vpop.f32.mrb[0].mxu0
      %v1941 = vpop.f32.mrb[0].mxu0
      %v1942 = vadd.f32 %v1781, %v1941
      %v1943 = vpop.f32.mrb[0].mxu0
      %1944 = vmatprep.mubr.bf16.mxu0 %v871
      %1945 = vmatmul.mubr.bf16.gmra.mrb[0].mxu0 %v765
      %v1946 = vpop.f32.mrb[0].mxu0
      %v1947 = vadd.f32 %v1786, %v1946
      %v1948 = vpop.f32.mrb[0].mxu0
      %v1949 = vpop.f32.mrb[0].mxu0
      %v1950 = vadd.f32 %v1789, %v1949
      %v1951 = vpop.f32.mrb[0].mxu0
      %1952 = vmatprep.mubr.bf16.mxu0 %v874
      %1953 = vmatmul.mubr.bf16.gmra.mrb[0].mxu0 %v777
      %v1954 = vpop.f32.mrb[0].mxu0
      %v1955 = vadd.f32 %v1794, %v1954
      %v1956 = vpop.f32.mrb[0].mxu0
      %v1957 = vpop.f32.mrb[0].mxu0
      %v1958 = vadd.f32 %v1797, %v1957
      %v1959 = vpop.f32.mrb[0].mxu0
      %1960 = vmatprep.mubr.bf16.mxu0 %v908
      %1961 = vmatmul.mubr.bf16.gmra.mrb[0].mxu0 %v902
      %v1962 = vpop.f32.mrb[0].mxu0
      %v1963 = vadd.f32 %v1802, %v1962
      %v1964 = vpop.f32.mrb[0].mxu0
      %v1965 = vpop.f32.mrb[0].mxu0
      %v1966 = vadd.f32 %v1805, %v1965
      %v1967 = vpop.f32.mrb[0].mxu0
      %1968 = vdwg.mxu0
      %1969 = vmatprep.subr.bf16.mxu0 0
      %1970 = vmatpush1.bf16.msra.mxu0 %v1390
      %1971 = vmatprep.subr.bf16.mxu0 0
      %1972 = vmatpush1.bf16.msra.mxu0 %v1391
      %1973 = vmatprep.subr.bf16.mxu0 0
      %1974 = vmatpush1.bf16.msra.mxu0 %v1392
      %1975 = vmatprep.subr.bf16.mxu0 0
      %1976 = vmatpush1.bf16.msra.mxu0 %v1393
      %1977 = vmatprep.subr.bf16.mxu0 0
      %1978 = vmatpush1.bf16.msra.mxu0 %v1394
      %1979 = vmatprep.subr.bf16.mxu0 0
      %1980 = vmatpush1.bf16.msra.mxu0 %v1395
      %1981 = vmatprep.subr.bf16.mxu0 0
      %1982 = vmatpush1.bf16.msra.mxu0 %v1396
      %1983 = vmatprep.subr.bf16.mxu0 0
      %1984 = vmatpush1.bf16.msra.mxu0 %v1397
      %1985 = vmatprep.subr.bf16.mxu0 0
      %1986 = vmatpush1.bf16.msra.mxu0 %v1398
      %1987 = vmatprep.subr.bf16.mxu0 0
      %1988 = vmatpush1.bf16.msra.mxu0 %v1399
      %1989 = vmatprep.subr.bf16.mxu0 0
      %1990 = vmatpush1.bf16.msra.mxu0 %v1400
      %1991 = vmatprep.subr.bf16.mxu0 0
      %1992 = vmatpush1.bf16.msra.mxu0 %v1401
      %1993 = vmatprep.subr.bf16.mxu0 0
      %1994 = vmatpush1.bf16.msra.mxu0 %v1402
      %1995 = vmatprep.subr.bf16.mxu0 0
      %1996 = vmatpush1.bf16.msra.mxu0 %v1403
      %1997 = vmatprep.subr.bf16.mxu0 0
      %1998 = vmatpush1.bf16.msra.mxu0 %v1404
      %1999 = vmatprep.subr.bf16.mxu0 0
      %2000 = vmatpush1.bf16.msra.mxu0 %v1405
      %2001 = vmatprep.mubr.bf16.mxu0 %v621
      %2002 = vmatmul.mubr.bf16.gmra.mrb[0].mxu0 %v553
      %v2003 = vpop.f32.mrb[0].mxu0
      %v2004 = vadd.f32 %v1843, %v2003
      %v2005 = vpop.f32.mrb[0].mxu0
      %v2006 = vpop.f32.mrb[0].mxu0
      %v2007 = vadd.f32 %v1846, %v2006
      %v2008 = vpop.f32.mrb[0].mxu0
      %2009 = vmatprep.mubr.bf16.mxu0 %v633
      %2010 = vmatmul.mubr.bf16.gmra.mrb[0].mxu0 %v554
      %v2011 = vpop.f32.mrb[0].mxu0
      %v2012 = vadd.f32 %v1851, %v2011
      %v2013 = vpop.f32.mrb[0].mxu0
      %v2014 = vpop.f32.mrb[0].mxu0
      %v2015 = vadd.f32 %v1854, %v2014
      %v2016 = vpop.f32.mrb[0].mxu0
      %2017 = vmatprep.mubr.bf16.mxu0 %v645
      %2018 = vmatmul.mubr.bf16.gmra.mrb[0].mxu0 %v555
      %v2019 = vpop.f32.mrb[0].mxu0
      %v2020 = vadd.f32 %v1859, %v2019
      %v2021 = vpop.f32.mrb[0].mxu0
      %v2022 = vpop.f32.mrb[0].mxu0
      %v2023 = vadd.f32 %v1862, %v2022
      %v2024 = vpop.f32.mrb[0].mxu0
      %2025 = vmatprep.mubr.bf16.mxu0 %v657
      %2026 = vmatmul.mubr.bf16.gmra.mrb[0].mxu0 %v556
      %v2027 = vpop.f32.mrb[0].mxu0
      %v2028 = vadd.f32 %v1867, %v2027
      %v2029 = vpop.f32.mrb[0].mxu0
      %v2030 = vpop.f32.mrb[0].mxu0
      %v2031 = vadd.f32 %v1870, %v2030
      %v2032 = vpop.f32.mrb[0].mxu0
      %2033 = vmatprep.mubr.bf16.mxu0 %v669
      %2034 = vmatmul.mubr.bf16.gmra.mrb[0].mxu0 %v557
      %v2035 = vpop.f32.mrb[0].mxu0
      %v2036 = vadd.f32 %v1875, %v2035
      %v2037 = vpop.f32.mrb[0].mxu0
      %v2038 = vpop.f32.mrb[0].mxu0
      %v2039 = vadd.f32 %v1878, %v2038
      %v2040 = vpop.f32.mrb[0].mxu0
      %2041 = vmatprep.mubr.bf16.mxu0 %v681
      %2042 = vmatmul.mubr.bf16.gmra.mrb[0].mxu0 %v558
      %v2043 = vpop.f32.mrb[0].mxu0
      %v2044 = vadd.f32 %v1883, %v2043
      %v2045 = vpop.f32.mrb[0].mxu0
      %v2046 = vpop.f32.mrb[0].mxu0
      %v2047 = vadd.f32 %v1886, %v2046
      %v2048 = vpop.f32.mrb[0].mxu0
      %2049 = vmatprep.mubr.bf16.mxu0 %v693
      %2050 = vmatmul.mubr.bf16.gmra.mrb[0].mxu0 %v559
      %v2051 = vpop.f32.mrb[0].mxu0
      %v2052 = vadd.f32 %v1891, %v2051
      %v2053 = vpop.f32.mrb[0].mxu0
      %v2054 = vpop.f32.mrb[0].mxu0
      %v2055 = vadd.f32 %v1894, %v2054
      %v2056 = vpop.f32.mrb[0].mxu0
      %2057 = vmatprep.mubr.bf16.mxu0 %v705
      %2058 = vmatmul.mubr.bf16.gmra.mrb[0].mxu0 %v560
      %v2059 = vpop.f32.mrb[0].mxu0
      %v2060 = vadd.f32 %v1899, %v2059
      %v2061 = vpop.f32.mrb[0].mxu0
      %v2062 = vpop.f32.mrb[0].mxu0
      %v2063 = vadd.f32 %v1902, %v2062
      %v2064 = vpop.f32.mrb[0].mxu0
      %2065 = vmatprep.mubr.bf16.mxu0 %v717
      %2066 = vmatmul.mubr.bf16.gmra.mrb[0].mxu0 %v561
      %v2067 = vpop.f32.mrb[0].mxu0
      %v2068 = vadd.f32 %v1907, %v2067
      %v2069 = vpop.f32.mrb[0].mxu0
      %v2070 = vpop.f32.mrb[0].mxu0
      %v2071 = vadd.f32 %v1910, %v2070
      %v2072 = vpop.f32.mrb[0].mxu0
      %2073 = vmatprep.mubr.bf16.mxu0 %v729
      %2074 = vmatmul.mubr.bf16.gmra.mrb[0].mxu0 %v562
      %v2075 = vpop.f32.mrb[0].mxu0
      %v2076 = vadd.f32 %v1915, %v2075
      %v2077 = vpop.f32.mrb[0].mxu0
      %v2078 = vpop.f32.mrb[0].mxu0
      %v2079 = vadd.f32 %v1918, %v2078
      %v2080 = vpop.f32.mrb[0].mxu0
      %2081 = vmatprep.mubr.bf16.mxu0 %v741
      %2082 = vmatmul.mubr.bf16.gmra.mrb[0].mxu0 %v563
      %v2083 = vpop.f32.mrb[0].mxu0
      %v2084 = vadd.f32 %v1923, %v2083
      %v2085 = vpop.f32.mrb[0].mxu0
      %v2086 = vpop.f32.mrb[0].mxu0
      %v2087 = vadd.f32 %v1926, %v2086
      %v2088 = vpop.f32.mrb[0].mxu0
      %2089 = vmatprep.mubr.bf16.mxu0 %v753
      %2090 = vmatmul.mubr.bf16.gmra.mrb[0].mxu0 %v564
      %v2091 = vpop.f32.mrb[0].mxu0
      %v2092 = vadd.f32 %v1931, %v2091
      %v2093 = vpop.f32.mrb[0].mxu0
      %v2094 = vpop.f32.mrb[0].mxu0
      %v2095 = vadd.f32 %v1934, %v2094
      %v2096 = vpop.f32.mrb[0].mxu0
      %2097 = vmatprep.mubr.bf16.mxu0 %v765
      %2098 = vmatmul.mubr.bf16.gmra.mrb[0].mxu0 %v565
      %v2099 = vpop.f32.mrb[0].mxu0
      %v2100 = vadd.f32 %v1939, %v2099
      %v2101 = vpop.f32.mrb[0].mxu0
      %v2102 = vpop.f32.mrb[0].mxu0
      %v2103 = vadd.f32 %v1942, %v2102
      %v2104 = vpop.f32.mrb[0].mxu0
      %2105 = vmatprep.mubr.bf16.mxu0 %v777
      %2106 = vmatmul.mubr.bf16.gmra.mrb[0].mxu0 %v566
      %v2107 = vpop.f32.mrb[0].mxu0
      %v2108 = vadd.f32 %v1947, %v2107
      %v2109 = vpop.f32.mrb[0].mxu0
      %v2110 = vpop.f32.mrb[0].mxu0
      %v2111 = vadd.f32 %v1950, %v2110
      %v2112 = vpop.f32.mrb[0].mxu0
      %2113 = vmatprep.mubr.bf16.mxu0 %v902
      %2114 = vmatmul.mubr.bf16.gmra.mrb[0].mxu0 %v567
      %v2115 = vpop.f32.mrb[0].mxu0
      %v2116 = vadd.f32 %v1955, %v2115
      %v2117 = vpop.f32.mrb[0].mxu0
      %v2118 = vpop.f32.mrb[0].mxu0
      %v2119 = vadd.f32 %v1958, %v2118
      %v2120 = vpop.f32.mrb[0].mxu0
      %2121 = vmatprep.mubr.bf16.mxu0 %v597
      %2122 = vmatmul.mubr.bf16.gmra.mrb[0].mxu0 %v551
      %v2123 = vpop.f32.mrb[0].mxu0
      %v2124 = vadd.f32 %v1963, %v2123
      %v2125 = vpop.f32.mrb[0].mxu0
      %v2126 = vpop.f32.mrb[0].mxu0
      %v2127 = vadd.f32 %v1966, %v2126
      %v2128 = vpop.f32.mrb[0].mxu0
      %2129 = vdwg.mxu0
      %2130 = vmatprep.subr.bf16.mxu0 0
      %2131 = vmatpush1.bf16.msra.mxu0 %v1406
      %2132 = vmatprep.subr.bf16.mxu0 0
      %2133 = vmatpush1.bf16.msra.mxu0 %v1407
      %2134 = vmatprep.subr.bf16.mxu0 0
      %2135 = vmatpush1.bf16.msra.mxu0 %v1408
      %2136 = vmatprep.subr.bf16.mxu0 0
      %2137 = vmatpush1.bf16.msra.mxu0 %v1409
      %2138 = vmatprep.subr.bf16.mxu0 0
      %2139 = vmatpush1.bf16.msra.mxu0 %v1410
      %2140 = vmatprep.subr.bf16.mxu0 0
      %2141 = vmatpush1.bf16.msra.mxu0 %v1411
      %2142 = vmatprep.subr.bf16.mxu0 0
      %2143 = vmatpush1.bf16.msra.mxu0 %v1412
      %2144 = vmatprep.subr.bf16.mxu0 0
      %2145 = vmatpush1.bf16.msra.mxu0 %v1413
      %2146 = vmatprep.subr.bf16.mxu0 0
      %2147 = vmatpush1.bf16.msra.mxu0 0
      %2148 = vmatprep.subr.bf16.mxu0 0
      %2149 = vmatpush1.bf16.msra.mxu0 0
      %2150 = vmatprep.subr.bf16.mxu0 0
      %2151 = vmatpush1.bf16.msra.mxu0 0
      %2152 = vmatprep.subr.bf16.mxu0 0
      %2153 = vmatpush1.bf16.msra.mxu0 0
      %2154 = vmatprep.subr.bf16.mxu0 0
      %2155 = vmatpush1.bf16.msra.mxu0 0
      %2156 = vmatprep.subr.bf16.mxu0 0
      %2157 = vmatpush1.bf16.msra.mxu0 0
      %2158 = vmatprep.subr.bf16.mxu0 0
      %2159 = vmatpush1.bf16.msra.mxu0 0
      %2160 = vmatprep.subr.bf16.mxu0 0
      %2161 = vmatpush1.bf16.msra.mxu0 0
      %2162 = vmatprep.mubr.bf16.mxu0 0
      %2163 = vmatmul.mubr.bf16.gmra.mrb[0].mxu0 %v835
      %v2164 = vpop.f32.mrb[0].mxu0
      %v2165 = vadd.f32 %v2004, %v2164
      %v2166 = vpop.f32.mrb[0].mxu0
      %v2167 = vpop.f32.mrb[0].mxu0
      %v2168 = vadd.f32 %v2007, %v2167
      %v2169 = vpop.f32.mrb[0].mxu0
      %2170 = vmatprep.mubr.bf16.mxu0 0
      %2171 = vmatmul.mubr.bf16.gmra.mrb[0].mxu0 %v838
      %v2172 = vpop.f32.mrb[0].mxu0
      %v2173 = vadd.f32 %v2012, %v2172
      %v2174 = vpop.f32.mrb[0].mxu0
      %v2175 = vpop.f32.mrb[0].mxu0
      %v2176 = vadd.f32 %v2015, %v2175
      %v2177 = vpop.f32.mrb[0].mxu0
      %2178 = vmatprep.mubr.bf16.mxu0 0
      %2179 = vmatmul.mubr.bf16.gmra.mrb[0].mxu0 %v841
      %v2180 = vpop.f32.mrb[0].mxu0
      %v2181 = vadd.f32 %v2020, %v2180
      %v2182 = vpop.f32.mrb[0].mxu0
      %v2183 = vpop.f32.mrb[0].mxu0
      %v2184 = vadd.f32 %v2023, %v2183
      %v2185 = vpop.f32.mrb[0].mxu0
      %2186 = vmatprep.mubr.bf16.mxu0 0
      %2187 = vmatmul.mubr.bf16.gmra.mrb[0].mxu0 %v844
      %v2188 = vpop.f32.mrb[0].mxu0
      %v2189 = vadd.f32 %v2028, %v2188
      %v2190 = vpop.f32.mrb[0].mxu0
      %v2191 = vpop.f32.mrb[0].mxu0
      %v2192 = vadd.f32 %v2031, %v2191
      %v2193 = vpop.f32.mrb[0].mxu0
      %2194 = vmatprep.mubr.bf16.mxu0 0
      %2195 = vmatmul.mubr.bf16.gmra.mrb[0].mxu0 %v847
      %v2196 = vpop.f32.mrb[0].mxu0
      %v2197 = vadd.f32 %v2036, %v2196
      %v2198 = vpop.f32.mrb[0].mxu0
      %v2199 = vpop.f32.mrb[0].mxu0
      %v2200 = vadd.f32 %v2039, %v2199
      %v2201 = vpop.f32.mrb[0].mxu0
      %2202 = vmatprep.mubr.bf16.mxu0 0
      %2203 = vmatmul.mubr.bf16.gmra.mrb[0].mxu0 %v850
      %v2204 = vpop.f32.mrb[0].mxu0
      %v2205 = vadd.f32 %v2044, %v2204
      %v2206 = vpop.f32.mrb[0].mxu0
      %v2207 = vpop.f32.mrb[0].mxu0
      %v2208 = vadd.f32 %v2047, %v2207
      %v2209 = vpop.f32.mrb[0].mxu0
      %2210 = vmatprep.mubr.bf16.mxu0 0
      %2211 = vmatmul.mubr.bf16.gmra.mrb[0].mxu0 %v853
      %v2212 = vpop.f32.mrb[0].mxu0
      %v2213 = vadd.f32 %v2052, %v2212
      %v2214 = vpop.f32.mrb[0].mxu0
      %v2215 = vpop.f32.mrb[0].mxu0
      %v2216 = vadd.f32 %v2055, %v2215
      %v2217 = vpop.f32.mrb[0].mxu0
      %2218 = vmatprep.mubr.bf16.mxu0 0
      %2219 = vmatmul.mubr.bf16.gmra.mrb[0].mxu0 %v856
      %v2220 = vpop.f32.mrb[0].mxu0
      %v2221 = vadd.f32 %v2060, %v2220
      %v2222 = vpop.f32.mrb[0].mxu0
      %v2223 = vpop.f32.mrb[0].mxu0
      %v2224 = vadd.f32 %v2063, %v2223
      %v2225 = vpop.f32.mrb[0].mxu0
      %2226 = vmatprep.mubr.bf16.mxu0 0
      %2227 = vmatmul.mubr.bf16.gmra.mrb[0].mxu0 %v859
      %v2228 = vpop.f32.mrb[0].mxu0
      %v2229 = vadd.f32 %v2068, %v2228
      %v2230 = vpop.f32.mrb[0].mxu0
      %v2231 = vpop.f32.mrb[0].mxu0
      %v2232 = vadd.f32 %v2071, %v2231
      %v2233 = vpop.f32.mrb[0].mxu0
      %2234 = vmatprep.mubr.bf16.mxu0 0
      %2235 = vmatmul.mubr.bf16.gmra.mrb[0].mxu0 %v862
      %v2236 = vpop.f32.mrb[0].mxu0
      %v2237 = vadd.f32 %v2076, %v2236
      %v2238 = vpop.f32.mrb[0].mxu0
      %v2239 = vpop.f32.mrb[0].mxu0
      %v2240 = vadd.f32 %v2079, %v2239
      %v2241 = vpop.f32.mrb[0].mxu0
      %2242 = vmatprep.mubr.bf16.mxu0 0
      %2243 = vmatmul.mubr.bf16.gmra.mrb[0].mxu0 %v865
      %v2244 = vpop.f32.mrb[0].mxu0
      %v2245 = vadd.f32 %v2084, %v2244
      %v2246 = vpop.f32.mrb[0].mxu0
      %v2247 = vpop.f32.mrb[0].mxu0
      %v2248 = vadd.f32 %v2087, %v2247
      %v2249 = vpop.f32.mrb[0].mxu0
      %2250 = vmatprep.mubr.bf16.mxu0 0
      %2251 = vmatmul.mubr.bf16.gmra.mrb[0].mxu0 %v868
      %v2252 = vpop.f32.mrb[0].mxu0
      %v2253 = vadd.f32 %v2092, %v2252
      %v2254 = vpop.f32.mrb[0].mxu0
      %v2255 = vpop.f32.mrb[0].mxu0
      %v2256 = vadd.f32 %v2095, %v2255
      %v2257 = vpop.f32.mrb[0].mxu0
      %2258 = vmatprep.mubr.bf16.mxu0 0
      %2259 = vmatmul.mubr.bf16.gmra.mrb[0].mxu0 %v871
      %v2260 = vpop.f32.mrb[0].mxu0
      %v2261 = vadd.f32 %v2100, %v2260
      %v2262 = vpop.f32.mrb[0].mxu0
      %v2263 = vpop.f32.mrb[0].mxu0
      %v2264 = vadd.f32 %v2103, %v2263
      %v2265 = vpop.f32.mrb[0].mxu0
      %2266 = vmatprep.mubr.bf16.mxu0 0
      %2267 = vmatmul.mubr.bf16.gmra.mrb[0].mxu0 %v874
      %v2268 = vpop.f32.mrb[0].mxu0
      %v2269 = vadd.f32 %v2108, %v2268
      %v2270 = vpop.f32.mrb[0].mxu0
      %v2271 = vpop.f32.mrb[0].mxu0
      %v2272 = vadd.f32 %v2111, %v2271
      %v2273 = vpop.f32.mrb[0].mxu0
      %2274 = vmatprep.mubr.bf16.mxu0 0
      %2275 = vmatmul.mubr.bf16.gmra.mrb[0].mxu0 %v908
      %v2276 = vpop.f32.mrb[0].mxu0
      %v2277 = vadd.f32 %v2116, %v2276
      %v2278 = vpop.f32.mrb[0].mxu0
      %v2279 = vpop.f32.mrb[0].mxu0
      %v2280 = vadd.f32 %v2119, %v2279
      %v2281 = vpop.f32.mrb[0].mxu0
      %2282 = vmatprep.mubr.bf16.mxu0 0
      %2283 = vmatmul.mubr.bf16.gmra.mrb[0].mxu0 %v829
      %v2284 = vpop.f32.mrb[0].mxu0
      %v2285 = vadd.f32 %v2124, %v2284
      %v2286 = vpop.f32.mrb[0].mxu0
      %v2287 = vpop.f32.mrb[0].mxu0
      %v2288 = vadd.f32 %v2127, %v2287
      %v2289 = vpop.f32.mrb[0].mxu0
      %2290 = vdwg.mxu0
      %2291 = vst [vmem:[%s231] sm:$0xff] %v2165
      %2292 = vst [vmem:[%s231 + $0x8] sm:$0xff] %v2168
      %2293 = vst [vmem:[%s231 + $0x10] sm:$0xff] %v2173
      %2294 = vst [vmem:[%s231 + $0x18] sm:$0xff] %v2176
      %2295 = vst [vmem:[%s231 + $0x20] sm:$0xff] %v2181
      %2296 = vst [vmem:[%s231 + $0x28] sm:$0xff] %v2184
      %2297 = vst [vmem:[%s231 + $0x30] sm:$0xff] %v2189
      %2298 = vst [vmem:[%s231 + $0x38] sm:$0xff] %v2192
      %2299 = vst [vmem:[%s231 + $0x40] sm:$0xff] %v2197
      %2300 = vst [vmem:[%s231 + $0x48] sm:$0xff] %v2200
      %2301 = vst [vmem:[%s231 + $0x50] sm:$0xff] %v2205
      %2302 = vst [vmem:[%s231 + $0x58] sm:$0xff] %v2208
      %2303 = vst [vmem:[%s231 + $0x60] sm:$0xff] %v2213
      %2304 = vst [vmem:[%s231 + $0x68] sm:$0xff] %v2216
      %2305 = vst [vmem:[%s231 + $0x70] sm:$0xff] %v2221
      %2306 = vst [vmem:[%s231 + $0x78] sm:$0xff] %v2224
      %2307 = vst [vmem:[%s231 + $0x80] sm:$0xff] %v2229
      %2308 = vst [vmem:[%s231 + $0x88] sm:$0xff] %v2232
      %2309 = vst [vmem:[%s231 + $0x90] sm:$0xff] %v2237
      %2310 = vst [vmem:[%s231 + $0x98] sm:$0xff] %v2240
      %2311 = vst [vmem:[%s231 + $0xa0] sm:$0xff] %v2245
      %2312 = vst [vmem:[%s231 + $0xa8] sm:$0xff] %v2248
      %2313 = vst [vmem:[%s231 + $0xb0] sm:$0xff] %v2253
      %2314 = vst [vmem:[%s231 + $0xb8] sm:$0xff] %v2256
      %2315 = vst [vmem:[%s231 + $0xc0] sm:$0xff] %v2261
      %2316 = vst [vmem:[%s231 + $0xc8] sm:$0xff] %v2264
      %2317 = vst [vmem:[%s231 + $0xd0] sm:$0xff] %v2269
      %2318 = vst [vmem:[%s231 + $0xd8] sm:$0xff] %v2272
      %2319 = vst [vmem:[%s231 + $0xe0] sm:$0xff] %v2277
      %2320 = vst [vmem:[%s231 + $0xe8] sm:$0xff] %v2280
      %2321 = vst [vmem:[%s231 + $0xf0] sm:$0xff] %v2285
      %2322 = vst [vmem:[%s231 + $0xf8] sm:$0xff] %v2288
      %v2323 = vadd.f32 %v2165, %v2168
      %v2324 = vadd.f32 %v2323, %v2173
      %v2325 = vadd.f32 %v2324, %v2176
      %v2326 = vadd.f32 %v2325, %v2181
      %v2327 = vadd.f32 %v2326, %v2184
      %v2328 = vadd.f32 %v2327, %v2189
      %v2329 = vadd.f32 %v2328, %v2192
      %v2330 = vadd.f32 %v2329, %v2197
      %v2331 = vadd.f32 %v2330, %v2200
      %v2332 = vadd.f32 %v2331, %v2205
      %v2333 = vadd.f32 %v2332, %v2208
      %v2334 = vadd.f32 %v2333, %v2213
      %v2335 = vadd.f32 %v2334, %v2216
      %v2336 = vadd.f32 %v2335, %v2221
      %v2337 = vadd.f32 %v2336, %v2224
      %v2338 = vadd.f32 %v2337, %v2229
      %v2339 = vadd.f32 %v2338, %v2232
      %v2340 = vadd.f32 %v2339, %v2237
      %v2341 = vadd.f32 %v2340, %v2240
      %v2342 = vadd.f32 %v2341, %v2245
      %v2343 = vadd.f32 %v2342, %v2248
      %v2344 = vadd.f32 %v2343, %v2253
      %v2345 = vadd.f32 %v2344, %v2256
      %v2346 = vadd.f32 %v2345, %v2261
      %v2347 = vadd.f32 %v2346, %v2264
      %v2348 = vadd.f32 %v2347, %v2269
      %v2349 = vadd.f32 %v2348, %v2272
      %v2350 = vadd.f32 %v2349, %v2277
      %v2351 = vadd.f32 %v2350, %v2280
      %v2352 = vadd.f32 %v2351, %v2285
      %v2353 = vadd.f32 %v2352, %v2288
      %v2354 = vrot.slane %v2353, 4
      %v2355 = vadd.f32 %v2353, %v2354
      %v2356 = vrot.slane %v2355, 2
      %v2357 = vadd.f32 %v2355, %v2356
      %v2358 = vrot.slane %v2357, 1
      %v2359 = vadd.f32 %v2357, %v2358
      %v2360 = vmul.f32 %v2165, %v2165
      %v2361 = vmul.f32 %v2168, %v2168
      %v2362 = vmul.f32 %v2173, %v2173
      %v2363 = vmul.f32 %v2176, %v2176
      %v2364 = vmul.f32 %v2181, %v2181
      %v2365 = vmul.f32 %v2184, %v2184
      %v2366 = vmul.f32 %v2189, %v2189
      %v2367 = vmul.f32 %v2192, %v2192
      %v2368 = vmul.f32 %v2197, %v2197
      %v2369 = vmul.f32 %v2200, %v2200
      %v2370 = vmul.f32 %v2205, %v2205
      %v2371 = vmul.f32 %v2208, %v2208
      %v2372 = vmul.f32 %v2213, %v2213
      %v2373 = vmul.f32 %v2216, %v2216
      %v2374 = vmul.f32 %v2221, %v2221
      %v2375 = vmul.f32 %v2224, %v2224
      %v2376 = vmul.f32 %v2229, %v2229
      %v2377 = vmul.f32 %v2232, %v2232
      %v2378 = vmul.f32 %v2237, %v2237
      %v2379 = vmul.f32 %v2240, %v2240
      %v2380 = vmul.f32 %v2245, %v2245
      %v2381 = vmul.f32 %v2248, %v2248
      %v2382 = vmul.f32 %v2253, %v2253
      %v2383 = vmul.f32 %v2256, %v2256
      %v2384 = vmul.f32 %v2261, %v2261
      %v2385 = vmul.f32 %v2264, %v2264
      %v2386 = vmul.f32 %v2269, %v2269
      %v2387 = vmul.f32 %v2272, %v2272
      %v2388 = vmul.f32 %v2277, %v2277
      %v2389 = vmul.f32 %v2280, %v2280
      %v2390 = vmul.f32 %v2285, %v2285
      %v2391 = vmul.f32 %v2288, %v2288
      %v2392 = vadd.f32 %v2360, %v2361
      %v2393 = vadd.f32 %v2392, %v2362
      %v2394 = vadd.f32 %v2393, %v2363
      %v2395 = vadd.f32 %v2394, %v2364
      %v2396 = vadd.f32 %v2395, %v2365
      %v2397 = vadd.f32 %v2396, %v2366
      %v2398 = vadd.f32 %v2397, %v2367
      %v2399 = vadd.f32 %v2398, %v2368
      %v2400 = vadd.f32 %v2399, %v2369
      %v2401 = vadd.f32 %v2400, %v2370
      %v2402 = vadd.f32 %v2401, %v2371
      %v2403 = vadd.f32 %v2402, %v2372
      %v2404 = vadd.f32 %v2403, %v2373
      %v2405 = vadd.f32 %v2404, %v2374
      %v2406 = vadd.f32 %v2405, %v2375
      %v2407 = vadd.f32 %v2406, %v2376
      %v2408 = vadd.f32 %v2407, %v2377
      %v2409 = vadd.f32 %v2408, %v2378
      %v2410 = vadd.f32 %v2409, %v2379
      %v2411 = vadd.f32 %v2410, %v2380
      %v2412 = vadd.f32 %v2411, %v2381
      %v2413 = vadd.f32 %v2412, %v2382
      %v2414 = vadd.f32 %v2413, %v2383
      %v2415 = vadd.f32 %v2414, %v2384
      %v2416 = vadd.f32 %v2415, %v2385
      %v2417 = vadd.f32 %v2416, %v2386
      %v2418 = vadd.f32 %v2417, %v2387
      %v2419 = vadd.f32 %v2418, %v2388
      %v2420 = vadd.f32 %v2419, %v2389
      %v2421 = vadd.f32 %v2420, %v2390
      %v2422 = vadd.f32 %v2421, %v2391
      %v2423 = vrot.slane %v2422, 4
      %v2424 = vadd.f32 %v2422, %v2423
      %v2425 = vrot.slane %v2424, 2
      %v2426 = vadd.f32 %v2424, %v2425
      %v2427 = vrot.slane %v2426, 1
      %v2428 = vadd.f32 %v2426, %v2427
      %vm2429 = vcmask 1040384
      %v2430 = vsel %vm2429, %v2359, %v2428
      %2431 = vst [vmem:[%s235] sm:$0x3] %v2430
      %p2432 = scmp.lt.s32.totalorder %s17, 1
      %s2433 = scalar_select %p2432, %s17, 1
      %s2434 = smul.addr %s2433, 32
      %s2435 = smul.addr %s2434, 8
      %s2436 = scalar_lea.vmem %s4, %s2435
      %p2437 = scmp.lt.s32.totalorder %s17, 1
      %s2438 = scalar_select %p2437, %s17, 1
      %s2439 = smul.addr %s2438, 2
      %s2440 = scalar_lea.vmem %s5, %s2439
      // Predicated region
      $region37: #{residual_block.4} parent=35 // pred_check
        %p2441 = pneg %p124
      $region38: #{residual_block.4} parent=35 // pred_check_branch
        %2443 = sbr.rel (%p2441) target = $region40
      $region39: #{residual_block.4} parent=35 // pred_region
        _
      $region40: #{residual_block.4} parent=35 // pred_fallthru
        _
      // Predicated region
      $region41: #{residual_block.4} parent=35 // pred_check
        %p2444 = pneg %p150
      $region42: #{residual_block.4} parent=35 // pred_check_branch
        %2446 = sbr.rel (%p2444) target = $region44
      $region43: #{residual_block.4} parent=35 // pred_region
        _
      $region44: #{residual_block.4} parent=35 // pred_fallthru
        _
    $region36: #{residual_block.4} parent=5 // pred_fallthru
      _
    %p2447 = scmp.le.s32.totalorder 2, %s12
    // Predicated region
    $region45: #{residual_block.4} parent=5 // pred_check
      %p2448 = pneg %p2447
    $region46: #{residual_block.4} parent=5 // pred_check_branch
      %2450 = sbr.rel (%p2448) target = $region48
    $region47: #{residual_block.4} parent=5 // pred_region
      %s2451 = ssub.s32 %s12, 2
      // Predicated region
      $region49: #{residual_block.4} parent=47 // pred_check
        %p2452 = pneg %p130
      $region50: #{residual_block.4} parent=47 // pred_check_branch
        %2454 = sbr.rel (%p2452) target = $region52
      $region51: #{residual_block.4} parent=47 // pred_region
        %p2455 = scmp.lt.s32.totalorder %s18, 1
        %s2456 = scalar_select %p2455, %s18, 1
        %s2457 = smul.addr %s2456, 32
        %s2458 = smul.addr %s2457, 8
        %s2459 = scalar_lea.vmem %s4, %s2458
      $region52: #{residual_block.4} parent=47 // pred_fallthru
        _
      // Predicated region
      $region53: #{residual_block.4} parent=47 // pred_check
        %p2460 = pneg %p156
      $region54: #{residual_block.4} parent=47 // pred_check_branch
        %2462 = sbr.rel (%p2460) target = $region56
      $region55: #{residual_block.4} parent=47 // pred_region
        %p2463 = scmp.lt.s32.totalorder %s18, 1
        %s2464 = scalar_select %p2463, %s18, 1
        %s2465 = smul.addr %s2464, 2
        %s2466 = scalar_lea.vmem %s5, %s2465
      $region56: #{residual_block.4} parent=47 // pred_fallthru
        _
    $region48: #{residual_block.4} parent=5 // pred_fallthru
      _
  $region6: #{residual_block.4} parent=0 // loop_footer
    %s16 = sadd.s32 1, %s12
  $region7: #{residual_block.4} parent=0 // loop_footer_branch
    %11 = sbr.rel target = $region3
  $region8: #{residual_block.4} parent=0 // loop_exit
    _

</llo_original>
